<compile_context>
chip_gen: v6e
topology: v6e:2x2x1
jax: 0.10.0
libtpu: 0.0.40
codegen_flags: <defaults>
</compile_context>

<pallas_src>
import math

import jax
import jax.numpy as jnp
import numpy as np
from jax.experimental import pallas as pl
from jax.experimental.pallas import tpu as pltpu

# ----------------------------- configuration ------------------------------
IN_FEATURES = 32
OUT_FEATURES = 32            # must equal IN_FEATURES so GIN -> KAN shapes line up
GRID_SIZE = 10
SPLINE_ORDER = 3
GRID_RANGE = (-1.0, 1.0)
GIN_EPS = 0.0                # torch_geometric GINConv default eps

LANE_W = 128                                  # TPU lane width
assert LANE_W % IN_FEATURES == 0 and IN_FEATURES == OUT_FEATURES
LANE_PACK = LANE_W // IN_FEATURES             # nodes packed per lane-dense row (=4)

# Node-tile candidates (largest first); all multiples of 8*LANE_PACK so the
# lane-dense row tile is sublane aligned.
TILE_CANDIDATES = (512, 256, 128)

# Matmul operand dtype.  jnp.bfloat16 on v5e/v6e/v7x ~2x MXU throughput
# (weights / adjacency / xw slabs are pre-cast outside the kernel and cat_ref
# is allocated in this dtype, so no per-step VPU casts); relax test tolerances
# if you flip it.  The elementwise basis recursion always stays f32.
MXU_DTYPE = jnp.float32

_H = (GRID_RANGE[1] - GRID_RANGE[0]) / GRID_SIZE
# The KAN `grid` buffer is identical for every input feature and fully
# determined by __init__ args -> fold it into compile-time Python float knots.
GRID_VALS = tuple(
    float(GRID_RANGE[0] + _H * i)
    for i in range(-SPLINE_ORDER, GRID_SIZE + SPLINE_ORDER + 1)
)
NUM_KNOTS = len(GRID_VALS)                    # 17
NUM_COEF = GRID_SIZE + SPLINE_ORDER           # 13


# ------------------------------ kernel bodies -----------------------------
def _mxu_dot(a, b):
    # f32 accumulation; casts are no-ops when operands are pre-cast outside.
    return jnp.dot(a.astype(MXU_DTYPE), b.astype(MXU_DTYPE),
                   preferred_element_type=jnp.float32)


def _kan_body(x_ref, wb_ref, ws_ref, cat_ref):
    """KANLinear forward on a lane-dense (td, 128) f32 tile read from x_ref.

    x_ref[r, j*IN + i] = x[LANE_PACK*r + j, i]
    wb_ref : (128, 128)           block-diagonal base_weight.T
    ws_ref : (NUM_COEF*128, 128)  block-diagonal scaled_spline_weight (c-major)
    cat_ref: (td, NUM_COEF*128)   VMEM slab for the concatenated spline bases
    """
    td = x_ref.shape[0]
    g0 = GRID_VALS[0]
    inv_h = 1.0 / _H
    n_hat = NUM_KNOTS - 2                     # 15 order-1 hat bases

    # Strip-mine over 8-sublane chunks so the live vreg set stays small
    # (~35 vregs) instead of spilling (td,128)-sized intermediates to VMEM.
    for c0 in range(td // 8):
        rows = slice(c0 * 8, (c0 + 1) * 8)
        t = (x_ref[rows, :] - g0) * inv_h                      # (8, 128)

        # Order-1 bases on the uniform knot grid synthesized directly as hat
        # functions (exactly reproduces the half-open order-0 recursion).
        b = [jnp.maximum(1.0 - jnp.abs(t - float(c + 1)), 0.0)
             for c in range(n_hat)]

        # Cox-de Boor recursion; uniform grid => every denominator is k*h, so
        # the per-term weights reduce to (t - c)/k and ((c+k+1) - t)/k.
        for k in range(2, SPLINE_ORDER + 1):
            invk = 1.0 / k
            tk = t * invk
            b = [(tk - c * invk) * b[c] - (tk - (c + k + 1) * invk) * b[c + 1]
                 for c in range(len(b) - 1)]
        # len(b) == NUM_COEF == 13

        # write each basis into its 128-lane block of the cat slab
        for c in range(NUM_COEF):
            cat_ref[rows, c * LANE_W:(c + 1) * LANE_W] = b[c].astype(cat_ref.dtype)

    # spline branch: ONE flattened matmul, K = NUM_COEF*128 = 1664
    spline = _mxu_dot(cat_ref[...], ws_ref[...])
    # base branch: relu(x) @ base_weight.T (block-diagonal => stays lane-dense)
    base = _mxu_dot(jnp.maximum(x_ref[...], 0.0), wb_ref[...])
    return base + spline


def _kan_kernel(xd_ref, wb_ref, ws_ref, o_ref, cat_ref):
    o_ref[...] = _kan_body(xd_ref, wb_ref, ws_ref, cat_ref).astype(o_ref.dtype)


def _gin_kan_kernel(a4_ref, xwb_ref, bg_ref, wb_ref, ws_ref, o_ref, cat_ref):
    # GINConv (single-Linear MLP), reassociated and with the (1+eps) self term
    # folded onto the adjacency diagonal:
    #   h = (A + (1+eps) I) @ (x @ W_gin.T) + b_gin
    # xwb_ref[j] holds x @ W_gin.T pre-placed into lane block j, and a4_ref[j]
    # holds the adjacency rows of nodes == j (mod LANE_PACK), so every partial
    # lands directly in the lane-dense layout -- no in-kernel relayout.
    hd = _mxu_dot(a4_ref[0], xwb_ref[0]) + bg_ref[...]
    for j in range(1, LANE_PACK):
        hd = hd + _mxu_dot(a4_ref[j], xwb_ref[j])
    # Stage the lane-dense h through the (f32) output block so the KAN basis
    # loop reads 8-row chunks from VMEM instead of keeping h live in vregs.
    o_ref[...] = hd.astype(o_ref.dtype)
    o_ref[...] = _kan_body(o_ref, wb_ref, ws_ref, cat_ref).astype(o_ref.dtype)


# ------------------------------ pallas wrappers ----------------------------
def _const_spec(shape):
    # VMEM-resident operand with a constant index map (fetched once).
    # TODO(synk): pipeline_mode=pl.Buffered(1) would single-buffer these and
    # save VMEM on v7x; left at the default for maximum lowering portability.
    shape = tuple(int(s) for s in shape)
    if len(shape) == 2:
        return pl.BlockSpec(shape, lambda i: (0, 0))
    if len(shape) == 3:
        return pl.BlockSpec(shape, lambda i: (0, 0, 0))
    raise ValueError(f"unsupported rank {len(shape)}")


def _choose_tile(n):
    """Largest node tile that still leaves >= 2 grid steps (v7x megacore);
    tiny graphs fall back to a single 128-node step."""
    for t in TILE_CANDIDATES:
        n_pad = -(-n // t) * t
        if n_pad // t >= 2:
            return t, n_pad
    t = TILE_CANDIDATES[-1]
    return t, -(-n // t) * t


def _vmem_limit(block_bytes, scratch_bytes):
    # double-buffered pipeline blocks + scratch + headroom, clamped under
    # v7x's 64 MiB physical VMEM (v5e/v6e have 128 MiB).
    need = 2 * block_bytes + scratch_bytes + (4 << 20)
    return int(min(max(need, 16 << 20), 60 << 20))


def kan_pallas(xd, wb_blk, ws_blk, *, tile_n):
    nd = xd.shape[0]
    td = tile_n // LANE_PACK
    assert nd % td == 0 and td % 8 == 0
    itm = jnp.dtype(MXU_DTYPE).itemsize
    block_bytes = (td * LANE_W * 4                      # xd block
                   + int(wb_blk.size) * itm + int(ws_blk.size) * itm
                   + td * LANE_W * 4)                   # out block
    scratch_bytes = td * NUM_COEF * LANE_W * itm
    return pl.pallas_call(
        _kan_kernel,
        out_shape=jax.ShapeDtypeStruct((nd, LANE_W), jnp.float32),
        grid=(nd // td,),
        in_specs=[
            pl.BlockSpec((td, LANE_W), lambda i: (i, 0)),
            _const_spec(wb_blk.shape),
            _const_spec(ws_blk.shape),
        ],
        out_specs=pl.BlockSpec((td, LANE_W), lambda i: (i, 0)),
        scratch_shapes=[pltpu.VMEM((td, NUM_COEF * LANE_W), MXU_DTYPE)],
        compiler_params=pltpu.CompilerParams(
            dimension_semantics=("parallel",),
            vmem_limit_bytes=_vmem_limit(block_bytes, scratch_bytes),
        ),
    )(xd, wb_blk, ws_blk)


def gin_kan_pallas(a4, xw_blk, bg4, wb_blk, ws_blk, *, tile_n):
    _, nd, n_pad = a4.shape
    td = tile_n // LANE_PACK
    assert nd % td == 0 and td % 8 == 0
    itm = jnp.dtype(MXU_DTYPE).itemsize
    block_bytes = (LANE_PACK * td * n_pad * itm         # adjacency block
                   + int(xw_blk.size) * itm
                   + int(bg4.size) * 4
                   + int(wb_blk.size) * itm + int(ws_blk.size) * itm
                   + td * LANE_W * 4)                   # out block
    scratch_bytes = td * NUM_COEF * LANE_W * itm
    # NOTE: for very large graphs, add a second ("arbitrary") grid axis tiling
    # the adjacency-column (K) dimension with a VMEM accumulator so the a4 and
    # xw blocks stay bounded; at these sizes one full row-group fits easily.
    return pl.pallas_call(
        _gin_kan_kernel,
        out_shape=jax.ShapeDtypeStruct((nd, LANE_W), jnp.float32),
        grid=(nd // td,),
        in_specs=[
            pl.BlockSpec((LANE_PACK, td, n_pad), lambda i: (0, i, 0)),
            _const_spec(xw_blk.shape),
            _const_spec(bg4.shape),
            _const_spec(wb_blk.shape),
            _const_spec(ws_blk.shape),
        ],
        out_specs=pl.BlockSpec((td, LANE_W), lambda i: (i, 0)),
        scratch_shapes=[pltpu.VMEM((td, NUM_COEF * LANE_W), MXU_DTYPE)],
        compiler_params=pltpu.CompilerParams(
            dimension_semantics=("parallel",),
            vmem_limit_bytes=_vmem_limit(block_bytes, scratch_bytes),
        ),
    )(a4, xw_blk, bg4, wb_blk, ws_blk)


def gin_with_kan_forward(params, x, edge_index=None):
    """Mirrors GINWithKAN.forward(x, edge_index)."""
    n, f = x.shape
    assert f == IN_FEATURES
    tile_n, n_pad = _choose_tile(n)
    xp = jnp.zeros((n_pad, f), jnp.float32).at[:n].set(x.astype(jnp.float32))

    if edge_index is None:
        # lane-dense view (row-major reshape packs 4 nodes per 128-lane row)
        xd = xp.reshape(n_pad // LANE_PACK, LANE_W)
        od = kan_pallas(xd, params["wb_blk"], params["ws_blk"], tile_n=tile_n)
        return od.reshape(n_pad, OUT_FEATURES)[:n]

    src, dst = edge_index[0], edge_index[1]
    # dense adjacency: A[target, source] = #edges source -> target, with the
    # GIN self term (1 + eps) folded onto the diagonal.
    adj = jnp.zeros((n_pad, n_pad), jnp.float32).at[dst, src].add(1.0)
    adj = adj + (1.0 + GIN_EPS) * jnp.eye(n_pad, dtype=jnp.float32)
    # group rows by (node mod LANE_PACK): a4[j, r, :] = adj[LANE_PACK*r + j, :]
    a4 = adj.reshape(n_pad // LANE_PACK, LANE_PACK, n_pad).transpose(1, 0, 2)
    a4 = a4.astype(MXU_DTYPE)

    # Reassociated GIN linear: xw = x @ W_gin.T (one tiny XLA matmul), placed
    # into per-lane-block slabs so the kernel aggregation is lane-dense.
    xw = jnp.dot(xp, params["w_gin"].T, precision=jax.lax.Precision.HIGHEST)
    xw_blk = jnp.zeros((LANE_PACK, n_pad, LANE_W), MXU_DTYPE)
    for j in range(LANE_PACK):
        xw_blk = xw_blk.at[j, :, j * IN_FEATURES:(j + 1) * IN_FEATURES].set(
            xw.astype(MXU_DTYPE))

    od = gin_kan_pallas(a4, xw_blk, params["bg4"], params["wb_blk"],
                        params["ws_blk"], tile_n=tile_n)
    return od.reshape(n_pad, OUT_FEATURES)[:n]


# ------------------------------ parameter init -----------------------------
def init_params(key):
    ks = jax.random.split(key, 5)
    # GIN mlp = nn.Linear(in, out) with PyTorch default init
    bound_g = 1.0 / math.sqrt(IN_FEATURES)
    w_gin = jax.random.uniform(
        ks[0], (OUT_FEATURES, IN_FEATURES), jnp.float32, -bound_g, bound_g
    )
    b_gin = jax.random.uniform(ks[1], (OUT_FEATURES,), jnp.float32, -bound_g, bound_g)

    # KAN base_weight / spline_scaler: kaiming_uniform(a = sqrt(5))
    a = math.sqrt(5.0)
    gain = math.sqrt(2.0 / (1.0 + a * a))
    bound_b = gain * math.sqrt(3.0 / IN_FEATURES)
    base_w = jax.random.uniform(
        ks[2], (OUT_FEATURES, IN_FEATURES), jnp.float32, -bound_b, bound_b
    )
    # TODO(synk): curve2coeff's torch.linalg.lstsq-based spline_weight init is
    # not replicated; a deterministic random init of the same shape/scale is
    # used instead (forward-pass math is unchanged).
    spline_w = (
        jax.random.uniform(ks[3], (OUT_FEATURES, IN_FEATURES, NUM_COEF), jnp.float32)
        - 0.5
    ) * (0.1 / GRID_SIZE)
    spline_scaler = jax.random.uniform(
        ks[4], (OUT_FEATURES, IN_FEATURES), jnp.float32, -bound_b, bound_b
    )
    scaled_spline_w = spline_w * spline_scaler[:, :, None]          # (OUT, IN, C)

    # kernel-side layouts: (in, out) transposes so every matmul is row-major
    # x @ W, then expanded to block-diagonal form (LANE_PACK copies on the
    # diagonal) so the matmuls act directly on the lane-dense node packing.
    # Exact kron (elementwise) -- no matmul-precision loss on the weights.
    eye4 = jnp.eye(LANE_PACK, dtype=jnp.float32)
    wb_t = base_w.T                                                 # (IN, OUT)
    ws_t = jnp.transpose(scaled_spline_w, (2, 1, 0))                # (C, IN, OUT)

    wb_blk = jnp.kron(eye4, wb_t).astype(MXU_DTYPE)                 # (128, 128)
    ws_blk = jax.vmap(lambda m: jnp.kron(eye4, m))(ws_t)            # (C, 128, 128)
    ws_blk = ws_blk.reshape(NUM_COEF * LANE_W, LANE_W).astype(MXU_DTYPE)
    bg4 = jnp.tile(b_gin, LANE_PACK).reshape(1, LANE_W)             # f32 bias

    return dict(
        wb_blk=wb_blk, ws_blk=ws_blk, bg4=bg4,
        # raw layouts (wrapper xw matmul + reference)
        w_gin=w_gin, b_gin=b_gin, base_w=base_w, scaled_spline_w=scaled_spline_w,
    )


# ------------------------------ pure-JAX reference -------------------------
def _b_splines_ref(x):
    grid = jnp.asarray(GRID_VALS, jnp.float32)
    grid = jnp.broadcast_to(grid, (IN_FEATURES, grid.shape[0]))
    xe = x[:, :, None]
    bases = ((xe >= grid[:, :-1]) & (xe < grid[:, 1:])).astype(x.dtype)
    for k in range(1, SPLINE_ORDER + 1):
        bases = (
            (xe - grid[:, : -(k + 1)])
            / (grid[:, k:-1] - grid[:, : -(k + 1)])
            * bases[:, :, :-1]
            + (grid[:, k + 1:] - xe)
            / (grid[:, k + 1:] - grid[:, 1:-k])
            * bases[:, :, 1:]
        )
    return bases


def _kan_ref(params, x):
    base = jnp.maximum(x, 0.0) @ params["base_w"].T
    b = _b_splines_ref(x).reshape(x.shape[0], -1)
    spline = b @ params["scaled_spline_w"].reshape(OUT_FEATURES, -1).T
    return base + spline


def forward_ref(params, x, edge_index=None):
    if edge_index is None:
        return _kan_ref(params, x)
    n = x.shape[0]
    adj = jnp.zeros((n, n), jnp.float32).at[edge_index[1], edge_index[0]].add(1.0)
    h = (1.0 + GIN_EPS) * x + adj @ x
    h = h @ params["w_gin"].T + params["b_gin"]
    return _kan_ref(params, h)


# ----------------------------------- main -----------------------------------
if __name__ == "__main__":
    key = jax.random.PRNGKey(0)
    kp, kx = jax.random.split(key)
    params = init_params(kp)

    N = 256  # graph nodes -> adaptive tiling picks 128 nodes/step, 2 grid steps
    x = 0.5 * jax.random.normal(kx, (N, IN_FEATURES), jnp.float32)

    # bidirectional ring graph
    idx = np.arange(N)
    src = np.concatenate([idx, idx])
    dst = np.concatenate([(idx + 1) % N, (idx - 1) % N])
    edge_index = jnp.asarray(np.stack([src, dst]), jnp.int32)

    # Tolerance note: compiled Mosaic matmuls on f32 operands are full f32, but
    # interpret-mode execution uses XLA's default TPU matmul precision (bf16
    # operand truncation), so a ~1e-2 budget keeps the check robust in both.
    RTOL = ATOL = 1e-2

    # path 1: GINConv + KANLinear
    out_graph = jax.block_until_ready(gin_with_kan_forward(params, x, edge_index))
    with jax.default_matmul_precision("highest"):
        ref_graph = jax.block_until_ready(forward_ref(params, x, edge_index))
    np.testing.assert_allclose(np.asarray(out_graph), np.asarray(ref_graph),
                               rtol=RTOL, atol=ATOL)

    # path 2: edge_index is None -> KANLinear only (node count exercises padding)
    x_small = x[:200]
    out_kan = jax.block_until_ready(gin_with_kan_forward(params, x_small, None))
    with jax.default_matmul_precision("highest"):
        ref_kan = forward_ref(params, x_small, None)
    np.testing.assert_allclose(np.asarray(out_kan), np.asarray(ref_kan),
                               rtol=RTOL, atol=ATOL)

    print("KERNEL_OK")
</pallas_src>

<mosaic_0001>
module attributes {stable_mosaic.version = 11 : i64} {
  func.func @_gin_kan_kernel(%arg0: i32, %arg1: memref<4x32x256xf32, #tpu.memory_space<vmem>>, %arg2: memref<4x256x128xf32, #tpu.memory_space<vmem>>, %arg3: memref<1x128xf32, #tpu.memory_space<vmem>>, %arg4: memref<128x128xf32, #tpu.memory_space<vmem>>, %arg5: memref<1664x128xf32, #tpu.memory_space<vmem>>, %arg6: memref<32x128xf32, #tpu.memory_space<vmem>>, %arg7: memref<32x1664xf32, #tpu.memory_space<vmem>>) attributes {dimension_semantics = [#tpu.dimension_semantics<parallel>], iteration_bounds = array<i64: 2>, scalar_prefetch = 0 : i64, scratch_operands = 1 : i64, tpu.core_type = #tpu.core_type<tc>, window_params = [{transform_indices = @transform_0, window_bounds = array<i64: 4, 32, 256>}, {pipeline_mode = #tpu.pipeline_mode<synchronous>, transform_indices = @transform_1, window_bounds = array<i64: 4, 256, 128>}, {pipeline_mode = #tpu.pipeline_mode<synchronous>, transform_indices = @transform_2, window_bounds = array<i64: 1, 128>}, {pipeline_mode = #tpu.pipeline_mode<synchronous>, transform_indices = @transform_3, window_bounds = array<i64: 128, 128>}, {pipeline_mode = #tpu.pipeline_mode<synchronous>, transform_indices = @transform_4, window_bounds = array<i64: 1664, 128>}, {transform_indices = @transform_5, window_bounds = array<i64: 32, 128>}]} {
    %c0 = arith.constant 0 : index
    %c0_0 = arith.constant 0 : index
    %c0_1 = arith.constant 0 : index
    %0 = vector.load %arg1[%c0, %c0_0, %c0_1] : memref<4x32x256xf32, #tpu.memory_space<vmem>>, vector<1x32x256xf32>
    %1 = vector.shape_cast %0 : vector<1x32x256xf32> to vector<32x256xf32>
    %c0_2 = arith.constant 0 : index
    %c0_3 = arith.constant 0 : index
    %c0_4 = arith.constant 0 : index
    %2 = vector.load %arg2[%c0_2, %c0_3, %c0_4] : memref<4x256x128xf32, #tpu.memory_space<vmem>>, vector<1x256x128xf32>
    %3 = vector.shape_cast %2 : vector<1x256x128xf32> to vector<256x128xf32>
    %cst = arith.constant dense<0.000000e+00> : vector<32x128xf32>
    %4 = tpu.matmul %1, %3, %cst {dimension_numbers = #tpu.dot_dimension_numbers<[1], [0], [0], [1], [0, 0, 1, 1], [], []>} : vector<32x256xf32>, vector<256x128xf32>, vector<32x128xf32> -> vector<32x128xf32>
    %c0_5 = arith.constant 0 : index
    %c0_6 = arith.constant 0 : index
    %5 = vector.load %arg3[%c0_5, %c0_6] : memref<1x128xf32, #tpu.memory_space<vmem>>, vector<1x128xf32>
    %6 = vector.broadcast %5 : vector<1x128xf32> to vector<32x128xf32>
    %7 = arith.addf %4, %6 : vector<32x128xf32>
    %c1 = arith.constant 1 : index
    %c0_7 = arith.constant 0 : index
    %c0_8 = arith.constant 0 : index
    %8 = vector.load %arg1[%c1, %c0_7, %c0_8] : memref<4x32x256xf32, #tpu.memory_space<vmem>>, vector<1x32x256xf32>
    %9 = vector.shape_cast %8 : vector<1x32x256xf32> to vector<32x256xf32>
    %c1_9 = arith.constant 1 : index
    %c0_10 = arith.constant 0 : index
    %c0_11 = arith.constant 0 : index
    %10 = vector.load %arg2[%c1_9, %c0_10, %c0_11] : memref<4x256x128xf32, #tpu.memory_space<vmem>>, vector<1x256x128xf32>
    %11 = vector.shape_cast %10 : vector<1x256x128xf32> to vector<256x128xf32>
    %cst_12 = arith.constant dense<0.000000e+00> : vector<32x128xf32>
    %12 = tpu.matmul %9, %11, %cst_12 {dimension_numbers = #tpu.dot_dimension_numbers<[1], [0], [0], [1], [0, 0, 1, 1], [], []>} : vector<32x256xf32>, vector<256x128xf32>, vector<32x128xf32> -> vector<32x128xf32>
    %13 = arith.addf %7, %12 : vector<32x128xf32>
    %c2 = arith.constant 2 : index
    %c0_13 = arith.constant 0 : index
    %c0_14 = arith.constant 0 : index
    %14 = vector.load %arg1[%c2, %c0_13, %c0_14] : memref<4x32x256xf32, #tpu.memory_space<vmem>>, vector<1x32x256xf32>
    %15 = vector.shape_cast %14 : vector<1x32x256xf32> to vector<32x256xf32>
    %c2_15 = arith.constant 2 : index
    %c0_16 = arith.constant 0 : index
    %c0_17 = arith.constant 0 : index
    %16 = vector.load %arg2[%c2_15, %c0_16, %c0_17] : memref<4x256x128xf32, #tpu.memory_space<vmem>>, vector<1x256x128xf32>
    %17 = vector.shape_cast %16 : vector<1x256x128xf32> to vector<256x128xf32>
    %cst_18 = arith.constant dense<0.000000e+00> : vector<32x128xf32>
    %18 = tpu.matmul %15, %17, %cst_18 {dimension_numbers = #tpu.dot_dimension_numbers<[1], [0], [0], [1], [0, 0, 1, 1], [], []>} : vector<32x256xf32>, vector<256x128xf32>, vector<32x128xf32> -> vector<32x128xf32>
    %19 = arith.addf %13, %18 : vector<32x128xf32>
    %c3 = arith.constant 3 : index
    %c0_19 = arith.constant 0 : index
    %c0_20 = arith.constant 0 : index
    %20 = vector.load %arg1[%c3, %c0_19, %c0_20] : memref<4x32x256xf32, #tpu.memory_space<vmem>>, vector<1x32x256xf32>
    %21 = vector.shape_cast %20 : vector<1x32x256xf32> to vector<32x256xf32>
    %c3_21 = arith.constant 3 : index
    %c0_22 = arith.constant 0 : index
    %c0_23 = arith.constant 0 : index
    %22 = vector.load %arg2[%c3_21, %c0_22, %c0_23] : memref<4x256x128xf32, #tpu.memory_space<vmem>>, vector<1x256x128xf32>
    %23 = vector.shape_cast %22 : vector<1x256x128xf32> to vector<256x128xf32>
    %cst_24 = arith.constant dense<0.000000e+00> : vector<32x128xf32>
    %24 = tpu.matmul %21, %23, %cst_24 {dimension_numbers = #tpu.dot_dimension_numbers<[1], [0], [0], [1], [0, 0, 1, 1], [], []>} : vector<32x256xf32>, vector<256x128xf32>, vector<32x128xf32> -> vector<32x128xf32>
    %25 = arith.addf %19, %24 : vector<32x128xf32>
    %c0_25 = arith.constant 0 : index
    %c0_26 = arith.constant 0 : index
    %26 = vector.load %arg6[%c0_25, %c0_26] : memref<32x128xf32, #tpu.memory_space<vmem>>, vector<32x128xf32>
    tpu.vector_store %arg6[%c0_25, %c0_26], %25 {strides = array<i32>} : memref<32x128xf32, #tpu.memory_space<vmem>>, vector<32x128xf32>,
    %c0_27 = arith.constant 0 : index
    %c0_28 = arith.constant 0 : index
    %27 = vector.load %arg6[%c0_27, %c0_28] : memref<32x128xf32, #tpu.memory_space<vmem>>, vector<8x128xf32>
    %cst_29 = arith.constant -1.600000e+00 : f32
    %28 = vector.broadcast %cst_29 : f32 to vector<8x128xf32>
    %29 = arith.subf %27, %28 : vector<8x128xf32>
    %cst_30 = arith.constant 5.000000e+00 : f32
    %30 = vector.broadcast %cst_30 : f32 to vector<8x128xf32>
    %31 = arith.mulf %29, %30 : vector<8x128xf32>
    %cst_31 = arith.constant 1.000000e+00 : f32
    %32 = vector.broadcast %cst_31 : f32 to vector<8x128xf32>
    %33 = arith.subf %31, %32 : vector<8x128xf32>
    %34 = math.absf %33 : vector<8x128xf32>
    %cst_32 = arith.constant 1.000000e+00 : f32
    %35 = vector.broadcast %cst_32 : f32 to vector<8x128xf32>
    %36 = arith.subf %35, %34 : vector<8x128xf32>
    %cst_33 = arith.constant 0.000000e+00 : f32
    %37 = vector.broadcast %cst_33 : f32 to vector<8x128xf32>
    %38 = arith.maximumf %36, %37 : vector<8x128xf32>
    %cst_34 = arith.constant 2.000000e+00 : f32
    %39 = vector.broadcast %cst_34 : f32 to vector<8x128xf32>
    %40 = arith.subf %31, %39 : vector<8x128xf32>
    %41 = math.absf %40 : vector<8x128xf32>
    %cst_35 = arith.constant 1.000000e+00 : f32
    %42 = vector.broadcast %cst_35 : f32 to vector<8x128xf32>
    %43 = arith.subf %42, %41 : vector<8x128xf32>
    %cst_36 = arith.constant 0.000000e+00 : f32
    %44 = vector.broadcast %cst_36 : f32 to vector<8x128xf32>
    %45 = arith.maximumf %43, %44 : vector<8x128xf32>
    %cst_37 = arith.constant 3.000000e+00 : f32
    %46 = vector.broadcast %cst_37 : f32 to vector<8x128xf32>
    %47 = arith.subf %31, %46 : vector<8x128xf32>
    %48 = math.absf %47 : vector<8x128xf32>
    %cst_38 = arith.constant 1.000000e+00 : f32
    %49 = vector.broadcast %cst_38 : f32 to vector<8x128xf32>
    %50 = arith.subf %49, %48 : vector<8x128xf32>
    %cst_39 = arith.constant 0.000000e+00 : f32
    %51 = vector.broadcast %cst_39 : f32 to vector<8x128xf32>
    %52 = arith.maximumf %50, %51 : vector<8x128xf32>
    %cst_40 = arith.constant 4.000000e+00 : f32
    %53 = vector.broadcast %cst_40 : f32 to vector<8x128xf32>
    %54 = arith.subf %31, %53 : vector<8x128xf32>
    %55 = math.absf %54 : vector<8x128xf32>
    %cst_41 = arith.constant 1.000000e+00 : f32
    %56 = vector.broadcast %cst_41 : f32 to vector<8x128xf32>
    %57 = arith.subf %56, %55 : vector<8x128xf32>
    %cst_42 = arith.constant 0.000000e+00 : f32
    %58 = vector.broadcast %cst_42 : f32 to vector<8x128xf32>
    %59 = arith.maximumf %57, %58 : vector<8x128xf32>
    %cst_43 = arith.constant 5.000000e+00 : f32
    %60 = vector.broadcast %cst_43 : f32 to vector<8x128xf32>
    %61 = arith.subf %31, %60 : vector<8x128xf32>
    %62 = math.absf %61 : vector<8x128xf32>
    %cst_44 = arith.constant 1.000000e+00 : f32
    %63 = vector.broadcast %cst_44 : f32 to vector<8x128xf32>
    %64 = arith.subf %63, %62 : vector<8x128xf32>
    %cst_45 = arith.constant 0.000000e+00 : f32
    %65 = vector.broadcast %cst_45 : f32 to vector<8x128xf32>
    %66 = arith.maximumf %64, %65 : vector<8x128xf32>
    %cst_46 = arith.constant 6.000000e+00 : f32
    %67 = vector.broadcast %cst_46 : f32 to vector<8x128xf32>
    %68 = arith.subf %31, %67 : vector<8x128xf32>
    %69 = math.absf %68 : vector<8x128xf32>
    %cst_47 = arith.constant 1.000000e+00 : f32
    %70 = vector.broadcast %cst_47 : f32 to vector<8x128xf32>
    %71 = arith.subf %70, %69 : vector<8x128xf32>
    %cst_48 = arith.constant 0.000000e+00 : f32
    %72 = vector.broadcast %cst_48 : f32 to vector<8x128xf32>
    %73 = arith.maximumf %71, %72 : vector<8x128xf32>
    %cst_49 = arith.constant 7.000000e+00 : f32
    %74 = vector.broadcast %cst_49 : f32 to vector<8x128xf32>
    %75 = arith.subf %31, %74 : vector<8x128xf32>
    %76 = math.absf %75 : vector<8x128xf32>
    %cst_50 = arith.constant 1.000000e+00 : f32
    %77 = vector.broadcast %cst_50 : f32 to vector<8x128xf32>
    %78 = arith.subf %77, %76 : vector<8x128xf32>
    %cst_51 = arith.constant 0.000000e+00 : f32
    %79 = vector.broadcast %cst_51 : f32 to vector<8x128xf32>
    %80 = arith.maximumf %78, %79 : vector<8x128xf32>
    %cst_52 = arith.constant 8.000000e+00 : f32
    %81 = vector.broadcast %cst_52 : f32 to vector<8x128xf32>
    %82 = arith.subf %31, %81 : vector<8x128xf32>
    %83 = math.absf %82 : vector<8x128xf32>
    %cst_53 = arith.constant 1.000000e+00 : f32
    %84 = vector.broadcast %cst_53 : f32 to vector<8x128xf32>
    %85 = arith.subf %84, %83 : vector<8x128xf32>
    %cst_54 = arith.constant 0.000000e+00 : f32
    %86 = vector.broadcast %cst_54 : f32 to vector<8x128xf32>
    %87 = arith.maximumf %85, %86 : vector<8x128xf32>
    %cst_55 = arith.constant 9.000000e+00 : f32
    %88 = vector.broadcast %cst_55 : f32 to vector<8x128xf32>
    %89 = arith.subf %31, %88 : vector<8x128xf32>
    %90 = math.absf %89 : vector<8x128xf32>
    %cst_56 = arith.constant 1.000000e+00 : f32
    %91 = vector.broadcast %cst_56 : f32 to vector<8x128xf32>
    %92 = arith.subf %91, %90 : vector<8x128xf32>
    %cst_57 = arith.constant 0.000000e+00 : f32
    %93 = vector.broadcast %cst_57 : f32 to vector<8x128xf32>
    %94 = arith.maximumf %92, %93 : vector<8x128xf32>
    %cst_58 = arith.constant 1.000000e+01 : f32
    %95 = vector.broadcast %cst_58 : f32 to vector<8x128xf32>
    %96 = arith.subf %31, %95 : vector<8x128xf32>
    %97 = math.absf %96 : vector<8x128xf32>
    %cst_59 = arith.constant 1.000000e+00 : f32
    %98 = vector.broadcast %cst_59 : f32 to vector<8x128xf32>
    %99 = arith.subf %98, %97 : vector<8x128xf32>
    %cst_60 = arith.constant 0.000000e+00 : f32
    %100 = vector.broadcast %cst_60 : f32 to vector<8x128xf32>
    %101 = arith.maximumf %99, %100 : vector<8x128xf32>
    %cst_61 = arith.constant 1.100000e+01 : f32
    %102 = vector.broadcast %cst_61 : f32 to vector<8x128xf32>
    %103 = arith.subf %31, %102 : vector<8x128xf32>
    %104 = math.absf %103 : vector<8x128xf32>
    %cst_62 = arith.constant 1.000000e+00 : f32
    %105 = vector.broadcast %cst_62 : f32 to vector<8x128xf32>
    %106 = arith.subf %105, %104 : vector<8x128xf32>
    %cst_63 = arith.constant 0.000000e+00 : f32
    %107 = vector.broadcast %cst_63 : f32 to vector<8x128xf32>
    %108 = arith.maximumf %106, %107 : vector<8x128xf32>
    %cst_64 = arith.constant 1.200000e+01 : f32
    %109 = vector.broadcast %cst_64 : f32 to vector<8x128xf32>
    %110 = arith.subf %31, %109 : vector<8x128xf32>
    %111 = math.absf %110 : vector<8x128xf32>
    %cst_65 = arith.constant 1.000000e+00 : f32
    %112 = vector.broadcast %cst_65 : f32 to vector<8x128xf32>
    %113 = arith.subf %112, %111 : vector<8x128xf32>
    %cst_66 = arith.constant 0.000000e+00 : f32
    %114 = vector.broadcast %cst_66 : f32 to vector<8x128xf32>
    %115 = arith.maximumf %113, %114 : vector<8x128xf32>
    %cst_67 = arith.constant 1.300000e+01 : f32
    %116 = vector.broadcast %cst_67 : f32 to vector<8x128xf32>
    %117 = arith.subf %31, %116 : vector<8x128xf32>
    %118 = math.absf %117 : vector<8x128xf32>
    %cst_68 = arith.constant 1.000000e+00 : f32
    %119 = vector.broadcast %cst_68 : f32 to vector<8x128xf32>
    %120 = arith.subf %119, %118 : vector<8x128xf32>
    %cst_69 = arith.constant 0.000000e+00 : f32
    %121 = vector.broadcast %cst_69 : f32 to vector<8x128xf32>
    %122 = arith.maximumf %120, %121 : vector<8x128xf32>
    %cst_70 = arith.constant 1.400000e+01 : f32
    %123 = vector.broadcast %cst_70 : f32 to vector<8x128xf32>
    %124 = arith.subf %31, %123 : vector<8x128xf32>
    %125 = math.absf %124 : vector<8x128xf32>
    %cst_71 = arith.constant 1.000000e+00 : f32
    %126 = vector.broadcast %cst_71 : f32 to vector<8x128xf32>
    %127 = arith.subf %126, %125 : vector<8x128xf32>
    %cst_72 = arith.constant 0.000000e+00 : f32
    %128 = vector.broadcast %cst_72 : f32 to vector<8x128xf32>
    %129 = arith.maximumf %127, %128 : vector<8x128xf32>
    %cst_73 = arith.constant 1.500000e+01 : f32
    %130 = vector.broadcast %cst_73 : f32 to vector<8x128xf32>
    %131 = arith.subf %31, %130 : vector<8x128xf32>
    %132 = math.absf %131 : vector<8x128xf32>
    %cst_74 = arith.constant 1.000000e+00 : f32
    %133 = vector.broadcast %cst_74 : f32 to vector<8x128xf32>
    %134 = arith.subf %133, %132 : vector<8x128xf32>
    %cst_75 = arith.constant 0.000000e+00 : f32
    %135 = vector.broadcast %cst_75 : f32 to vector<8x128xf32>
    %136 = arith.maximumf %134, %135 : vector<8x128xf32>
    %cst_76 = arith.constant 5.000000e-01 : f32
    %137 = vector.broadcast %cst_76 : f32 to vector<8x128xf32>
    %138 = arith.mulf %31, %137 : vector<8x128xf32>
    %cst_77 = arith.constant 0.000000e+00 : f32
    %139 = vector.broadcast %cst_77 : f32 to vector<8x128xf32>
    %140 = arith.subf %138, %139 : vector<8x128xf32>
    %141 = arith.mulf %140, %38 : vector<8x128xf32>
    %cst_78 = arith.constant 1.500000e+00 : f32
    %142 = vector.broadcast %cst_78 : f32 to vector<8x128xf32>
    %143 = arith.subf %138, %142 : vector<8x128xf32>
    %144 = arith.mulf %143, %45 : vector<8x128xf32>
    %145 = arith.subf %141, %144 : vector<8x128xf32>
    %cst_79 = arith.constant 5.000000e-01 : f32
    %146 = vector.broadcast %cst_79 : f32 to vector<8x128xf32>
    %147 = arith.subf %138, %146 : vector<8x128xf32>
    %148 = arith.mulf %147, %45 : vector<8x128xf32>
    %cst_80 = arith.constant 2.000000e+00 : f32
    %149 = vector.broadcast %cst_80 : f32 to vector<8x128xf32>
    %150 = arith.subf %138, %149 : vector<8x128xf32>
    %151 = arith.mulf %150, %52 : vector<8x128xf32>
    %152 = arith.subf %148, %151 : vector<8x128xf32>
    %cst_81 = arith.constant 1.000000e+00 : f32
    %153 = vector.broadcast %cst_81 : f32 to vector<8x128xf32>
    %154 = arith.subf %138, %153 : vector<8x128xf32>
    %155 = arith.mulf %154, %52 : vector<8x128xf32>
    %cst_82 = arith.constant 2.500000e+00 : f32
    %156 = vector.broadcast %cst_82 : f32 to vector<8x128xf32>
    %157 = arith.subf %138, %156 : vector<8x128xf32>
    %158 = arith.mulf %157, %59 : vector<8x128xf32>
    %159 = arith.subf %155, %158 : vector<8x128xf32>
    %cst_83 = arith.constant 1.500000e+00 : f32
    %160 = vector.broadcast %cst_83 : f32 to vector<8x128xf32>
    %161 = arith.subf %138, %160 : vector<8x128xf32>
    %162 = arith.mulf %161, %59 : vector<8x128xf32>
    %cst_84 = arith.constant 3.000000e+00 : f32
    %163 = vector.broadcast %cst_84 : f32 to vector<8x128xf32>
    %164 = arith.subf %138, %163 : vector<8x128xf32>
    %165 = arith.mulf %164, %66 : vector<8x128xf32>
    %166 = arith.subf %162, %165 : vector<8x128xf32>
    %cst_85 = arith.constant 2.000000e+00 : f32
    %167 = vector.broadcast %cst_85 : f32 to vector<8x128xf32>
    %168 = arith.subf %138, %167 : vector<8x128xf32>
    %169 = arith.mulf %168, %66 : vector<8x128xf32>
    %cst_86 = arith.constant 3.500000e+00 : f32
    %170 = vector.broadcast %cst_86 : f32 to vector<8x128xf32>
    %171 = arith.subf %138, %170 : vector<8x128xf32>
    %172 = arith.mulf %171, %73 : vector<8x128xf32>
    %173 = arith.subf %169, %172 : vector<8x128xf32>
    %cst_87 = arith.constant 2.500000e+00 : f32
    %174 = vector.broadcast %cst_87 : f32 to vector<8x128xf32>
    %175 = arith.subf %138, %174 : vector<8x128xf32>
    %176 = arith.mulf %175, %73 : vector<8x128xf32>
    %cst_88 = arith.constant 4.000000e+00 : f32
    %177 = vector.broadcast %cst_88 : f32 to vector<8x128xf32>
    %178 = arith.subf %138, %177 : vector<8x128xf32>
    %179 = arith.mulf %178, %80 : vector<8x128xf32>
    %180 = arith.subf %176, %179 : vector<8x128xf32>
    %cst_89 = arith.constant 3.000000e+00 : f32
    %181 = vector.broadcast %cst_89 : f32 to vector<8x128xf32>
    %182 = arith.subf %138, %181 : vector<8x128xf32>
    %183 = arith.mulf %182, %80 : vector<8x128xf32>
    %cst_90 = arith.constant 4.500000e+00 : f32
    %184 = vector.broadcast %cst_90 : f32 to vector<8x128xf32>
    %185 = arith.subf %138, %184 : vector<8x128xf32>
    %186 = arith.mulf %185, %87 : vector<8x128xf32>
    %187 = arith.subf %183, %186 : vector<8x128xf32>
    %cst_91 = arith.constant 3.500000e+00 : f32
    %188 = vector.broadcast %cst_91 : f32 to vector<8x128xf32>
    %189 = arith.subf %138, %188 : vector<8x128xf32>
    %190 = arith.mulf %189, %87 : vector<8x128xf32>
    %cst_92 = arith.constant 5.000000e+00 : f32
    %191 = vector.broadcast %cst_92 : f32 to vector<8x128xf32>
    %192 = arith.subf %138, %191 : vector<8x128xf32>
    %193 = arith.mulf %192, %94 : vector<8x128xf32>
    %194 = arith.subf %190, %193 : vector<8x128xf32>
    %cst_93 = arith.constant 4.000000e+00 : f32
    %195 = vector.broadcast %cst_93 : f32 to vector<8x128xf32>
    %196 = arith.subf %138, %195 : vector<8x128xf32>
    %197 = arith.mulf %196, %94 : vector<8x128xf32>
    %cst_94 = arith.constant 5.500000e+00 : f32
    %198 = vector.broadcast %cst_94 : f32 to vector<8x128xf32>
    %199 = arith.subf %138, %198 : vector<8x128xf32>
    %200 = arith.mulf %199, %101 : vector<8x128xf32>
    %201 = arith.subf %197, %200 : vector<8x128xf32>
    %cst_95 = arith.constant 4.500000e+00 : f32
    %202 = vector.broadcast %cst_95 : f32 to vector<8x128xf32>
    %203 = arith.subf %138, %202 : vector<8x128xf32>
    %204 = arith.mulf %203, %101 : vector<8x128xf32>
    %cst_96 = arith.constant 6.000000e+00 : f32
    %205 = vector.broadcast %cst_96 : f32 to vector<8x128xf32>
    %206 = arith.subf %138, %205 : vector<8x128xf32>
    %207 = arith.mulf %206, %108 : vector<8x128xf32>
    %208 = arith.subf %204, %207 : vector<8x128xf32>
    %cst_97 = arith.constant 5.000000e+00 : f32
    %209 = vector.broadcast %cst_97 : f32 to vector<8x128xf32>
    %210 = arith.subf %138, %209 : vector<8x128xf32>
    %211 = arith.mulf %210, %108 : vector<8x128xf32>
    %cst_98 = arith.constant 6.500000e+00 : f32
    %212 = vector.broadcast %cst_98 : f32 to vector<8x128xf32>
    %213 = arith.subf %138, %212 : vector<8x128xf32>
    %214 = arith.mulf %213, %115 : vector<8x128xf32>
    %215 = arith.subf %211, %214 : vector<8x128xf32>
    %cst_99 = arith.constant 5.500000e+00 : f32
    %216 = vector.broadcast %cst_99 : f32 to vector<8x128xf32>
    %217 = arith.subf %138, %216 : vector<8x128xf32>
    %218 = arith.mulf %217, %115 : vector<8x128xf32>
    %cst_100 = arith.constant 7.000000e+00 : f32
    %219 = vector.broadcast %cst_100 : f32 to vector<8x128xf32>
    %220 = arith.subf %138, %219 : vector<8x128xf32>
    %221 = arith.mulf %220, %122 : vector<8x128xf32>
    %222 = arith.subf %218, %221 : vector<8x128xf32>
    %cst_101 = arith.constant 6.000000e+00 : f32
    %223 = vector.broadcast %cst_101 : f32 to vector<8x128xf32>
    %224 = arith.subf %138, %223 : vector<8x128xf32>
    %225 = arith.mulf %224, %122 : vector<8x128xf32>
    %cst_102 = arith.constant 7.500000e+00 : f32
    %226 = vector.broadcast %cst_102 : f32 to vector<8x128xf32>
    %227 = arith.subf %138, %226 : vector<8x128xf32>
    %228 = arith.mulf %227, %129 : vector<8x128xf32>
    %229 = arith.subf %225, %228 : vector<8x128xf32>
    %cst_103 = arith.constant 6.500000e+00 : f32
    %230 = vector.broadcast %cst_103 : f32 to vector<8x128xf32>
    %231 = arith.subf %138, %230 : vector<8x128xf32>
    %232 = arith.mulf %231, %129 : vector<8x128xf32>
    %cst_104 = arith.constant 8.000000e+00 : f32
    %233 = vector.broadcast %cst_104 : f32 to vector<8x128xf32>
    %234 = arith.subf %138, %233 : vector<8x128xf32>
    %235 = arith.mulf %234, %136 : vector<8x128xf32>
    %236 = arith.subf %232, %235 : vector<8x128xf32>
    %cst_105 = arith.constant 0.333333343 : f32
    %237 = vector.broadcast %cst_105 : f32 to vector<8x128xf32>
    %238 = arith.mulf %31, %237 : vector<8x128xf32>
    %cst_106 = arith.constant 0.000000e+00 : f32
    %239 = vector.broadcast %cst_106 : f32 to vector<8x128xf32>
    %240 = arith.subf %238, %239 : vector<8x128xf32>
    %241 = arith.mulf %240, %145 : vector<8x128xf32>
    %cst_107 = arith.constant 1.33333337 : f32
    %242 = vector.broadcast %cst_107 : f32 to vector<8x128xf32>
    %243 = arith.subf %238, %242 : vector<8x128xf32>
    %244 = arith.mulf %243, %152 : vector<8x128xf32>
    %245 = arith.subf %241, %244 : vector<8x128xf32>
    %cst_108 = arith.constant 0.333333343 : f32
    %246 = vector.broadcast %cst_108 : f32 to vector<8x128xf32>
    %247 = arith.subf %238, %246 : vector<8x128xf32>
    %248 = arith.mulf %247, %152 : vector<8x128xf32>
    %cst_109 = arith.constant 1.66666663 : f32
    %249 = vector.broadcast %cst_109 : f32 to vector<8x128xf32>
    %250 = arith.subf %238, %249 : vector<8x128xf32>
    %251 = arith.mulf %250, %159 : vector<8x128xf32>
    %252 = arith.subf %248, %251 : vector<8x128xf32>
    %cst_110 = arith.constant 0.666666686 : f32
    %253 = vector.broadcast %cst_110 : f32 to vector<8x128xf32>
    %254 = arith.subf %238, %253 : vector<8x128xf32>
    %255 = arith.mulf %254, %159 : vector<8x128xf32>
    %cst_111 = arith.constant 2.000000e+00 : f32
    %256 = vector.broadcast %cst_111 : f32 to vector<8x128xf32>
    %257 = arith.subf %238, %256 : vector<8x128xf32>
    %258 = arith.mulf %257, %166 : vector<8x128xf32>
    %259 = arith.subf %255, %258 : vector<8x128xf32>
    %cst_112 = arith.constant 1.000000e+00 : f32
    %260 = vector.broadcast %cst_112 : f32 to vector<8x128xf32>
    %261 = arith.subf %238, %260 : vector<8x128xf32>
    %262 = arith.mulf %261, %166 : vector<8x128xf32>
    %cst_113 = arith.constant 2.33333325 : f32
    %263 = vector.broadcast %cst_113 : f32 to vector<8x128xf32>
    %264 = arith.subf %238, %263 : vector<8x128xf32>
    %265 = arith.mulf %264, %173 : vector<8x128xf32>
    %266 = arith.subf %262, %265 : vector<8x128xf32>
    %cst_114 = arith.constant 1.33333337 : f32
    %267 = vector.broadcast %cst_114 : f32 to vector<8x128xf32>
    %268 = arith.subf %238, %267 : vector<8x128xf32>
    %269 = arith.mulf %268, %173 : vector<8x128xf32>
    %cst_115 = arith.constant 2.66666675 : f32
    %270 = vector.broadcast %cst_115 : f32 to vector<8x128xf32>
    %271 = arith.subf %238, %270 : vector<8x128xf32>
    %272 = arith.mulf %271, %180 : vector<8x128xf32>
    %273 = arith.subf %269, %272 : vector<8x128xf32>
    %cst_116 = arith.constant 1.66666663 : f32
    %274 = vector.broadcast %cst_116 : f32 to vector<8x128xf32>
    %275 = arith.subf %238, %274 : vector<8x128xf32>
    %276 = arith.mulf %275, %180 : vector<8x128xf32>
    %cst_117 = arith.constant 3.000000e+00 : f32
    %277 = vector.broadcast %cst_117 : f32 to vector<8x128xf32>
    %278 = arith.subf %238, %277 : vector<8x128xf32>
    %279 = arith.mulf %278, %187 : vector<8x128xf32>
    %280 = arith.subf %276, %279 : vector<8x128xf32>
    %cst_118 = arith.constant 2.000000e+00 : f32
    %281 = vector.broadcast %cst_118 : f32 to vector<8x128xf32>
    %282 = arith.subf %238, %281 : vector<8x128xf32>
    %283 = arith.mulf %282, %187 : vector<8x128xf32>
    %cst_119 = arith.constant 3.33333325 : f32
    %284 = vector.broadcast %cst_119 : f32 to vector<8x128xf32>
    %285 = arith.subf %238, %284 : vector<8x128xf32>
    %286 = arith.mulf %285, %194 : vector<8x128xf32>
    %287 = arith.subf %283, %286 : vector<8x128xf32>
    %cst_120 = arith.constant 2.33333325 : f32
    %288 = vector.broadcast %cst_120 : f32 to vector<8x128xf32>
    %289 = arith.subf %238, %288 : vector<8x128xf32>
    %290 = arith.mulf %289, %194 : vector<8x128xf32>
    %cst_121 = arith.constant 3.66666675 : f32
    %291 = vector.broadcast %cst_121 : f32 to vector<8x128xf32>
    %292 = arith.subf %238, %291 : vector<8x128xf32>
    %293 = arith.mulf %292, %201 : vector<8x128xf32>
    %294 = arith.subf %290, %293 : vector<8x128xf32>
    %cst_122 = arith.constant 2.66666675 : f32
    %295 = vector.broadcast %cst_122 : f32 to vector<8x128xf32>
    %296 = arith.subf %238, %295 : vector<8x128xf32>
    %297 = arith.mulf %296, %201 : vector<8x128xf32>
    %cst_123 = arith.constant 4.000000e+00 : f32
    %298 = vector.broadcast %cst_123 : f32 to vector<8x128xf32>
    %299 = arith.subf %238, %298 : vector<8x128xf32>
    %300 = arith.mulf %299, %208 : vector<8x128xf32>
    %301 = arith.subf %297, %300 : vector<8x128xf32>
    %cst_124 = arith.constant 3.000000e+00 : f32
    %302 = vector.broadcast %cst_124 : f32 to vector<8x128xf32>
    %303 = arith.subf %238, %302 : vector<8x128xf32>
    %304 = arith.mulf %303, %208 : vector<8x128xf32>
    %cst_125 = arith.constant 4.33333349 : f32
    %305 = vector.broadcast %cst_125 : f32 to vector<8x128xf32>
    %306 = arith.subf %238, %305 : vector<8x128xf32>
    %307 = arith.mulf %306, %215 : vector<8x128xf32>
    %308 = arith.subf %304, %307 : vector<8x128xf32>
    %cst_126 = arith.constant 3.33333325 : f32
    %309 = vector.broadcast %cst_126 : f32 to vector<8x128xf32>
    %310 = arith.subf %238, %309 : vector<8x128xf32>
    %311 = arith.mulf %310, %215 : vector<8x128xf32>
    %cst_127 = arith.constant 4.66666651 : f32
    %312 = vector.broadcast %cst_127 : f32 to vector<8x128xf32>
    %313 = arith.subf %238, %312 : vector<8x128xf32>
    %314 = arith.mulf %313, %222 : vector<8x128xf32>
    %315 = arith.subf %311, %314 : vector<8x128xf32>
    %cst_128 = arith.constant 3.66666675 : f32
    %316 = vector.broadcast %cst_128 : f32 to vector<8x128xf32>
    %317 = arith.subf %238, %316 : vector<8x128xf32>
    %318 = arith.mulf %317, %222 : vector<8x128xf32>
    %cst_129 = arith.constant 5.000000e+00 : f32
    %319 = vector.broadcast %cst_129 : f32 to vector<8x128xf32>
    %320 = arith.subf %238, %319 : vector<8x128xf32>
    %321 = arith.mulf %320, %229 : vector<8x128xf32>
    %322 = arith.subf %318, %321 : vector<8x128xf32>
    %cst_130 = arith.constant 4.000000e+00 : f32
    %323 = vector.broadcast %cst_130 : f32 to vector<8x128xf32>
    %324 = arith.subf %238, %323 : vector<8x128xf32>
    %325 = arith.mulf %324, %229 : vector<8x128xf32>
    %cst_131 = arith.constant 5.33333349 : f32
    %326 = vector.broadcast %cst_131 : f32 to vector<8x128xf32>
    %327 = arith.subf %238, %326 : vector<8x128xf32>
    %328 = arith.mulf %327, %236 : vector<8x128xf32>
    %329 = arith.subf %325, %328 : vector<8x128xf32>
    %c0_132 = arith.constant 0 : index
    %c0_133 = arith.constant 0 : index
    %330 = vector.load %arg7[%c0_132, %c0_133] : memref<32x1664xf32, #tpu.memory_space<vmem>>, vector<8x128xf32>
    tpu.vector_store %arg7[%c0_132, %c0_133], %245 {strides = array<i32>} : memref<32x1664xf32, #tpu.memory_space<vmem>>, vector<8x128xf32>,
    %c0_134 = arith.constant 0 : index
    %c128 = arith.constant 128 : index
    %331 = vector.load %arg7[%c0_134, %c128] : memref<32x1664xf32, #tpu.memory_space<vmem>>, vector<8x128xf32>
    tpu.vector_store %arg7[%c0_134, %c128], %252 {strides = array<i32>} : memref<32x1664xf32, #tpu.memory_space<vmem>>, vector<8x128xf32>,
    %c0_135 = arith.constant 0 : index
    %c256 = arith.constant 256 : index
    %332 = vector.load %arg7[%c0_135, %c256] : memref<32x1664xf32, #tpu.memory_space<vmem>>, vector<8x128xf32>
    tpu.vector_store %arg7[%c0_135, %c256], %259 {strides = array<i32>} : memref<32x1664xf32, #tpu.memory_space<vmem>>, vector<8x128xf32>,
    %c0_136 = arith.constant 0 : index
    %c384 = arith.constant 384 : index
    %333 = vector.load %arg7[%c0_136, %c384] : memref<32x1664xf32, #tpu.memory_space<vmem>>, vector<8x128xf32>
    tpu.vector_store %arg7[%c0_136, %c384], %266 {strides = array<i32>} : memref<32x1664xf32, #tpu.memory_space<vmem>>, vector<8x128xf32>,
    %c0_137 = arith.constant 0 : index
    %c512 = arith.constant 512 : index
    %334 = vector.load %arg7[%c0_137, %c512] : memref<32x1664xf32, #tpu.memory_space<vmem>>, vector<8x128xf32>
    tpu.vector_store %arg7[%c0_137, %c512], %273 {strides = array<i32>} : memref<32x1664xf32, #tpu.memory_space<vmem>>, vector<8x128xf32>,
    %c0_138 = arith.constant 0 : index
    %c640 = arith.constant 640 : index
    %335 = vector.load %arg7[%c0_138, %c640] : memref<32x1664xf32, #tpu.memory_space<vmem>>, vector<8x128xf32>
    tpu.vector_store %arg7[%c0_138, %c640], %280 {strides = array<i32>} : memref<32x1664xf32, #tpu.memory_space<vmem>>, vector<8x128xf32>,
    %c0_139 = arith.constant 0 : index
    %c768 = arith.constant 768 : index
    %336 = vector.load %arg7[%c0_139, %c768] : memref<32x1664xf32, #tpu.memory_space<vmem>>, vector<8x128xf32>
    tpu.vector_store %arg7[%c0_139, %c768], %287 {strides = array<i32>} : memref<32x1664xf32, #tpu.memory_space<vmem>>, vector<8x128xf32>,
    %c0_140 = arith.constant 0 : index
    %c896 = arith.constant 896 : index
    %337 = vector.load %arg7[%c0_140, %c896] : memref<32x1664xf32, #tpu.memory_space<vmem>>, vector<8x128xf32>
    tpu.vector_store %arg7[%c0_140, %c896], %294 {strides = array<i32>} : memref<32x1664xf32, #tpu.memory_space<vmem>>, vector<8x128xf32>,
    %c0_141 = arith.constant 0 : index
    %c1024 = arith.constant 1024 : index
    %338 = vector.load %arg7[%c0_141, %c1024] : memref<32x1664xf32, #tpu.memory_space<vmem>>, vector<8x128xf32>
    tpu.vector_store %arg7[%c0_141, %c1024], %301 {strides = array<i32>} : memref<32x1664xf32, #tpu.memory_space<vmem>>, vector<8x128xf32>,
    %c0_142 = arith.constant 0 : index
    %c1152 = arith.constant 1152 : index
    %339 = vector.load %arg7[%c0_142, %c1152] : memref<32x1664xf32, #tpu.memory_space<vmem>>, vector<8x128xf32>
    tpu.vector_store %arg7[%c0_142, %c1152], %308 {strides = array<i32>} : memref<32x1664xf32, #tpu.memory_space<vmem>>, vector<8x128xf32>,
    %c0_143 = arith.constant 0 : index
    %c1280 = arith.constant 1280 : index
    %340 = vector.load %arg7[%c0_143, %c1280] : memref<32x1664xf32, #tpu.memory_space<vmem>>, vector<8x128xf32>
    tpu.vector_store %arg7[%c0_143, %c1280], %315 {strides = array<i32>} : memref<32x1664xf32, #tpu.memory_space<vmem>>, vector<8x128xf32>,
    %c0_144 = arith.constant 0 : index
    %c1408 = arith.constant 1408 : index
    %341 = vector.load %arg7[%c0_144, %c1408] : memref<32x1664xf32, #tpu.memory_space<vmem>>, vector<8x128xf32>
    tpu.vector_store %arg7[%c0_144, %c1408], %322 {strides = array<i32>} : memref<32x1664xf32, #tpu.memory_space<vmem>>, vector<8x128xf32>,
    %c0_145 = arith.constant 0 : index
    %c1536 = arith.constant 1536 : index
    %342 = vector.load %arg7[%c0_145, %c1536] : memref<32x1664xf32, #tpu.memory_space<vmem>>, vector<8x128xf32>
    tpu.vector_store %arg7[%c0_145, %c1536], %329 {strides = array<i32>} : memref<32x1664xf32, #tpu.memory_space<vmem>>, vector<8x128xf32>,
    %c8 = arith.constant 8 : index
    %c0_146 = arith.constant 0 : index
    %343 = vector.load %arg6[%c8, %c0_146] : memref<32x128xf32, #tpu.memory_space<vmem>>, vector<8x128xf32>
    %cst_147 = arith.constant -1.600000e+00 : f32
    %344 = vector.broadcast %cst_147 : f32 to vector<8x128xf32>
    %345 = arith.subf %343, %344 : vector<8x128xf32>
    %cst_148 = arith.constant 5.000000e+00 : f32
    %346 = vector.broadcast %cst_148 : f32 to vector<8x128xf32>
    %347 = arith.mulf %345, %346 : vector<8x128xf32>
    %cst_149 = arith.constant 1.000000e+00 : f32
    %348 = vector.broadcast %cst_149 : f32 to vector<8x128xf32>
    %349 = arith.subf %347, %348 : vector<8x128xf32>
    %350 = math.absf %349 : vector<8x128xf32>
    %cst_150 = arith.constant 1.000000e+00 : f32
    %351 = vector.broadcast %cst_150 : f32 to vector<8x128xf32>
    %352 = arith.subf %351, %350 : vector<8x128xf32>
    %cst_151 = arith.constant 0.000000e+00 : f32
    %353 = vector.broadcast %cst_151 : f32 to vector<8x128xf32>
    %354 = arith.maximumf %352, %353 : vector<8x128xf32>
    %cst_152 = arith.constant 2.000000e+00 : f32
    %355 = vector.broadcast %cst_152 : f32 to vector<8x128xf32>
    %356 = arith.subf %347, %355 : vector<8x128xf32>
    %357 = math.absf %356 : vector<8x128xf32>
    %cst_153 = arith.constant 1.000000e+00 : f32
    %358 = vector.broadcast %cst_153 : f32 to vector<8x128xf32>
    %359 = arith.subf %358, %357 : vector<8x128xf32>
    %cst_154 = arith.constant 0.000000e+00 : f32
    %360 = vector.broadcast %cst_154 : f32 to vector<8x128xf32>
    %361 = arith.maximumf %359, %360 : vector<8x128xf32>
    %cst_155 = arith.constant 3.000000e+00 : f32
    %362 = vector.broadcast %cst_155 : f32 to vector<8x128xf32>
    %363 = arith.subf %347, %362 : vector<8x128xf32>
    %364 = math.absf %363 : vector<8x128xf32>
    %cst_156 = arith.constant 1.000000e+00 : f32
    %365 = vector.broadcast %cst_156 : f32 to vector<8x128xf32>
    %366 = arith.subf %365, %364 : vector<8x128xf32>
    %cst_157 = arith.constant 0.000000e+00 : f32
    %367 = vector.broadcast %cst_157 : f32 to vector<8x128xf32>
    %368 = arith.maximumf %366, %367 : vector<8x128xf32>
    %cst_158 = arith.constant 4.000000e+00 : f32
    %369 = vector.broadcast %cst_158 : f32 to vector<8x128xf32>
    %370 = arith.subf %347, %369 : vector<8x128xf32>
    %371 = math.absf %370 : vector<8x128xf32>
    %cst_159 = arith.constant 1.000000e+00 : f32
    %372 = vector.broadcast %cst_159 : f32 to vector<8x128xf32>
    %373 = arith.subf %372, %371 : vector<8x128xf32>
    %cst_160 = arith.constant 0.000000e+00 : f32
    %374 = vector.broadcast %cst_160 : f32 to vector<8x128xf32>
    %375 = arith.maximumf %373, %374 : vector<8x128xf32>
    %cst_161 = arith.constant 5.000000e+00 : f32
    %376 = vector.broadcast %cst_161 : f32 to vector<8x128xf32>
    %377 = arith.subf %347, %376 : vector<8x128xf32>
    %378 = math.absf %377 : vector<8x128xf32>
    %cst_162 = arith.constant 1.000000e+00 : f32
    %379 = vector.broadcast %cst_162 : f32 to vector<8x128xf32>
    %380 = arith.subf %379, %378 : vector<8x128xf32>
    %cst_163 = arith.constant 0.000000e+00 : f32
    %381 = vector.broadcast %cst_163 : f32 to vector<8x128xf32>
    %382 = arith.maximumf %380, %381 : vector<8x128xf32>
    %cst_164 = arith.constant 6.000000e+00 : f32
    %383 = vector.broadcast %cst_164 : f32 to vector<8x128xf32>
    %384 = arith.subf %347, %383 : vector<8x128xf32>
    %385 = math.absf %384 : vector<8x128xf32>
    %cst_165 = arith.constant 1.000000e+00 : f32
    %386 = vector.broadcast %cst_165 : f32 to vector<8x128xf32>
    %387 = arith.subf %386, %385 : vector<8x128xf32>
    %cst_166 = arith.constant 0.000000e+00 : f32
    %388 = vector.broadcast %cst_166 : f32 to vector<8x128xf32>
    %389 = arith.maximumf %387, %388 : vector<8x128xf32>
    %cst_167 = arith.constant 7.000000e+00 : f32
    %390 = vector.broadcast %cst_167 : f32 to vector<8x128xf32>
    %391 = arith.subf %347, %390 : vector<8x128xf32>
    %392 = math.absf %391 : vector<8x128xf32>
    %cst_168 = arith.constant 1.000000e+00 : f32
    %393 = vector.broadcast %cst_168 : f32 to vector<8x128xf32>
    %394 = arith.subf %393, %392 : vector<8x128xf32>
    %cst_169 = arith.constant 0.000000e+00 : f32
    %395 = vector.broadcast %cst_169 : f32 to vector<8x128xf32>
    %396 = arith.maximumf %394, %395 : vector<8x128xf32>
    %cst_170 = arith.constant 8.000000e+00 : f32
    %397 = vector.broadcast %cst_170 : f32 to vector<8x128xf32>
    %398 = arith.subf %347, %397 : vector<8x128xf32>
    %399 = math.absf %398 : vector<8x128xf32>
    %cst_171 = arith.constant 1.000000e+00 : f32
    %400 = vector.broadcast %cst_171 : f32 to vector<8x128xf32>
    %401 = arith.subf %400, %399 : vector<8x128xf32>
    %cst_172 = arith.constant 0.000000e+00 : f32
    %402 = vector.broadcast %cst_172 : f32 to vector<8x128xf32>
    %403 = arith.maximumf %401, %402 : vector<8x128xf32>
    %cst_173 = arith.constant 9.000000e+00 : f32
    %404 = vector.broadcast %cst_173 : f32 to vector<8x128xf32>
    %405 = arith.subf %347, %404 : vector<8x128xf32>
    %406 = math.absf %405 : vector<8x128xf32>
    %cst_174 = arith.constant 1.000000e+00 : f32
    %407 = vector.broadcast %cst_174 : f32 to vector<8x128xf32>
    %408 = arith.subf %407, %406 : vector<8x128xf32>
    %cst_175 = arith.constant 0.000000e+00 : f32
    %409 = vector.broadcast %cst_175 : f32 to vector<8x128xf32>
    %410 = arith.maximumf %408, %409 : vector<8x128xf32>
    %cst_176 = arith.constant 1.000000e+01 : f32
    %411 = vector.broadcast %cst_176 : f32 to vector<8x128xf32>
    %412 = arith.subf %347, %411 : vector<8x128xf32>
    %413 = math.absf %412 : vector<8x128xf32>
    %cst_177 = arith.constant 1.000000e+00 : f32
    %414 = vector.broadcast %cst_177 : f32 to vector<8x128xf32>
    %415 = arith.subf %414, %413 : vector<8x128xf32>
    %cst_178 = arith.constant 0.000000e+00 : f32
    %416 = vector.broadcast %cst_178 : f32 to vector<8x128xf32>
    %417 = arith.maximumf %415, %416 : vector<8x128xf32>
    %cst_179 = arith.constant 1.100000e+01 : f32
    %418 = vector.broadcast %cst_179 : f32 to vector<8x128xf32>
    %419 = arith.subf %347, %418 : vector<8x128xf32>
    %420 = math.absf %419 : vector<8x128xf32>
    %cst_180 = arith.constant 1.000000e+00 : f32
    %421 = vector.broadcast %cst_180 : f32 to vector<8x128xf32>
    %422 = arith.subf %421, %420 : vector<8x128xf32>
    %cst_181 = arith.constant 0.000000e+00 : f32
    %423 = vector.broadcast %cst_181 : f32 to vector<8x128xf32>
    %424 = arith.maximumf %422, %423 : vector<8x128xf32>
    %cst_182 = arith.constant 1.200000e+01 : f32
    %425 = vector.broadcast %cst_182 : f32 to vector<8x128xf32>
    %426 = arith.subf %347, %425 : vector<8x128xf32>
    %427 = math.absf %426 : vector<8x128xf32>
    %cst_183 = arith.constant 1.000000e+00 : f32
    %428 = vector.broadcast %cst_183 : f32 to vector<8x128xf32>
    %429 = arith.subf %428, %427 : vector<8x128xf32>
    %cst_184 = arith.constant 0.000000e+00 : f32
    %430 = vector.broadcast %cst_184 : f32 to vector<8x128xf32>
    %431 = arith.maximumf %429, %430 : vector<8x128xf32>
    %cst_185 = arith.constant 1.300000e+01 : f32
    %432 = vector.broadcast %cst_185 : f32 to vector<8x128xf32>
    %433 = arith.subf %347, %432 : vector<8x128xf32>
    %434 = math.absf %433 : vector<8x128xf32>
    %cst_186 = arith.constant 1.000000e+00 : f32
    %435 = vector.broadcast %cst_186 : f32 to vector<8x128xf32>
    %436 = arith.subf %435, %434 : vector<8x128xf32>
    %cst_187 = arith.constant 0.000000e+00 : f32
    %437 = vector.broadcast %cst_187 : f32 to vector<8x128xf32>
    %438 = arith.maximumf %436, %437 : vector<8x128xf32>
    %cst_188 = arith.constant 1.400000e+01 : f32
    %439 = vector.broadcast %cst_188 : f32 to vector<8x128xf32>
    %440 = arith.subf %347, %439 : vector<8x128xf32>
    %441 = math.absf %440 : vector<8x128xf32>
    %cst_189 = arith.constant 1.000000e+00 : f32
    %442 = vector.broadcast %cst_189 : f32 to vector<8x128xf32>
    %443 = arith.subf %442, %441 : vector<8x128xf32>
    %cst_190 = arith.constant 0.000000e+00 : f32
    %444 = vector.broadcast %cst_190 : f32 to vector<8x128xf32>
    %445 = arith.maximumf %443, %444 : vector<8x128xf32>
    %cst_191 = arith.constant 1.500000e+01 : f32
    %446 = vector.broadcast %cst_191 : f32 to vector<8x128xf32>
    %447 = arith.subf %347, %446 : vector<8x128xf32>
    %448 = math.absf %447 : vector<8x128xf32>
    %cst_192 = arith.constant 1.000000e+00 : f32
    %449 = vector.broadcast %cst_192 : f32 to vector<8x128xf32>
    %450 = arith.subf %449, %448 : vector<8x128xf32>
    %cst_193 = arith.constant 0.000000e+00 : f32
    %451 = vector.broadcast %cst_193 : f32 to vector<8x128xf32>
    %452 = arith.maximumf %450, %451 : vector<8x128xf32>
    %cst_194 = arith.constant 5.000000e-01 : f32
    %453 = vector.broadcast %cst_194 : f32 to vector<8x128xf32>
    %454 = arith.mulf %347, %453 : vector<8x128xf32>
    %cst_195 = arith.constant 0.000000e+00 : f32
    %455 = vector.broadcast %cst_195 : f32 to vector<8x128xf32>
    %456 = arith.subf %454, %455 : vector<8x128xf32>
    %457 = arith.mulf %456, %354 : vector<8x128xf32>
    %cst_196 = arith.constant 1.500000e+00 : f32
    %458 = vector.broadcast %cst_196 : f32 to vector<8x128xf32>
    %459 = arith.subf %454, %458 : vector<8x128xf32>
    %460 = arith.mulf %459, %361 : vector<8x128xf32>
    %461 = arith.subf %457, %460 : vector<8x128xf32>
    %cst_197 = arith.constant 5.000000e-01 : f32
    %462 = vector.broadcast %cst_197 : f32 to vector<8x128xf32>
    %463 = arith.subf %454, %462 : vector<8x128xf32>
    %464 = arith.mulf %463, %361 : vector<8x128xf32>
    %cst_198 = arith.constant 2.000000e+00 : f32
    %465 = vector.broadcast %cst_198 : f32 to vector<8x128xf32>
    %466 = arith.subf %454, %465 : vector<8x128xf32>
    %467 = arith.mulf %466, %368 : vector<8x128xf32>
    %468 = arith.subf %464, %467 : vector<8x128xf32>
    %cst_199 = arith.constant 1.000000e+00 : f32
    %469 = vector.broadcast %cst_199 : f32 to vector<8x128xf32>
    %470 = arith.subf %454, %469 : vector<8x128xf32>
    %471 = arith.mulf %470, %368 : vector<8x128xf32>
    %cst_200 = arith.constant 2.500000e+00 : f32
    %472 = vector.broadcast %cst_200 : f32 to vector<8x128xf32>
    %473 = arith.subf %454, %472 : vector<8x128xf32>
    %474 = arith.mulf %473, %375 : vector<8x128xf32>
    %475 = arith.subf %471, %474 : vector<8x128xf32>
    %cst_201 = arith.constant 1.500000e+00 : f32
    %476 = vector.broadcast %cst_201 : f32 to vector<8x128xf32>
    %477 = arith.subf %454, %476 : vector<8x128xf32>
    %478 = arith.mulf %477, %375 : vector<8x128xf32>
    %cst_202 = arith.constant 3.000000e+00 : f32
    %479 = vector.broadcast %cst_202 : f32 to vector<8x128xf32>
    %480 = arith.subf %454, %479 : vector<8x128xf32>
    %481 = arith.mulf %480, %382 : vector<8x128xf32>
    %482 = arith.subf %478, %481 : vector<8x128xf32>
    %cst_203 = arith.constant 2.000000e+00 : f32
    %483 = vector.broadcast %cst_203 : f32 to vector<8x128xf32>
    %484 = arith.subf %454, %483 : vector<8x128xf32>
    %485 = arith.mulf %484, %382 : vector<8x128xf32>
    %cst_204 = arith.constant 3.500000e+00 : f32
    %486 = vector.broadcast %cst_204 : f32 to vector<8x128xf32>
    %487 = arith.subf %454, %486 : vector<8x128xf32>
    %488 = arith.mulf %487, %389 : vector<8x128xf32>
    %489 = arith.subf %485, %488 : vector<8x128xf32>
    %cst_205 = arith.constant 2.500000e+00 : f32
    %490 = vector.broadcast %cst_205 : f32 to vector<8x128xf32>
    %491 = arith.subf %454, %490 : vector<8x128xf32>
    %492 = arith.mulf %491, %389 : vector<8x128xf32>
    %cst_206 = arith.constant 4.000000e+00 : f32
    %493 = vector.broadcast %cst_206 : f32 to vector<8x128xf32>
    %494 = arith.subf %454, %493 : vector<8x128xf32>
    %495 = arith.mulf %494, %396 : vector<8x128xf32>
    %496 = arith.subf %492, %495 : vector<8x128xf32>
    %cst_207 = arith.constant 3.000000e+00 : f32
    %497 = vector.broadcast %cst_207 : f32 to vector<8x128xf32>
    %498 = arith.subf %454, %497 : vector<8x128xf32>
    %499 = arith.mulf %498, %396 : vector<8x128xf32>
    %cst_208 = arith.constant 4.500000e+00 : f32
    %500 = vector.broadcast %cst_208 : f32 to vector<8x128xf32>
    %501 = arith.subf %454, %500 : vector<8x128xf32>
    %502 = arith.mulf %501, %403 : vector<8x128xf32>
    %503 = arith.subf %499, %502 : vector<8x128xf32>
    %cst_209 = arith.constant 3.500000e+00 : f32
    %504 = vector.broadcast %cst_209 : f32 to vector<8x128xf32>
    %505 = arith.subf %454, %504 : vector<8x128xf32>
    %506 = arith.mulf %505, %403 : vector<8x128xf32>
    %cst_210 = arith.constant 5.000000e+00 : f32
    %507 = vector.broadcast %cst_210 : f32 to vector<8x128xf32>
    %508 = arith.subf %454, %507 : vector<8x128xf32>
    %509 = arith.mulf %508, %410 : vector<8x128xf32>
    %510 = arith.subf %506, %509 : vector<8x128xf32>
    %cst_211 = arith.constant 4.000000e+00 : f32
    %511 = vector.broadcast %cst_211 : f32 to vector<8x128xf32>
    %512 = arith.subf %454, %511 : vector<8x128xf32>
    %513 = arith.mulf %512, %410 : vector<8x128xf32>
    %cst_212 = arith.constant 5.500000e+00 : f32
    %514 = vector.broadcast %cst_212 : f32 to vector<8x128xf32>
    %515 = arith.subf %454, %514 : vector<8x128xf32>
    %516 = arith.mulf %515, %417 : vector<8x128xf32>
    %517 = arith.subf %513, %516 : vector<8x128xf32>
    %cst_213 = arith.constant 4.500000e+00 : f32
    %518 = vector.broadcast %cst_213 : f32 to vector<8x128xf32>
    %519 = arith.subf %454, %518 : vector<8x128xf32>
    %520 = arith.mulf %519, %417 : vector<8x128xf32>
    %cst_214 = arith.constant 6.000000e+00 : f32
    %521 = vector.broadcast %cst_214 : f32 to vector<8x128xf32>
    %522 = arith.subf %454, %521 : vector<8x128xf32>
    %523 = arith.mulf %522, %424 : vector<8x128xf32>
    %524 = arith.subf %520, %523 : vector<8x128xf32>
    %cst_215 = arith.constant 5.000000e+00 : f32
    %525 = vector.broadcast %cst_215 : f32 to vector<8x128xf32>
    %526 = arith.subf %454, %525 : vector<8x128xf32>
    %527 = arith.mulf %526, %424 : vector<8x128xf32>
    %cst_216 = arith.constant 6.500000e+00 : f32
    %528 = vector.broadcast %cst_216 : f32 to vector<8x128xf32>
    %529 = arith.subf %454, %528 : vector<8x128xf32>
    %530 = arith.mulf %529, %431 : vector<8x128xf32>
    %531 = arith.subf %527, %530 : vector<8x128xf32>
    %cst_217 = arith.constant 5.500000e+00 : f32
    %532 = vector.broadcast %cst_217 : f32 to vector<8x128xf32>
    %533 = arith.subf %454, %532 : vector<8x128xf32>
    %534 = arith.mulf %533, %431 : vector<8x128xf32>
    %cst_218 = arith.constant 7.000000e+00 : f32
    %535 = vector.broadcast %cst_218 : f32 to vector<8x128xf32>
    %536 = arith.subf %454, %535 : vector<8x128xf32>
    %537 = arith.mulf %536, %438 : vector<8x128xf32>
    %538 = arith.subf %534, %537 : vector<8x128xf32>
    %cst_219 = arith.constant 6.000000e+00 : f32
    %539 = vector.broadcast %cst_219 : f32 to vector<8x128xf32>
    %540 = arith.subf %454, %539 : vector<8x128xf32>
    %541 = arith.mulf %540, %438 : vector<8x128xf32>
    %cst_220 = arith.constant 7.500000e+00 : f32
    %542 = vector.broadcast %cst_220 : f32 to vector<8x128xf32>
    %543 = arith.subf %454, %542 : vector<8x128xf32>
    %544 = arith.mulf %543, %445 : vector<8x128xf32>
    %545 = arith.subf %541, %544 : vector<8x128xf32>
    %cst_221 = arith.constant 6.500000e+00 : f32
    %546 = vector.broadcast %cst_221 : f32 to vector<8x128xf32>
    %547 = arith.subf %454, %546 : vector<8x128xf32>
    %548 = arith.mulf %547, %445 : vector<8x128xf32>
    %cst_222 = arith.constant 8.000000e+00 : f32
    %549 = vector.broadcast %cst_222 : f32 to vector<8x128xf32>
    %550 = arith.subf %454, %549 : vector<8x128xf32>
    %551 = arith.mulf %550, %452 : vector<8x128xf32>
    %552 = arith.subf %548, %551 : vector<8x128xf32>
    %cst_223 = arith.constant 0.333333343 : f32
    %553 = vector.broadcast %cst_223 : f32 to vector<8x128xf32>
    %554 = arith.mulf %347, %553 : vector<8x128xf32>
    %cst_224 = arith.constant 0.000000e+00 : f32
    %555 = vector.broadcast %cst_224 : f32 to vector<8x128xf32>
    %556 = arith.subf %554, %555 : vector<8x128xf32>
    %557 = arith.mulf %556, %461 : vector<8x128xf32>
    %cst_225 = arith.constant 1.33333337 : f32
    %558 = vector.broadcast %cst_225 : f32 to vector<8x128xf32>
    %559 = arith.subf %554, %558 : vector<8x128xf32>
    %560 = arith.mulf %559, %468 : vector<8x128xf32>
    %561 = arith.subf %557, %560 : vector<8x128xf32>
    %cst_226 = arith.constant 0.333333343 : f32
    %562 = vector.broadcast %cst_226 : f32 to vector<8x128xf32>
    %563 = arith.subf %554, %562 : vector<8x128xf32>
    %564 = arith.mulf %563, %468 : vector<8x128xf32>
    %cst_227 = arith.constant 1.66666663 : f32
    %565 = vector.broadcast %cst_227 : f32 to vector<8x128xf32>
    %566 = arith.subf %554, %565 : vector<8x128xf32>
    %567 = arith.mulf %566, %475 : vector<8x128xf32>
    %568 = arith.subf %564, %567 : vector<8x128xf32>
    %cst_228 = arith.constant 0.666666686 : f32
    %569 = vector.broadcast %cst_228 : f32 to vector<8x128xf32>
    %570 = arith.subf %554, %569 : vector<8x128xf32>
    %571 = arith.mulf %570, %475 : vector<8x128xf32>
    %cst_229 = arith.constant 2.000000e+00 : f32
    %572 = vector.broadcast %cst_229 : f32 to vector<8x128xf32>
    %573 = arith.subf %554, %572 : vector<8x128xf32>
    %574 = arith.mulf %573, %482 : vector<8x128xf32>
    %575 = arith.subf %571, %574 : vector<8x128xf32>
    %cst_230 = arith.constant 1.000000e+00 : f32
    %576 = vector.broadcast %cst_230 : f32 to vector<8x128xf32>
    %577 = arith.subf %554, %576 : vector<8x128xf32>
    %578 = arith.mulf %577, %482 : vector<8x128xf32>
    %cst_231 = arith.constant 2.33333325 : f32
    %579 = vector.broadcast %cst_231 : f32 to vector<8x128xf32>
    %580 = arith.subf %554, %579 : vector<8x128xf32>
    %581 = arith.mulf %580, %489 : vector<8x128xf32>
    %582 = arith.subf %578, %581 : vector<8x128xf32>
    %cst_232 = arith.constant 1.33333337 : f32
    %583 = vector.broadcast %cst_232 : f32 to vector<8x128xf32>
    %584 = arith.subf %554, %583 : vector<8x128xf32>
    %585 = arith.mulf %584, %489 : vector<8x128xf32>
    %cst_233 = arith.constant 2.66666675 : f32
    %586 = vector.broadcast %cst_233 : f32 to vector<8x128xf32>
    %587 = arith.subf %554, %586 : vector<8x128xf32>
    %588 = arith.mulf %587, %496 : vector<8x128xf32>
    %589 = arith.subf %585, %588 : vector<8x128xf32>
    %cst_234 = arith.constant 1.66666663 : f32
    %590 = vector.broadcast %cst_234 : f32 to vector<8x128xf32>
    %591 = arith.subf %554, %590 : vector<8x128xf32>
    %592 = arith.mulf %591, %496 : vector<8x128xf32>
    %cst_235 = arith.constant 3.000000e+00 : f32
    %593 = vector.broadcast %cst_235 : f32 to vector<8x128xf32>
    %594 = arith.subf %554, %593 : vector<8x128xf32>
    %595 = arith.mulf %594, %503 : vector<8x128xf32>
    %596 = arith.subf %592, %595 : vector<8x128xf32>
    %cst_236 = arith.constant 2.000000e+00 : f32
    %597 = vector.broadcast %cst_236 : f32 to vector<8x128xf32>
    %598 = arith.subf %554, %597 : vector<8x128xf32>
    %599 = arith.mulf %598, %503 : vector<8x128xf32>
    %cst_237 = arith.constant 3.33333325 : f32
    %600 = vector.broadcast %cst_237 : f32 to vector<8x128xf32>
    %601 = arith.subf %554, %600 : vector<8x128xf32>
    %602 = arith.mulf %601, %510 : vector<8x128xf32>
    %603 = arith.subf %599, %602 : vector<8x128xf32>
    %cst_238 = arith.constant 2.33333325 : f32
    %604 = vector.broadcast %cst_238 : f32 to vector<8x128xf32>
    %605 = arith.subf %554, %604 : vector<8x128xf32>
    %606 = arith.mulf %605, %510 : vector<8x128xf32>
    %cst_239 = arith.constant 3.66666675 : f32
    %607 = vector.broadcast %cst_239 : f32 to vector<8x128xf32>
    %608 = arith.subf %554, %607 : vector<8x128xf32>
    %609 = arith.mulf %608, %517 : vector<8x128xf32>
    %610 = arith.subf %606, %609 : vector<8x128xf32>
    %cst_240 = arith.constant 2.66666675 : f32
    %611 = vector.broadcast %cst_240 : f32 to vector<8x128xf32>
    %612 = arith.subf %554, %611 : vector<8x128xf32>
    %613 = arith.mulf %612, %517 : vector<8x128xf32>
    %cst_241 = arith.constant 4.000000e+00 : f32
    %614 = vector.broadcast %cst_241 : f32 to vector<8x128xf32>
    %615 = arith.subf %554, %614 : vector<8x128xf32>
    %616 = arith.mulf %615, %524 : vector<8x128xf32>
    %617 = arith.subf %613, %616 : vector<8x128xf32>
    %cst_242 = arith.constant 3.000000e+00 : f32
    %618 = vector.broadcast %cst_242 : f32 to vector<8x128xf32>
    %619 = arith.subf %554, %618 : vector<8x128xf32>
    %620 = arith.mulf %619, %524 : vector<8x128xf32>
    %cst_243 = arith.constant 4.33333349 : f32
    %621 = vector.broadcast %cst_243 : f32 to vector<8x128xf32>
    %622 = arith.subf %554, %621 : vector<8x128xf32>
    %623 = arith.mulf %622, %531 : vector<8x128xf32>
    %624 = arith.subf %620, %623 : vector<8x128xf32>
    %cst_244 = arith.constant 3.33333325 : f32
    %625 = vector.broadcast %cst_244 : f32 to vector<8x128xf32>
    %626 = arith.subf %554, %625 : vector<8x128xf32>
    %627 = arith.mulf %626, %531 : vector<8x128xf32>
    %cst_245 = arith.constant 4.66666651 : f32
    %628 = vector.broadcast %cst_245 : f32 to vector<8x128xf32>
    %629 = arith.subf %554, %628 : vector<8x128xf32>
    %630 = arith.mulf %629, %538 : vector<8x128xf32>
    %631 = arith.subf %627, %630 : vector<8x128xf32>
    %cst_246 = arith.constant 3.66666675 : f32
    %632 = vector.broadcast %cst_246 : f32 to vector<8x128xf32>
    %633 = arith.subf %554, %632 : vector<8x128xf32>
    %634 = arith.mulf %633, %538 : vector<8x128xf32>
    %cst_247 = arith.constant 5.000000e+00 : f32
    %635 = vector.broadcast %cst_247 : f32 to vector<8x128xf32>
    %636 = arith.subf %554, %635 : vector<8x128xf32>
    %637 = arith.mulf %636, %545 : vector<8x128xf32>
    %638 = arith.subf %634, %637 : vector<8x128xf32>
    %cst_248 = arith.constant 4.000000e+00 : f32
    %639 = vector.broadcast %cst_248 : f32 to vector<8x128xf32>
    %640 = arith.subf %554, %639 : vector<8x128xf32>
    %641 = arith.mulf %640, %545 : vector<8x128xf32>
    %cst_249 = arith.constant 5.33333349 : f32
    %642 = vector.broadcast %cst_249 : f32 to vector<8x128xf32>
    %643 = arith.subf %554, %642 : vector<8x128xf32>
    %644 = arith.mulf %643, %552 : vector<8x128xf32>
    %645 = arith.subf %641, %644 : vector<8x128xf32>
    %c8_250 = arith.constant 8 : index
    %c0_251 = arith.constant 0 : index
    %646 = vector.load %arg7[%c8_250, %c0_251] : memref<32x1664xf32, #tpu.memory_space<vmem>>, vector<8x128xf32>
    tpu.vector_store %arg7[%c8_250, %c0_251], %561 {strides = array<i32>} : memref<32x1664xf32, #tpu.memory_space<vmem>>, vector<8x128xf32>,
    %c8_252 = arith.constant 8 : index
    %c128_253 = arith.constant 128 : index
    %647 = vector.load %arg7[%c8_252, %c128_253] : memref<32x1664xf32, #tpu.memory_space<vmem>>, vector<8x128xf32>
    tpu.vector_store %arg7[%c8_252, %c128_253], %568 {strides = array<i32>} : memref<32x1664xf32, #tpu.memory_space<vmem>>, vector<8x128xf32>,
    %c8_254 = arith.constant 8 : index
    %c256_255 = arith.constant 256 : index
    %648 = vector.load %arg7[%c8_254, %c256_255] : memref<32x1664xf32, #tpu.memory_space<vmem>>, vector<8x128xf32>
    tpu.vector_store %arg7[%c8_254, %c256_255], %575 {strides = array<i32>} : memref<32x1664xf32, #tpu.memory_space<vmem>>, vector<8x128xf32>,
    %c8_256 = arith.constant 8 : index
    %c384_257 = arith.constant 384 : index
    %649 = vector.load %arg7[%c8_256, %c384_257] : memref<32x1664xf32, #tpu.memory_space<vmem>>, vector<8x128xf32>
    tpu.vector_store %arg7[%c8_256, %c384_257], %582 {strides = array<i32>} : memref<32x1664xf32, #tpu.memory_space<vmem>>, vector<8x128xf32>,
    %c8_258 = arith.constant 8 : index
    %c512_259 = arith.constant 512 : index
    %650 = vector.load %arg7[%c8_258, %c512_259] : memref<32x1664xf32, #tpu.memory_space<vmem>>, vector<8x128xf32>
    tpu.vector_store %arg7[%c8_258, %c512_259], %589 {strides = array<i32>} : memref<32x1664xf32, #tpu.memory_space<vmem>>, vector<8x128xf32>,
    %c8_260 = arith.constant 8 : index
    %c640_261 = arith.constant 640 : index
    %651 = vector.load %arg7[%c8_260, %c640_261] : memref<32x1664xf32, #tpu.memory_space<vmem>>, vector<8x128xf32>
    tpu.vector_store %arg7[%c8_260, %c640_261], %596 {strides = array<i32>} : memref<32x1664xf32, #tpu.memory_space<vmem>>, vector<8x128xf32>,
    %c8_262 = arith.constant 8 : index
    %c768_263 = arith.constant 768 : index
    %652 = vector.load %arg7[%c8_262, %c768_263] : memref<32x1664xf32, #tpu.memory_space<vmem>>, vector<8x128xf32>
    tpu.vector_store %arg7[%c8_262, %c768_263], %603 {strides = array<i32>} : memref<32x1664xf32, #tpu.memory_space<vmem>>, vector<8x128xf32>,
    %c8_264 = arith.constant 8 : index
    %c896_265 = arith.constant 896 : index
    %653 = vector.load %arg7[%c8_264, %c896_265] : memref<32x1664xf32, #tpu.memory_space<vmem>>, vector<8x128xf32>
    tpu.vector_store %arg7[%c8_264, %c896_265], %610 {strides = array<i32>} : memref<32x1664xf32, #tpu.memory_space<vmem>>, vector<8x128xf32>,
    %c8_266 = arith.constant 8 : index
    %c1024_267 = arith.constant 1024 : index
    %654 = vector.load %arg7[%c8_266, %c1024_267] : memref<32x1664xf32, #tpu.memory_space<vmem>>, vector<8x128xf32>
    tpu.vector_store %arg7[%c8_266, %c1024_267], %617 {strides = array<i32>} : memref<32x1664xf32, #tpu.memory_space<vmem>>, vector<8x128xf32>,
    %c8_268 = arith.constant 8 : index
    %c1152_269 = arith.constant 1152 : index
    %655 = vector.load %arg7[%c8_268, %c1152_269] : memref<32x1664xf32, #tpu.memory_space<vmem>>, vector<8x128xf32>
    tpu.vector_store %arg7[%c8_268, %c1152_269], %624 {strides = array<i32>} : memref<32x1664xf32, #tpu.memory_space<vmem>>, vector<8x128xf32>,
    %c8_270 = arith.constant 8 : index
    %c1280_271 = arith.constant 1280 : index
    %656 = vector.load %arg7[%c8_270, %c1280_271] : memref<32x1664xf32, #tpu.memory_space<vmem>>, vector<8x128xf32>
    tpu.vector_store %arg7[%c8_270, %c1280_271], %631 {strides = array<i32>} : memref<32x1664xf32, #tpu.memory_space<vmem>>, vector<8x128xf32>,
    %c8_272 = arith.constant 8 : index
    %c1408_273 = arith.constant 1408 : index
    %657 = vector.load %arg7[%c8_272, %c1408_273] : memref<32x1664xf32, #tpu.memory_space<vmem>>, vector<8x128xf32>
    tpu.vector_store %arg7[%c8_272, %c1408_273], %638 {strides = array<i32>} : memref<32x1664xf32, #tpu.memory_space<vmem>>, vector<8x128xf32>,
    %c8_274 = arith.constant 8 : index
    %c1536_275 = arith.constant 1536 : index
    %658 = vector.load %arg7[%c8_274, %c1536_275] : memref<32x1664xf32, #tpu.memory_space<vmem>>, vector<8x128xf32>
    tpu.vector_store %arg7[%c8_274, %c1536_275], %645 {strides = array<i32>} : memref<32x1664xf32, #tpu.memory_space<vmem>>, vector<8x128xf32>,
    %c16 = arith.constant 16 : index
    %c0_276 = arith.constant 0 : index
    %659 = vector.load %arg6[%c16, %c0_276] : memref<32x128xf32, #tpu.memory_space<vmem>>, vector<8x128xf32>
    %cst_277 = arith.constant -1.600000e+00 : f32
    %660 = vector.broadcast %cst_277 : f32 to vector<8x128xf32>
    %661 = arith.subf %659, %660 : vector<8x128xf32>
    %cst_278 = arith.constant 5.000000e+00 : f32
    %662 = vector.broadcast %cst_278 : f32 to vector<8x128xf32>
    %663 = arith.mulf %661, %662 : vector<8x128xf32>
    %cst_279 = arith.constant 1.000000e+00 : f32
    %664 = vector.broadcast %cst_279 : f32 to vector<8x128xf32>
    %665 = arith.subf %663, %664 : vector<8x128xf32>
    %666 = math.absf %665 : vector<8x128xf32>
    %cst_280 = arith.constant 1.000000e+00 : f32
    %667 = vector.broadcast %cst_280 : f32 to vector<8x128xf32>
    %668 = arith.subf %667, %666 : vector<8x128xf32>
    %cst_281 = arith.constant 0.000000e+00 : f32
    %669 = vector.broadcast %cst_281 : f32 to vector<8x128xf32>
    %670 = arith.maximumf %668, %669 : vector<8x128xf32>
    %cst_282 = arith.constant 2.000000e+00 : f32
    %671 = vector.broadcast %cst_282 : f32 to vector<8x128xf32>
    %672 = arith.subf %663, %671 : vector<8x128xf32>
    %673 = math.absf %672 : vector<8x128xf32>
    %cst_283 = arith.constant 1.000000e+00 : f32
    %674 = vector.broadcast %cst_283 : f32 to vector<8x128xf32>
    %675 = arith.subf %674, %673 : vector<8x128xf32>
    %cst_284 = arith.constant 0.000000e+00 : f32
    %676 = vector.broadcast %cst_284 : f32 to vector<8x128xf32>
    %677 = arith.maximumf %675, %676 : vector<8x128xf32>
    %cst_285 = arith.constant 3.000000e+00 : f32
    %678 = vector.broadcast %cst_285 : f32 to vector<8x128xf32>
    %679 = arith.subf %663, %678 : vector<8x128xf32>
    %680 = math.absf %679 : vector<8x128xf32>
    %cst_286 = arith.constant 1.000000e+00 : f32
    %681 = vector.broadcast %cst_286 : f32 to vector<8x128xf32>
    %682 = arith.subf %681, %680 : vector<8x128xf32>
    %cst_287 = arith.constant 0.000000e+00 : f32
    %683 = vector.broadcast %cst_287 : f32 to vector<8x128xf32>
    %684 = arith.maximumf %682, %683 : vector<8x128xf32>
    %cst_288 = arith.constant 4.000000e+00 : f32
    %685 = vector.broadcast %cst_288 : f32 to vector<8x128xf32>
    %686 = arith.subf %663, %685 : vector<8x128xf32>
    %687 = math.absf %686 : vector<8x128xf32>
    %cst_289 = arith.constant 1.000000e+00 : f32
    %688 = vector.broadcast %cst_289 : f32 to vector<8x128xf32>
    %689 = arith.subf %688, %687 : vector<8x128xf32>
    %cst_290 = arith.constant 0.000000e+00 : f32
    %690 = vector.broadcast %cst_290 : f32 to vector<8x128xf32>
    %691 = arith.maximumf %689, %690 : vector<8x128xf32>
    %cst_291 = arith.constant 5.000000e+00 : f32
    %692 = vector.broadcast %cst_291 : f32 to vector<8x128xf32>
    %693 = arith.subf %663, %692 : vector<8x128xf32>
    %694 = math.absf %693 : vector<8x128xf32>
    %cst_292 = arith.constant 1.000000e+00 : f32
    %695 = vector.broadcast %cst_292 : f32 to vector<8x128xf32>
    %696 = arith.subf %695, %694 : vector<8x128xf32>
    %cst_293 = arith.constant 0.000000e+00 : f32
    %697 = vector.broadcast %cst_293 : f32 to vector<8x128xf32>
    %698 = arith.maximumf %696, %697 : vector<8x128xf32>
    %cst_294 = arith.constant 6.000000e+00 : f32
    %699 = vector.broadcast %cst_294 : f32 to vector<8x128xf32>
    %700 = arith.subf %663, %699 : vector<8x128xf32>
    %701 = math.absf %700 : vector<8x128xf32>
    %cst_295 = arith.constant 1.000000e+00 : f32
    %702 = vector.broadcast %cst_295 : f32 to vector<8x128xf32>
    %703 = arith.subf %702, %701 : vector<8x128xf32>
    %cst_296 = arith.constant 0.000000e+00 : f32
    %704 = vector.broadcast %cst_296 : f32 to vector<8x128xf32>
    %705 = arith.maximumf %703, %704 : vector<8x128xf32>
    %cst_297 = arith.constant 7.000000e+00 : f32
    %706 = vector.broadcast %cst_297 : f32 to vector<8x128xf32>
    %707 = arith.subf %663, %706 : vector<8x128xf32>
    %708 = math.absf %707 : vector<8x128xf32>
    %cst_298 = arith.constant 1.000000e+00 : f32
    %709 = vector.broadcast %cst_298 : f32 to vector<8x128xf32>
    %710 = arith.subf %709, %708 : vector<8x128xf32>
    %cst_299 = arith.constant 0.000000e+00 : f32
    %711 = vector.broadcast %cst_299 : f32 to vector<8x128xf32>
    %712 = arith.maximumf %710, %711 : vector<8x128xf32>
    %cst_300 = arith.constant 8.000000e+00 : f32
    %713 = vector.broadcast %cst_300 : f32 to vector<8x128xf32>
    %714 = arith.subf %663, %713 : vector<8x128xf32>
    %715 = math.absf %714 : vector<8x128xf32>
    %cst_301 = arith.constant 1.000000e+00 : f32
    %716 = vector.broadcast %cst_301 : f32 to vector<8x128xf32>
    %717 = arith.subf %716, %715 : vector<8x128xf32>
    %cst_302 = arith.constant 0.000000e+00 : f32
    %718 = vector.broadcast %cst_302 : f32 to vector<8x128xf32>
    %719 = arith.maximumf %717, %718 : vector<8x128xf32>
    %cst_303 = arith.constant 9.000000e+00 : f32
    %720 = vector.broadcast %cst_303 : f32 to vector<8x128xf32>
    %721 = arith.subf %663, %720 : vector<8x128xf32>
    %722 = math.absf %721 : vector<8x128xf32>
    %cst_304 = arith.constant 1.000000e+00 : f32
    %723 = vector.broadcast %cst_304 : f32 to vector<8x128xf32>
    %724 = arith.subf %723, %722 : vector<8x128xf32>
    %cst_305 = arith.constant 0.000000e+00 : f32
    %725 = vector.broadcast %cst_305 : f32 to vector<8x128xf32>
    %726 = arith.maximumf %724, %725 : vector<8x128xf32>
    %cst_306 = arith.constant 1.000000e+01 : f32
    %727 = vector.broadcast %cst_306 : f32 to vector<8x128xf32>
    %728 = arith.subf %663, %727 : vector<8x128xf32>
    %729 = math.absf %728 : vector<8x128xf32>
    %cst_307 = arith.constant 1.000000e+00 : f32
    %730 = vector.broadcast %cst_307 : f32 to vector<8x128xf32>
    %731 = arith.subf %730, %729 : vector<8x128xf32>
    %cst_308 = arith.constant 0.000000e+00 : f32
    %732 = vector.broadcast %cst_308 : f32 to vector<8x128xf32>
    %733 = arith.maximumf %731, %732 : vector<8x128xf32>
    %cst_309 = arith.constant 1.100000e+01 : f32
    %734 = vector.broadcast %cst_309 : f32 to vector<8x128xf32>
    %735 = arith.subf %663, %734 : vector<8x128xf32>
    %736 = math.absf %735 : vector<8x128xf32>
    %cst_310 = arith.constant 1.000000e+00 : f32
    %737 = vector.broadcast %cst_310 : f32 to vector<8x128xf32>
    %738 = arith.subf %737, %736 : vector<8x128xf32>
    %cst_311 = arith.constant 0.000000e+00 : f32
    %739 = vector.broadcast %cst_311 : f32 to vector<8x128xf32>
    %740 = arith.maximumf %738, %739 : vector<8x128xf32>
    %cst_312 = arith.constant 1.200000e+01 : f32
    %741 = vector.broadcast %cst_312 : f32 to vector<8x128xf32>
    %742 = arith.subf %663, %741 : vector<8x128xf32>
    %743 = math.absf %742 : vector<8x128xf32>
    %cst_313 = arith.constant 1.000000e+00 : f32
    %744 = vector.broadcast %cst_313 : f32 to vector<8x128xf32>
    %745 = arith.subf %744, %743 : vector<8x128xf32>
    %cst_314 = arith.constant 0.000000e+00 : f32
    %746 = vector.broadcast %cst_314 : f32 to vector<8x128xf32>
    %747 = arith.maximumf %745, %746 : vector<8x128xf32>
    %cst_315 = arith.constant 1.300000e+01 : f32
    %748 = vector.broadcast %cst_315 : f32 to vector<8x128xf32>
    %749 = arith.subf %663, %748 : vector<8x128xf32>
    %750 = math.absf %749 : vector<8x128xf32>
    %cst_316 = arith.constant 1.000000e+00 : f32
    %751 = vector.broadcast %cst_316 : f32 to vector<8x128xf32>
    %752 = arith.subf %751, %750 : vector<8x128xf32>
    %cst_317 = arith.constant 0.000000e+00 : f32
    %753 = vector.broadcast %cst_317 : f32 to vector<8x128xf32>
    %754 = arith.maximumf %752, %753 : vector<8x128xf32>
    %cst_318 = arith.constant 1.400000e+01 : f32
    %755 = vector.broadcast %cst_318 : f32 to vector<8x128xf32>
    %756 = arith.subf %663, %755 : vector<8x128xf32>
    %757 = math.absf %756 : vector<8x128xf32>
    %cst_319 = arith.constant 1.000000e+00 : f32
    %758 = vector.broadcast %cst_319 : f32 to vector<8x128xf32>
    %759 = arith.subf %758, %757 : vector<8x128xf32>
    %cst_320 = arith.constant 0.000000e+00 : f32
    %760 = vector.broadcast %cst_320 : f32 to vector<8x128xf32>
    %761 = arith.maximumf %759, %760 : vector<8x128xf32>
    %cst_321 = arith.constant 1.500000e+01 : f32
    %762 = vector.broadcast %cst_321 : f32 to vector<8x128xf32>
    %763 = arith.subf %663, %762 : vector<8x128xf32>
    %764 = math.absf %763 : vector<8x128xf32>
    %cst_322 = arith.constant 1.000000e+00 : f32
    %765 = vector.broadcast %cst_322 : f32 to vector<8x128xf32>
    %766 = arith.subf %765, %764 : vector<8x128xf32>
    %cst_323 = arith.constant 0.000000e+00 : f32
    %767 = vector.broadcast %cst_323 : f32 to vector<8x128xf32>
    %768 = arith.maximumf %766, %767 : vector<8x128xf32>
    %cst_324 = arith.constant 5.000000e-01 : f32
    %769 = vector.broadcast %cst_324 : f32 to vector<8x128xf32>
    %770 = arith.mulf %663, %769 : vector<8x128xf32>
    %cst_325 = arith.constant 0.000000e+00 : f32
    %771 = vector.broadcast %cst_325 : f32 to vector<8x128xf32>
    %772 = arith.subf %770, %771 : vector<8x128xf32>
    %773 = arith.mulf %772, %670 : vector<8x128xf32>
    %cst_326 = arith.constant 1.500000e+00 : f32
    %774 = vector.broadcast %cst_326 : f32 to vector<8x128xf32>
    %775 = arith.subf %770, %774 : vector<8x128xf32>
    %776 = arith.mulf %775, %677 : vector<8x128xf32>
    %777 = arith.subf %773, %776 : vector<8x128xf32>
    %cst_327 = arith.constant 5.000000e-01 : f32
    %778 = vector.broadcast %cst_327 : f32 to vector<8x128xf32>
    %779 = arith.subf %770, %778 : vector<8x128xf32>
    %780 = arith.mulf %779, %677 : vector<8x128xf32>
    %cst_328 = arith.constant 2.000000e+00 : f32
    %781 = vector.broadcast %cst_328 : f32 to vector<8x128xf32>
    %782 = arith.subf %770, %781 : vector<8x128xf32>
    %783 = arith.mulf %782, %684 : vector<8x128xf32>
    %784 = arith.subf %780, %783 : vector<8x128xf32>
    %cst_329 = arith.constant 1.000000e+00 : f32
    %785 = vector.broadcast %cst_329 : f32 to vector<8x128xf32>
    %786 = arith.subf %770, %785 : vector<8x128xf32>
    %787 = arith.mulf %786, %684 : vector<8x128xf32>
    %cst_330 = arith.constant 2.500000e+00 : f32
    %788 = vector.broadcast %cst_330 : f32 to vector<8x128xf32>
    %789 = arith.subf %770, %788 : vector<8x128xf32>
    %790 = arith.mulf %789, %691 : vector<8x128xf32>
    %791 = arith.subf %787, %790 : vector<8x128xf32>
    %cst_331 = arith.constant 1.500000e+00 : f32
    %792 = vector.broadcast %cst_331 : f32 to vector<8x128xf32>
    %793 = arith.subf %770, %792 : vector<8x128xf32>
    %794 = arith.mulf %793, %691 : vector<8x128xf32>
    %cst_332 = arith.constant 3.000000e+00 : f32
    %795 = vector.broadcast %cst_332 : f32 to vector<8x128xf32>
    %796 = arith.subf %770, %795 : vector<8x128xf32>
    %797 = arith.mulf %796, %698 : vector<8x128xf32>
    %798 = arith.subf %794, %797 : vector<8x128xf32>
    %cst_333 = arith.constant 2.000000e+00 : f32
    %799 = vector.broadcast %cst_333 : f32 to vector<8x128xf32>
    %800 = arith.subf %770, %799 : vector<8x128xf32>
    %801 = arith.mulf %800, %698 : vector<8x128xf32>
    %cst_334 = arith.constant 3.500000e+00 : f32
    %802 = vector.broadcast %cst_334 : f32 to vector<8x128xf32>
    %803 = arith.subf %770, %802 : vector<8x128xf32>
    %804 = arith.mulf %803, %705 : vector<8x128xf32>
    %805 = arith.subf %801, %804 : vector<8x128xf32>
    %cst_335 = arith.constant 2.500000e+00 : f32
    %806 = vector.broadcast %cst_335 : f32 to vector<8x128xf32>
    %807 = arith.subf %770, %806 : vector<8x128xf32>
    %808 = arith.mulf %807, %705 : vector<8x128xf32>
    %cst_336 = arith.constant 4.000000e+00 : f32
    %809 = vector.broadcast %cst_336 : f32 to vector<8x128xf32>
    %810 = arith.subf %770, %809 : vector<8x128xf32>
    %811 = arith.mulf %810, %712 : vector<8x128xf32>
    %812 = arith.subf %808, %811 : vector<8x128xf32>
    %cst_337 = arith.constant 3.000000e+00 : f32
    %813 = vector.broadcast %cst_337 : f32 to vector<8x128xf32>
    %814 = arith.subf %770, %813 : vector<8x128xf32>
    %815 = arith.mulf %814, %712 : vector<8x128xf32>
    %cst_338 = arith.constant 4.500000e+00 : f32
    %816 = vector.broadcast %cst_338 : f32 to vector<8x128xf32>
    %817 = arith.subf %770, %816 : vector<8x128xf32>
    %818 = arith.mulf %817, %719 : vector<8x128xf32>
    %819 = arith.subf %815, %818 : vector<8x128xf32>
    %cst_339 = arith.constant 3.500000e+00 : f32
    %820 = vector.broadcast %cst_339 : f32 to vector<8x128xf32>
    %821 = arith.subf %770, %820 : vector<8x128xf32>
    %822 = arith.mulf %821, %719 : vector<8x128xf32>
    %cst_340 = arith.constant 5.000000e+00 : f32
    %823 = vector.broadcast %cst_340 : f32 to vector<8x128xf32>
    %824 = arith.subf %770, %823 : vector<8x128xf32>
    %825 = arith.mulf %824, %726 : vector<8x128xf32>
    %826 = arith.subf %822, %825 : vector<8x128xf32>
    %cst_341 = arith.constant 4.000000e+00 : f32
    %827 = vector.broadcast %cst_341 : f32 to vector<8x128xf32>
    %828 = arith.subf %770, %827 : vector<8x128xf32>
    %829 = arith.mulf %828, %726 : vector<8x128xf32>
    %cst_342 = arith.constant 5.500000e+00 : f32
    %830 = vector.broadcast %cst_342 : f32 to vector<8x128xf32>
    %831 = arith.subf %770, %830 : vector<8x128xf32>
    %832 = arith.mulf %831, %733 : vector<8x128xf32>
    %833 = arith.subf %829, %832 : vector<8x128xf32>
    %cst_343 = arith.constant 4.500000e+00 : f32
    %834 = vector.broadcast %cst_343 : f32 to vector<8x128xf32>
    %835 = arith.subf %770, %834 : vector<8x128xf32>
    %836 = arith.mulf %835, %733 : vector<8x128xf32>
    %cst_344 = arith.constant 6.000000e+00 : f32
    %837 = vector.broadcast %cst_344 : f32 to vector<8x128xf32>
    %838 = arith.subf %770, %837 : vector<8x128xf32>
    %839 = arith.mulf %838, %740 : vector<8x128xf32>
    %840 = arith.subf %836, %839 : vector<8x128xf32>
    %cst_345 = arith.constant 5.000000e+00 : f32
    %841 = vector.broadcast %cst_345 : f32 to vector<8x128xf32>
    %842 = arith.subf %770, %841 : vector<8x128xf32>
    %843 = arith.mulf %842, %740 : vector<8x128xf32>
    %cst_346 = arith.constant 6.500000e+00 : f32
    %844 = vector.broadcast %cst_346 : f32 to vector<8x128xf32>
    %845 = arith.subf %770, %844 : vector<8x128xf32>
    %846 = arith.mulf %845, %747 : vector<8x128xf32>
    %847 = arith.subf %843, %846 : vector<8x128xf32>
    %cst_347 = arith.constant 5.500000e+00 : f32
    %848 = vector.broadcast %cst_347 : f32 to vector<8x128xf32>
    %849 = arith.subf %770, %848 : vector<8x128xf32>
    %850 = arith.mulf %849, %747 : vector<8x128xf32>
    %cst_348 = arith.constant 7.000000e+00 : f32
    %851 = vector.broadcast %cst_348 : f32 to vector<8x128xf32>
    %852 = arith.subf %770, %851 : vector<8x128xf32>
    %853 = arith.mulf %852, %754 : vector<8x128xf32>
    %854 = arith.subf %850, %853 : vector<8x128xf32>
    %cst_349 = arith.constant 6.000000e+00 : f32
    %855 = vector.broadcast %cst_349 : f32 to vector<8x128xf32>
    %856 = arith.subf %770, %855 : vector<8x128xf32>
    %857 = arith.mulf %856, %754 : vector<8x128xf32>
    %cst_350 = arith.constant 7.500000e+00 : f32
    %858 = vector.broadcast %cst_350 : f32 to vector<8x128xf32>
    %859 = arith.subf %770, %858 : vector<8x128xf32>
    %860 = arith.mulf %859, %761 : vector<8x128xf32>
    %861 = arith.subf %857, %860 : vector<8x128xf32>
    %cst_351 = arith.constant 6.500000e+00 : f32
    %862 = vector.broadcast %cst_351 : f32 to vector<8x128xf32>
    %863 = arith.subf %770, %862 : vector<8x128xf32>
    %864 = arith.mulf %863, %761 : vector<8x128xf32>
    %cst_352 = arith.constant 8.000000e+00 : f32
    %865 = vector.broadcast %cst_352 : f32 to vector<8x128xf32>
    %866 = arith.subf %770, %865 : vector<8x128xf32>
    %867 = arith.mulf %866, %768 : vector<8x128xf32>
    %868 = arith.subf %864, %867 : vector<8x128xf32>
    %cst_353 = arith.constant 0.333333343 : f32
    %869 = vector.broadcast %cst_353 : f32 to vector<8x128xf32>
    %870 = arith.mulf %663, %869 : vector<8x128xf32>
    %cst_354 = arith.constant 0.000000e+00 : f32
    %871 = vector.broadcast %cst_354 : f32 to vector<8x128xf32>
    %872 = arith.subf %870, %871 : vector<8x128xf32>
    %873 = arith.mulf %872, %777 : vector<8x128xf32>
    %cst_355 = arith.constant 1.33333337 : f32
    %874 = vector.broadcast %cst_355 : f32 to vector<8x128xf32>
    %875 = arith.subf %870, %874 : vector<8x128xf32>
    %876 = arith.mulf %875, %784 : vector<8x128xf32>
    %877 = arith.subf %873, %876 : vector<8x128xf32>
    %cst_356 = arith.constant 0.333333343 : f32
    %878 = vector.broadcast %cst_356 : f32 to vector<8x128xf32>
    %879 = arith.subf %870, %878 : vector<8x128xf32>
    %880 = arith.mulf %879, %784 : vector<8x128xf32>
    %cst_357 = arith.constant 1.66666663 : f32
    %881 = vector.broadcast %cst_357 : f32 to vector<8x128xf32>
    %882 = arith.subf %870, %881 : vector<8x128xf32>
    %883 = arith.mulf %882, %791 : vector<8x128xf32>
    %884 = arith.subf %880, %883 : vector<8x128xf32>
    %cst_358 = arith.constant 0.666666686 : f32
    %885 = vector.broadcast %cst_358 : f32 to vector<8x128xf32>
    %886 = arith.subf %870, %885 : vector<8x128xf32>
    %887 = arith.mulf %886, %791 : vector<8x128xf32>
    %cst_359 = arith.constant 2.000000e+00 : f32
    %888 = vector.broadcast %cst_359 : f32 to vector<8x128xf32>
    %889 = arith.subf %870, %888 : vector<8x128xf32>
    %890 = arith.mulf %889, %798 : vector<8x128xf32>
    %891 = arith.subf %887, %890 : vector<8x128xf32>
    %cst_360 = arith.constant 1.000000e+00 : f32
    %892 = vector.broadcast %cst_360 : f32 to vector<8x128xf32>
    %893 = arith.subf %870, %892 : vector<8x128xf32>
    %894 = arith.mulf %893, %798 : vector<8x128xf32>
    %cst_361 = arith.constant 2.33333325 : f32
    %895 = vector.broadcast %cst_361 : f32 to vector<8x128xf32>
    %896 = arith.subf %870, %895 : vector<8x128xf32>
    %897 = arith.mulf %896, %805 : vector<8x128xf32>
    %898 = arith.subf %894, %897 : vector<8x128xf32>
    %cst_362 = arith.constant 1.33333337 : f32
    %899 = vector.broadcast %cst_362 : f32 to vector<8x128xf32>
    %900 = arith.subf %870, %899 : vector<8x128xf32>
    %901 = arith.mulf %900, %805 : vector<8x128xf32>
    %cst_363 = arith.constant 2.66666675 : f32
    %902 = vector.broadcast %cst_363 : f32 to vector<8x128xf32>
    %903 = arith.subf %870, %902 : vector<8x128xf32>
    %904 = arith.mulf %903, %812 : vector<8x128xf32>
    %905 = arith.subf %901, %904 : vector<8x128xf32>
    %cst_364 = arith.constant 1.66666663 : f32
    %906 = vector.broadcast %cst_364 : f32 to vector<8x128xf32>
    %907 = arith.subf %870, %906 : vector<8x128xf32>
    %908 = arith.mulf %907, %812 : vector<8x128xf32>
    %cst_365 = arith.constant 3.000000e+00 : f32
    %909 = vector.broadcast %cst_365 : f32 to vector<8x128xf32>
    %910 = arith.subf %870, %909 : vector<8x128xf32>
    %911 = arith.mulf %910, %819 : vector<8x128xf32>
    %912 = arith.subf %908, %911 : vector<8x128xf32>
    %cst_366 = arith.constant 2.000000e+00 : f32
    %913 = vector.broadcast %cst_366 : f32 to vector<8x128xf32>
    %914 = arith.subf %870, %913 : vector<8x128xf32>
    %915 = arith.mulf %914, %819 : vector<8x128xf32>
    %cst_367 = arith.constant 3.33333325 : f32
    %916 = vector.broadcast %cst_367 : f32 to vector<8x128xf32>
    %917 = arith.subf %870, %916 : vector<8x128xf32>
    %918 = arith.mulf %917, %826 : vector<8x128xf32>
    %919 = arith.subf %915, %918 : vector<8x128xf32>
    %cst_368 = arith.constant 2.33333325 : f32
    %920 = vector.broadcast %cst_368 : f32 to vector<8x128xf32>
    %921 = arith.subf %870, %920 : vector<8x128xf32>
    %922 = arith.mulf %921, %826 : vector<8x128xf32>
    %cst_369 = arith.constant 3.66666675 : f32
    %923 = vector.broadcast %cst_369 : f32 to vector<8x128xf32>
    %924 = arith.subf %870, %923 : vector<8x128xf32>
    %925 = arith.mulf %924, %833 : vector<8x128xf32>
    %926 = arith.subf %922, %925 : vector<8x128xf32>
    %cst_370 = arith.constant 2.66666675 : f32
    %927 = vector.broadcast %cst_370 : f32 to vector<8x128xf32>
    %928 = arith.subf %870, %927 : vector<8x128xf32>
    %929 = arith.mulf %928, %833 : vector<8x128xf32>
    %cst_371 = arith.constant 4.000000e+00 : f32
    %930 = vector.broadcast %cst_371 : f32 to vector<8x128xf32>
    %931 = arith.subf %870, %930 : vector<8x128xf32>
    %932 = arith.mulf %931, %840 : vector<8x128xf32>
    %933 = arith.subf %929, %932 : vector<8x128xf32>
    %cst_372 = arith.constant 3.000000e+00 : f32
    %934 = vector.broadcast %cst_372 : f32 to vector<8x128xf32>
    %935 = arith.subf %870, %934 : vector<8x128xf32>
    %936 = arith.mulf %935, %840 : vector<8x128xf32>
    %cst_373 = arith.constant 4.33333349 : f32
    %937 = vector.broadcast %cst_373 : f32 to vector<8x128xf32>
    %938 = arith.subf %870, %937 : vector<8x128xf32>
    %939 = arith.mulf %938, %847 : vector<8x128xf32>
    %940 = arith.subf %936, %939 : vector<8x128xf32>
    %cst_374 = arith.constant 3.33333325 : f32
    %941 = vector.broadcast %cst_374 : f32 to vector<8x128xf32>
    %942 = arith.subf %870, %941 : vector<8x128xf32>
    %943 = arith.mulf %942, %847 : vector<8x128xf32>
    %cst_375 = arith.constant 4.66666651 : f32
    %944 = vector.broadcast %cst_375 : f32 to vector<8x128xf32>
    %945 = arith.subf %870, %944 : vector<8x128xf32>
    %946 = arith.mulf %945, %854 : vector<8x128xf32>
    %947 = arith.subf %943, %946 : vector<8x128xf32>
    %cst_376 = arith.constant 3.66666675 : f32
    %948 = vector.broadcast %cst_376 : f32 to vector<8x128xf32>
    %949 = arith.subf %870, %948 : vector<8x128xf32>
    %950 = arith.mulf %949, %854 : vector<8x128xf32>
    %cst_377 = arith.constant 5.000000e+00 : f32
    %951 = vector.broadcast %cst_377 : f32 to vector<8x128xf32>
    %952 = arith.subf %870, %951 : vector<8x128xf32>
    %953 = arith.mulf %952, %861 : vector<8x128xf32>
    %954 = arith.subf %950, %953 : vector<8x128xf32>
    %cst_378 = arith.constant 4.000000e+00 : f32
    %955 = vector.broadcast %cst_378 : f32 to vector<8x128xf32>
    %956 = arith.subf %870, %955 : vector<8x128xf32>
    %957 = arith.mulf %956, %861 : vector<8x128xf32>
    %cst_379 = arith.constant 5.33333349 : f32
    %958 = vector.broadcast %cst_379 : f32 to vector<8x128xf32>
    %959 = arith.subf %870, %958 : vector<8x128xf32>
    %960 = arith.mulf %959, %868 : vector<8x128xf32>
    %961 = arith.subf %957, %960 : vector<8x128xf32>
    %c16_380 = arith.constant 16 : index
    %c0_381 = arith.constant 0 : index
    %962 = vector.load %arg7[%c16_380, %c0_381] : memref<32x1664xf32, #tpu.memory_space<vmem>>, vector<8x128xf32>
    tpu.vector_store %arg7[%c16_380, %c0_381], %877 {strides = array<i32>} : memref<32x1664xf32, #tpu.memory_space<vmem>>, vector<8x128xf32>,
    %c16_382 = arith.constant 16 : index
    %c128_383 = arith.constant 128 : index
    %963 = vector.load %arg7[%c16_382, %c128_383] : memref<32x1664xf32, #tpu.memory_space<vmem>>, vector<8x128xf32>
    tpu.vector_store %arg7[%c16_382, %c128_383], %884 {strides = array<i32>} : memref<32x1664xf32, #tpu.memory_space<vmem>>, vector<8x128xf32>,
    %c16_384 = arith.constant 16 : index
    %c256_385 = arith.constant 256 : index
    %964 = vector.load %arg7[%c16_384, %c256_385] : memref<32x1664xf32, #tpu.memory_space<vmem>>, vector<8x128xf32>
    tpu.vector_store %arg7[%c16_384, %c256_385], %891 {strides = array<i32>} : memref<32x1664xf32, #tpu.memory_space<vmem>>, vector<8x128xf32>,
    %c16_386 = arith.constant 16 : index
    %c384_387 = arith.constant 384 : index
    %965 = vector.load %arg7[%c16_386, %c384_387] : memref<32x1664xf32, #tpu.memory_space<vmem>>, vector<8x128xf32>
    tpu.vector_store %arg7[%c16_386, %c384_387], %898 {strides = array<i32>} : memref<32x1664xf32, #tpu.memory_space<vmem>>, vector<8x128xf32>,
    %c16_388 = arith.constant 16 : index
    %c512_389 = arith.constant 512 : index
    %966 = vector.load %arg7[%c16_388, %c512_389] : memref<32x1664xf32, #tpu.memory_space<vmem>>, vector<8x128xf32>
    tpu.vector_store %arg7[%c16_388, %c512_389], %905 {strides = array<i32>} : memref<32x1664xf32, #tpu.memory_space<vmem>>, vector<8x128xf32>,
    %c16_390 = arith.constant 16 : index
    %c640_391 = arith.constant 640 : index
    %967 = vector.load %arg7[%c16_390, %c640_391] : memref<32x1664xf32, #tpu.memory_space<vmem>>, vector<8x128xf32>
    tpu.vector_store %arg7[%c16_390, %c640_391], %912 {strides = array<i32>} : memref<32x1664xf32, #tpu.memory_space<vmem>>, vector<8x128xf32>,
    %c16_392 = arith.constant 16 : index
    %c768_393 = arith.constant 768 : index
    %968 = vector.load %arg7[%c16_392, %c768_393] : memref<32x1664xf32, #tpu.memory_space<vmem>>, vector<8x128xf32>
    tpu.vector_store %arg7[%c16_392, %c768_393], %919 {strides = array<i32>} : memref<32x1664xf32, #tpu.memory_space<vmem>>, vector<8x128xf32>,
    %c16_394 = arith.constant 16 : index
    %c896_395 = arith.constant 896 : index
    %969 = vector.load %arg7[%c16_394, %c896_395] : memref<32x1664xf32, #tpu.memory_space<vmem>>, vector<8x128xf32>
    tpu.vector_store %arg7[%c16_394, %c896_395], %926 {strides = array<i32>} : memref<32x1664xf32, #tpu.memory_space<vmem>>, vector<8x128xf32>,
    %c16_396 = arith.constant 16 : index
    %c1024_397 = arith.constant 1024 : index
    %970 = vector.load %arg7[%c16_396, %c1024_397] : memref<32x1664xf32, #tpu.memory_space<vmem>>, vector<8x128xf32>
    tpu.vector_store %arg7[%c16_396, %c1024_397], %933 {strides = array<i32>} : memref<32x1664xf32, #tpu.memory_space<vmem>>, vector<8x128xf32>,
    %c16_398 = arith.constant 16 : index
    %c1152_399 = arith.constant 1152 : index
    %971 = vector.load %arg7[%c16_398, %c1152_399] : memref<32x1664xf32, #tpu.memory_space<vmem>>, vector<8x128xf32>
    tpu.vector_store %arg7[%c16_398, %c1152_399], %940 {strides = array<i32>} : memref<32x1664xf32, #tpu.memory_space<vmem>>, vector<8x128xf32>,
    %c16_400 = arith.constant 16 : index
    %c1280_401 = arith.constant 1280 : index
    %972 = vector.load %arg7[%c16_400, %c1280_401] : memref<32x1664xf32, #tpu.memory_space<vmem>>, vector<8x128xf32>
    tpu.vector_store %arg7[%c16_400, %c1280_401], %947 {strides = array<i32>} : memref<32x1664xf32, #tpu.memory_space<vmem>>, vector<8x128xf32>,
    %c16_402 = arith.constant 16 : index
    %c1408_403 = arith.constant 1408 : index
    %973 = vector.load %arg7[%c16_402, %c1408_403] : memref<32x1664xf32, #tpu.memory_space<vmem>>, vector<8x128xf32>
    tpu.vector_store %arg7[%c16_402, %c1408_403], %954 {strides = array<i32>} : memref<32x1664xf32, #tpu.memory_space<vmem>>, vector<8x128xf32>,
    %c16_404 = arith.constant 16 : index
    %c1536_405 = arith.constant 1536 : index
    %974 = vector.load %arg7[%c16_404, %c1536_405] : memref<32x1664xf32, #tpu.memory_space<vmem>>, vector<8x128xf32>
    tpu.vector_store %arg7[%c16_404, %c1536_405], %961 {strides = array<i32>} : memref<32x1664xf32, #tpu.memory_space<vmem>>, vector<8x128xf32>,
    %c24 = arith.constant 24 : index
    %c0_406 = arith.constant 0 : index
    %975 = vector.load %arg6[%c24, %c0_406] : memref<32x128xf32, #tpu.memory_space<vmem>>, vector<8x128xf32>
    %cst_407 = arith.constant -1.600000e+00 : f32
    %976 = vector.broadcast %cst_407 : f32 to vector<8x128xf32>
    %977 = arith.subf %975, %976 : vector<8x128xf32>
    %cst_408 = arith.constant 5.000000e+00 : f32
    %978 = vector.broadcast %cst_408 : f32 to vector<8x128xf32>
    %979 = arith.mulf %977, %978 : vector<8x128xf32>
    %cst_409 = arith.constant 1.000000e+00 : f32
    %980 = vector.broadcast %cst_409 : f32 to vector<8x128xf32>
    %981 = arith.subf %979, %980 : vector<8x128xf32>
    %982 = math.absf %981 : vector<8x128xf32>
    %cst_410 = arith.constant 1.000000e+00 : f32
    %983 = vector.broadcast %cst_410 : f32 to vector<8x128xf32>
    %984 = arith.subf %983, %982 : vector<8x128xf32>
    %cst_411 = arith.constant 0.000000e+00 : f32
    %985 = vector.broadcast %cst_411 : f32 to vector<8x128xf32>
    %986 = arith.maximumf %984, %985 : vector<8x128xf32>
    %cst_412 = arith.constant 2.000000e+00 : f32
    %987 = vector.broadcast %cst_412 : f32 to vector<8x128xf32>
    %988 = arith.subf %979, %987 : vector<8x128xf32>
    %989 = math.absf %988 : vector<8x128xf32>
    %cst_413 = arith.constant 1.000000e+00 : f32
    %990 = vector.broadcast %cst_413 : f32 to vector<8x128xf32>
    %991 = arith.subf %990, %989 : vector<8x128xf32>
    %cst_414 = arith.constant 0.000000e+00 : f32
    %992 = vector.broadcast %cst_414 : f32 to vector<8x128xf32>
    %993 = arith.maximumf %991, %992 : vector<8x128xf32>
    %cst_415 = arith.constant 3.000000e+00 : f32
    %994 = vector.broadcast %cst_415 : f32 to vector<8x128xf32>
    %995 = arith.subf %979, %994 : vector<8x128xf32>
    %996 = math.absf %995 : vector<8x128xf32>
    %cst_416 = arith.constant 1.000000e+00 : f32
    %997 = vector.broadcast %cst_416 : f32 to vector<8x128xf32>
    %998 = arith.subf %997, %996 : vector<8x128xf32>
    %cst_417 = arith.constant 0.000000e+00 : f32
    %999 = vector.broadcast %cst_417 : f32 to vector<8x128xf32>
    %1000 = arith.maximumf %998, %999 : vector<8x128xf32>
    %cst_418 = arith.constant 4.000000e+00 : f32
    %1001 = vector.broadcast %cst_418 : f32 to vector<8x128xf32>
    %1002 = arith.subf %979, %1001 : vector<8x128xf32>
    %1003 = math.absf %1002 : vector<8x128xf32>
    %cst_419 = arith.constant 1.000000e+00 : f32
    %1004 = vector.broadcast %cst_419 : f32 to vector<8x128xf32>
    %1005 = arith.subf %1004, %1003 : vector<8x128xf32>
    %cst_420 = arith.constant 0.000000e+00 : f32
    %1006 = vector.broadcast %cst_420 : f32 to vector<8x128xf32>
    %1007 = arith.maximumf %1005, %1006 : vector<8x128xf32>
    %cst_421 = arith.constant 5.000000e+00 : f32
    %1008 = vector.broadcast %cst_421 : f32 to vector<8x128xf32>
    %1009 = arith.subf %979, %1008 : vector<8x128xf32>
    %1010 = math.absf %1009 : vector<8x128xf32>
    %cst_422 = arith.constant 1.000000e+00 : f32
    %1011 = vector.broadcast %cst_422 : f32 to vector<8x128xf32>
    %1012 = arith.subf %1011, %1010 : vector<8x128xf32>
    %cst_423 = arith.constant 0.000000e+00 : f32
    %1013 = vector.broadcast %cst_423 : f32 to vector<8x128xf32>
    %1014 = arith.maximumf %1012, %1013 : vector<8x128xf32>
    %cst_424 = arith.constant 6.000000e+00 : f32
    %1015 = vector.broadcast %cst_424 : f32 to vector<8x128xf32>
    %1016 = arith.subf %979, %1015 : vector<8x128xf32>
    %1017 = math.absf %1016 : vector<8x128xf32>
    %cst_425 = arith.constant 1.000000e+00 : f32
    %1018 = vector.broadcast %cst_425 : f32 to vector<8x128xf32>
    %1019 = arith.subf %1018, %1017 : vector<8x128xf32>
    %cst_426 = arith.constant 0.000000e+00 : f32
    %1020 = vector.broadcast %cst_426 : f32 to vector<8x128xf32>
    %1021 = arith.maximumf %1019, %1020 : vector<8x128xf32>
    %cst_427 = arith.constant 7.000000e+00 : f32
    %1022 = vector.broadcast %cst_427 : f32 to vector<8x128xf32>
    %1023 = arith.subf %979, %1022 : vector<8x128xf32>
    %1024 = math.absf %1023 : vector<8x128xf32>
    %cst_428 = arith.constant 1.000000e+00 : f32
    %1025 = vector.broadcast %cst_428 : f32 to vector<8x128xf32>
    %1026 = arith.subf %1025, %1024 : vector<8x128xf32>
    %cst_429 = arith.constant 0.000000e+00 : f32
    %1027 = vector.broadcast %cst_429 : f32 to vector<8x128xf32>
    %1028 = arith.maximumf %1026, %1027 : vector<8x128xf32>
    %cst_430 = arith.constant 8.000000e+00 : f32
    %1029 = vector.broadcast %cst_430 : f32 to vector<8x128xf32>
    %1030 = arith.subf %979, %1029 : vector<8x128xf32>
    %1031 = math.absf %1030 : vector<8x128xf32>
    %cst_431 = arith.constant 1.000000e+00 : f32
    %1032 = vector.broadcast %cst_431 : f32 to vector<8x128xf32>
    %1033 = arith.subf %1032, %1031 : vector<8x128xf32>
    %cst_432 = arith.constant 0.000000e+00 : f32
    %1034 = vector.broadcast %cst_432 : f32 to vector<8x128xf32>
    %1035 = arith.maximumf %1033, %1034 : vector<8x128xf32>
    %cst_433 = arith.constant 9.000000e+00 : f32
    %1036 = vector.broadcast %cst_433 : f32 to vector<8x128xf32>
    %1037 = arith.subf %979, %1036 : vector<8x128xf32>
    %1038 = math.absf %1037 : vector<8x128xf32>
    %cst_434 = arith.constant 1.000000e+00 : f32
    %1039 = vector.broadcast %cst_434 : f32 to vector<8x128xf32>
    %1040 = arith.subf %1039, %1038 : vector<8x128xf32>
    %cst_435 = arith.constant 0.000000e+00 : f32
    %1041 = vector.broadcast %cst_435 : f32 to vector<8x128xf32>
    %1042 = arith.maximumf %1040, %1041 : vector<8x128xf32>
    %cst_436 = arith.constant 1.000000e+01 : f32
    %1043 = vector.broadcast %cst_436 : f32 to vector<8x128xf32>
    %1044 = arith.subf %979, %1043 : vector<8x128xf32>
    %1045 = math.absf %1044 : vector<8x128xf32>
    %cst_437 = arith.constant 1.000000e+00 : f32
    %1046 = vector.broadcast %cst_437 : f32 to vector<8x128xf32>
    %1047 = arith.subf %1046, %1045 : vector<8x128xf32>
    %cst_438 = arith.constant 0.000000e+00 : f32
    %1048 = vector.broadcast %cst_438 : f32 to vector<8x128xf32>
    %1049 = arith.maximumf %1047, %1048 : vector<8x128xf32>
    %cst_439 = arith.constant 1.100000e+01 : f32
    %1050 = vector.broadcast %cst_439 : f32 to vector<8x128xf32>
    %1051 = arith.subf %979, %1050 : vector<8x128xf32>
    %1052 = math.absf %1051 : vector<8x128xf32>
    %cst_440 = arith.constant 1.000000e+00 : f32
    %1053 = vector.broadcast %cst_440 : f32 to vector<8x128xf32>
    %1054 = arith.subf %1053, %1052 : vector<8x128xf32>
    %cst_441 = arith.constant 0.000000e+00 : f32
    %1055 = vector.broadcast %cst_441 : f32 to vector<8x128xf32>
    %1056 = arith.maximumf %1054, %1055 : vector<8x128xf32>
    %cst_442 = arith.constant 1.200000e+01 : f32
    %1057 = vector.broadcast %cst_442 : f32 to vector<8x128xf32>
    %1058 = arith.subf %979, %1057 : vector<8x128xf32>
    %1059 = math.absf %1058 : vector<8x128xf32>
    %cst_443 = arith.constant 1.000000e+00 : f32
    %1060 = vector.broadcast %cst_443 : f32 to vector<8x128xf32>
    %1061 = arith.subf %1060, %1059 : vector<8x128xf32>
    %cst_444 = arith.constant 0.000000e+00 : f32
    %1062 = vector.broadcast %cst_444 : f32 to vector<8x128xf32>
    %1063 = arith.maximumf %1061, %1062 : vector<8x128xf32>
    %cst_445 = arith.constant 1.300000e+01 : f32
    %1064 = vector.broadcast %cst_445 : f32 to vector<8x128xf32>
    %1065 = arith.subf %979, %1064 : vector<8x128xf32>
    %1066 = math.absf %1065 : vector<8x128xf32>
    %cst_446 = arith.constant 1.000000e+00 : f32
    %1067 = vector.broadcast %cst_446 : f32 to vector<8x128xf32>
    %1068 = arith.subf %1067, %1066 : vector<8x128xf32>
    %cst_447 = arith.constant 0.000000e+00 : f32
    %1069 = vector.broadcast %cst_447 : f32 to vector<8x128xf32>
    %1070 = arith.maximumf %1068, %1069 : vector<8x128xf32>
    %cst_448 = arith.constant 1.400000e+01 : f32
    %1071 = vector.broadcast %cst_448 : f32 to vector<8x128xf32>
    %1072 = arith.subf %979, %1071 : vector<8x128xf32>
    %1073 = math.absf %1072 : vector<8x128xf32>
    %cst_449 = arith.constant 1.000000e+00 : f32
    %1074 = vector.broadcast %cst_449 : f32 to vector<8x128xf32>
    %1075 = arith.subf %1074, %1073 : vector<8x128xf32>
    %cst_450 = arith.constant 0.000000e+00 : f32
    %1076 = vector.broadcast %cst_450 : f32 to vector<8x128xf32>
    %1077 = arith.maximumf %1075, %1076 : vector<8x128xf32>
    %cst_451 = arith.constant 1.500000e+01 : f32
    %1078 = vector.broadcast %cst_451 : f32 to vector<8x128xf32>
    %1079 = arith.subf %979, %1078 : vector<8x128xf32>
    %1080 = math.absf %1079 : vector<8x128xf32>
    %cst_452 = arith.constant 1.000000e+00 : f32
    %1081 = vector.broadcast %cst_452 : f32 to vector<8x128xf32>
    %1082 = arith.subf %1081, %1080 : vector<8x128xf32>
    %cst_453 = arith.constant 0.000000e+00 : f32
    %1083 = vector.broadcast %cst_453 : f32 to vector<8x128xf32>
    %1084 = arith.maximumf %1082, %1083 : vector<8x128xf32>
    %cst_454 = arith.constant 5.000000e-01 : f32
    %1085 = vector.broadcast %cst_454 : f32 to vector<8x128xf32>
    %1086 = arith.mulf %979, %1085 : vector<8x128xf32>
    %cst_455 = arith.constant 0.000000e+00 : f32
    %1087 = vector.broadcast %cst_455 : f32 to vector<8x128xf32>
    %1088 = arith.subf %1086, %1087 : vector<8x128xf32>
    %1089 = arith.mulf %1088, %986 : vector<8x128xf32>
    %cst_456 = arith.constant 1.500000e+00 : f32
    %1090 = vector.broadcast %cst_456 : f32 to vector<8x128xf32>
    %1091 = arith.subf %1086, %1090 : vector<8x128xf32>
    %1092 = arith.mulf %1091, %993 : vector<8x128xf32>
    %1093 = arith.subf %1089, %1092 : vector<8x128xf32>
    %cst_457 = arith.constant 5.000000e-01 : f32
    %1094 = vector.broadcast %cst_457 : f32 to vector<8x128xf32>
    %1095 = arith.subf %1086, %1094 : vector<8x128xf32>
    %1096 = arith.mulf %1095, %993 : vector<8x128xf32>
    %cst_458 = arith.constant 2.000000e+00 : f32
    %1097 = vector.broadcast %cst_458 : f32 to vector<8x128xf32>
    %1098 = arith.subf %1086, %1097 : vector<8x128xf32>
    %1099 = arith.mulf %1098, %1000 : vector<8x128xf32>
    %1100 = arith.subf %1096, %1099 : vector<8x128xf32>
    %cst_459 = arith.constant 1.000000e+00 : f32
    %1101 = vector.broadcast %cst_459 : f32 to vector<8x128xf32>
    %1102 = arith.subf %1086, %1101 : vector<8x128xf32>
    %1103 = arith.mulf %1102, %1000 : vector<8x128xf32>
    %cst_460 = arith.constant 2.500000e+00 : f32
    %1104 = vector.broadcast %cst_460 : f32 to vector<8x128xf32>
    %1105 = arith.subf %1086, %1104 : vector<8x128xf32>
    %1106 = arith.mulf %1105, %1007 : vector<8x128xf32>
    %1107 = arith.subf %1103, %1106 : vector<8x128xf32>
    %cst_461 = arith.constant 1.500000e+00 : f32
    %1108 = vector.broadcast %cst_461 : f32 to vector<8x128xf32>
    %1109 = arith.subf %1086, %1108 : vector<8x128xf32>
    %1110 = arith.mulf %1109, %1007 : vector<8x128xf32>
    %cst_462 = arith.constant 3.000000e+00 : f32
    %1111 = vector.broadcast %cst_462 : f32 to vector<8x128xf32>
    %1112 = arith.subf %1086, %1111 : vector<8x128xf32>
    %1113 = arith.mulf %1112, %1014 : vector<8x128xf32>
    %1114 = arith.subf %1110, %1113 : vector<8x128xf32>
    %cst_463 = arith.constant 2.000000e+00 : f32
    %1115 = vector.broadcast %cst_463 : f32 to vector<8x128xf32>
    %1116 = arith.subf %1086, %1115 : vector<8x128xf32>
    %1117 = arith.mulf %1116, %1014 : vector<8x128xf32>
    %cst_464 = arith.constant 3.500000e+00 : f32
    %1118 = vector.broadcast %cst_464 : f32 to vector<8x128xf32>
    %1119 = arith.subf %1086, %1118 : vector<8x128xf32>
    %1120 = arith.mulf %1119, %1021 : vector<8x128xf32>
    %1121 = arith.subf %1117, %1120 : vector<8x128xf32>
    %cst_465 = arith.constant 2.500000e+00 : f32
    %1122 = vector.broadcast %cst_465 : f32 to vector<8x128xf32>
    %1123 = arith.subf %1086, %1122 : vector<8x128xf32>
    %1124 = arith.mulf %1123, %1021 : vector<8x128xf32>
    %cst_466 = arith.constant 4.000000e+00 : f32
    %1125 = vector.broadcast %cst_466 : f32 to vector<8x128xf32>
    %1126 = arith.subf %1086, %1125 : vector<8x128xf32>
    %1127 = arith.mulf %1126, %1028 : vector<8x128xf32>
    %1128 = arith.subf %1124, %1127 : vector<8x128xf32>
    %cst_467 = arith.constant 3.000000e+00 : f32
    %1129 = vector.broadcast %cst_467 : f32 to vector<8x128xf32>
    %1130 = arith.subf %1086, %1129 : vector<8x128xf32>
    %1131 = arith.mulf %1130, %1028 : vector<8x128xf32>
    %cst_468 = arith.constant 4.500000e+00 : f32
    %1132 = vector.broadcast %cst_468 : f32 to vector<8x128xf32>
    %1133 = arith.subf %1086, %1132 : vector<8x128xf32>
    %1134 = arith.mulf %1133, %1035 : vector<8x128xf32>
    %1135 = arith.subf %1131, %1134 : vector<8x128xf32>
    %cst_469 = arith.constant 3.500000e+00 : f32
    %1136 = vector.broadcast %cst_469 : f32 to vector<8x128xf32>
    %1137 = arith.subf %1086, %1136 : vector<8x128xf32>
    %1138 = arith.mulf %1137, %1035 : vector<8x128xf32>
    %cst_470 = arith.constant 5.000000e+00 : f32
    %1139 = vector.broadcast %cst_470 : f32 to vector<8x128xf32>
    %1140 = arith.subf %1086, %1139 : vector<8x128xf32>
    %1141 = arith.mulf %1140, %1042 : vector<8x128xf32>
    %1142 = arith.subf %1138, %1141 : vector<8x128xf32>
    %cst_471 = arith.constant 4.000000e+00 : f32
    %1143 = vector.broadcast %cst_471 : f32 to vector<8x128xf32>
    %1144 = arith.subf %1086, %1143 : vector<8x128xf32>
    %1145 = arith.mulf %1144, %1042 : vector<8x128xf32>
    %cst_472 = arith.constant 5.500000e+00 : f32
    %1146 = vector.broadcast %cst_472 : f32 to vector<8x128xf32>
    %1147 = arith.subf %1086, %1146 : vector<8x128xf32>
    %1148 = arith.mulf %1147, %1049 : vector<8x128xf32>
    %1149 = arith.subf %1145, %1148 : vector<8x128xf32>
    %cst_473 = arith.constant 4.500000e+00 : f32
    %1150 = vector.broadcast %cst_473 : f32 to vector<8x128xf32>
    %1151 = arith.subf %1086, %1150 : vector<8x128xf32>
    %1152 = arith.mulf %1151, %1049 : vector<8x128xf32>
    %cst_474 = arith.constant 6.000000e+00 : f32
    %1153 = vector.broadcast %cst_474 : f32 to vector<8x128xf32>
    %1154 = arith.subf %1086, %1153 : vector<8x128xf32>
    %1155 = arith.mulf %1154, %1056 : vector<8x128xf32>
    %1156 = arith.subf %1152, %1155 : vector<8x128xf32>
    %cst_475 = arith.constant 5.000000e+00 : f32
    %1157 = vector.broadcast %cst_475 : f32 to vector<8x128xf32>
    %1158 = arith.subf %1086, %1157 : vector<8x128xf32>
    %1159 = arith.mulf %1158, %1056 : vector<8x128xf32>
    %cst_476 = arith.constant 6.500000e+00 : f32
    %1160 = vector.broadcast %cst_476 : f32 to vector<8x128xf32>
    %1161 = arith.subf %1086, %1160 : vector<8x128xf32>
    %1162 = arith.mulf %1161, %1063 : vector<8x128xf32>
    %1163 = arith.subf %1159, %1162 : vector<8x128xf32>
    %cst_477 = arith.constant 5.500000e+00 : f32
    %1164 = vector.broadcast %cst_477 : f32 to vector<8x128xf32>
    %1165 = arith.subf %1086, %1164 : vector<8x128xf32>
    %1166 = arith.mulf %1165, %1063 : vector<8x128xf32>
    %cst_478 = arith.constant 7.000000e+00 : f32
    %1167 = vector.broadcast %cst_478 : f32 to vector<8x128xf32>
    %1168 = arith.subf %1086, %1167 : vector<8x128xf32>
    %1169 = arith.mulf %1168, %1070 : vector<8x128xf32>
    %1170 = arith.subf %1166, %1169 : vector<8x128xf32>
    %cst_479 = arith.constant 6.000000e+00 : f32
    %1171 = vector.broadcast %cst_479 : f32 to vector<8x128xf32>
    %1172 = arith.subf %1086, %1171 : vector<8x128xf32>
    %1173 = arith.mulf %1172, %1070 : vector<8x128xf32>
    %cst_480 = arith.constant 7.500000e+00 : f32
    %1174 = vector.broadcast %cst_480 : f32 to vector<8x128xf32>
    %1175 = arith.subf %1086, %1174 : vector<8x128xf32>
    %1176 = arith.mulf %1175, %1077 : vector<8x128xf32>
    %1177 = arith.subf %1173, %1176 : vector<8x128xf32>
    %cst_481 = arith.constant 6.500000e+00 : f32
    %1178 = vector.broadcast %cst_481 : f32 to vector<8x128xf32>
    %1179 = arith.subf %1086, %1178 : vector<8x128xf32>
    %1180 = arith.mulf %1179, %1077 : vector<8x128xf32>
    %cst_482 = arith.constant 8.000000e+00 : f32
    %1181 = vector.broadcast %cst_482 : f32 to vector<8x128xf32>
    %1182 = arith.subf %1086, %1181 : vector<8x128xf32>
    %1183 = arith.mulf %1182, %1084 : vector<8x128xf32>
    %1184 = arith.subf %1180, %1183 : vector<8x128xf32>
    %cst_483 = arith.constant 0.333333343 : f32
    %1185 = vector.broadcast %cst_483 : f32 to vector<8x128xf32>
    %1186 = arith.mulf %979, %1185 : vector<8x128xf32>
    %cst_484 = arith.constant 0.000000e+00 : f32
    %1187 = vector.broadcast %cst_484 : f32 to vector<8x128xf32>
    %1188 = arith.subf %1186, %1187 : vector<8x128xf32>
    %1189 = arith.mulf %1188, %1093 : vector<8x128xf32>
    %cst_485 = arith.constant 1.33333337 : f32
    %1190 = vector.broadcast %cst_485 : f32 to vector<8x128xf32>
    %1191 = arith.subf %1186, %1190 : vector<8x128xf32>
    %1192 = arith.mulf %1191, %1100 : vector<8x128xf32>
    %1193 = arith.subf %1189, %1192 : vector<8x128xf32>
    %cst_486 = arith.constant 0.333333343 : f32
    %1194 = vector.broadcast %cst_486 : f32 to vector<8x128xf32>
    %1195 = arith.subf %1186, %1194 : vector<8x128xf32>
    %1196 = arith.mulf %1195, %1100 : vector<8x128xf32>
    %cst_487 = arith.constant 1.66666663 : f32
    %1197 = vector.broadcast %cst_487 : f32 to vector<8x128xf32>
    %1198 = arith.subf %1186, %1197 : vector<8x128xf32>
    %1199 = arith.mulf %1198, %1107 : vector<8x128xf32>
    %1200 = arith.subf %1196, %1199 : vector<8x128xf32>
    %cst_488 = arith.constant 0.666666686 : f32
    %1201 = vector.broadcast %cst_488 : f32 to vector<8x128xf32>
    %1202 = arith.subf %1186, %1201 : vector<8x128xf32>
    %1203 = arith.mulf %1202, %1107 : vector<8x128xf32>
    %cst_489 = arith.constant 2.000000e+00 : f32
    %1204 = vector.broadcast %cst_489 : f32 to vector<8x128xf32>
    %1205 = arith.subf %1186, %1204 : vector<8x128xf32>
    %1206 = arith.mulf %1205, %1114 : vector<8x128xf32>
    %1207 = arith.subf %1203, %1206 : vector<8x128xf32>
    %cst_490 = arith.constant 1.000000e+00 : f32
    %1208 = vector.broadcast %cst_490 : f32 to vector<8x128xf32>
    %1209 = arith.subf %1186, %1208 : vector<8x128xf32>
    %1210 = arith.mulf %1209, %1114 : vector<8x128xf32>
    %cst_491 = arith.constant 2.33333325 : f32
    %1211 = vector.broadcast %cst_491 : f32 to vector<8x128xf32>
    %1212 = arith.subf %1186, %1211 : vector<8x128xf32>
    %1213 = arith.mulf %1212, %1121 : vector<8x128xf32>
    %1214 = arith.subf %1210, %1213 : vector<8x128xf32>
    %cst_492 = arith.constant 1.33333337 : f32
    %1215 = vector.broadcast %cst_492 : f32 to vector<8x128xf32>
    %1216 = arith.subf %1186, %1215 : vector<8x128xf32>
    %1217 = arith.mulf %1216, %1121 : vector<8x128xf32>
    %cst_493 = arith.constant 2.66666675 : f32
    %1218 = vector.broadcast %cst_493 : f32 to vector<8x128xf32>
    %1219 = arith.subf %1186, %1218 : vector<8x128xf32>
    %1220 = arith.mulf %1219, %1128 : vector<8x128xf32>
    %1221 = arith.subf %1217, %1220 : vector<8x128xf32>
    %cst_494 = arith.constant 1.66666663 : f32
    %1222 = vector.broadcast %cst_494 : f32 to vector<8x128xf32>
    %1223 = arith.subf %1186, %1222 : vector<8x128xf32>
    %1224 = arith.mulf %1223, %1128 : vector<8x128xf32>
    %cst_495 = arith.constant 3.000000e+00 : f32
    %1225 = vector.broadcast %cst_495 : f32 to vector<8x128xf32>
    %1226 = arith.subf %1186, %1225 : vector<8x128xf32>
    %1227 = arith.mulf %1226, %1135 : vector<8x128xf32>
    %1228 = arith.subf %1224, %1227 : vector<8x128xf32>
    %cst_496 = arith.constant 2.000000e+00 : f32
    %1229 = vector.broadcast %cst_496 : f32 to vector<8x128xf32>
    %1230 = arith.subf %1186, %1229 : vector<8x128xf32>
    %1231 = arith.mulf %1230, %1135 : vector<8x128xf32>
    %cst_497 = arith.constant 3.33333325 : f32
    %1232 = vector.broadcast %cst_497 : f32 to vector<8x128xf32>
    %1233 = arith.subf %1186, %1232 : vector<8x128xf32>
    %1234 = arith.mulf %1233, %1142 : vector<8x128xf32>
    %1235 = arith.subf %1231, %1234 : vector<8x128xf32>
    %cst_498 = arith.constant 2.33333325 : f32
    %1236 = vector.broadcast %cst_498 : f32 to vector<8x128xf32>
    %1237 = arith.subf %1186, %1236 : vector<8x128xf32>
    %1238 = arith.mulf %1237, %1142 : vector<8x128xf32>
    %cst_499 = arith.constant 3.66666675 : f32
    %1239 = vector.broadcast %cst_499 : f32 to vector<8x128xf32>
    %1240 = arith.subf %1186, %1239 : vector<8x128xf32>
    %1241 = arith.mulf %1240, %1149 : vector<8x128xf32>
    %1242 = arith.subf %1238, %1241 : vector<8x128xf32>
    %cst_500 = arith.constant 2.66666675 : f32
    %1243 = vector.broadcast %cst_500 : f32 to vector<8x128xf32>
    %1244 = arith.subf %1186, %1243 : vector<8x128xf32>
    %1245 = arith.mulf %1244, %1149 : vector<8x128xf32>
    %cst_501 = arith.constant 4.000000e+00 : f32
    %1246 = vector.broadcast %cst_501 : f32 to vector<8x128xf32>
    %1247 = arith.subf %1186, %1246 : vector<8x128xf32>
    %1248 = arith.mulf %1247, %1156 : vector<8x128xf32>
    %1249 = arith.subf %1245, %1248 : vector<8x128xf32>
    %cst_502 = arith.constant 3.000000e+00 : f32
    %1250 = vector.broadcast %cst_502 : f32 to vector<8x128xf32>
    %1251 = arith.subf %1186, %1250 : vector<8x128xf32>
    %1252 = arith.mulf %1251, %1156 : vector<8x128xf32>
    %cst_503 = arith.constant 4.33333349 : f32
    %1253 = vector.broadcast %cst_503 : f32 to vector<8x128xf32>
    %1254 = arith.subf %1186, %1253 : vector<8x128xf32>
    %1255 = arith.mulf %1254, %1163 : vector<8x128xf32>
    %1256 = arith.subf %1252, %1255 : vector<8x128xf32>
    %cst_504 = arith.constant 3.33333325 : f32
    %1257 = vector.broadcast %cst_504 : f32 to vector<8x128xf32>
    %1258 = arith.subf %1186, %1257 : vector<8x128xf32>
    %1259 = arith.mulf %1258, %1163 : vector<8x128xf32>
    %cst_505 = arith.constant 4.66666651 : f32
    %1260 = vector.broadcast %cst_505 : f32 to vector<8x128xf32>
    %1261 = arith.subf %1186, %1260 : vector<8x128xf32>
    %1262 = arith.mulf %1261, %1170 : vector<8x128xf32>
    %1263 = arith.subf %1259, %1262 : vector<8x128xf32>
    %cst_506 = arith.constant 3.66666675 : f32
    %1264 = vector.broadcast %cst_506 : f32 to vector<8x128xf32>
    %1265 = arith.subf %1186, %1264 : vector<8x128xf32>
    %1266 = arith.mulf %1265, %1170 : vector<8x128xf32>
    %cst_507 = arith.constant 5.000000e+00 : f32
    %1267 = vector.broadcast %cst_507 : f32 to vector<8x128xf32>
    %1268 = arith.subf %1186, %1267 : vector<8x128xf32>
    %1269 = arith.mulf %1268, %1177 : vector<8x128xf32>
    %1270 = arith.subf %1266, %1269 : vector<8x128xf32>
    %cst_508 = arith.constant 4.000000e+00 : f32
    %1271 = vector.broadcast %cst_508 : f32 to vector<8x128xf32>
    %1272 = arith.subf %1186, %1271 : vector<8x128xf32>
    %1273 = arith.mulf %1272, %1177 : vector<8x128xf32>
    %cst_509 = arith.constant 5.33333349 : f32
    %1274 = vector.broadcast %cst_509 : f32 to vector<8x128xf32>
    %1275 = arith.subf %1186, %1274 : vector<8x128xf32>
    %1276 = arith.mulf %1275, %1184 : vector<8x128xf32>
    %1277 = arith.subf %1273, %1276 : vector<8x128xf32>
    %c24_510 = arith.constant 24 : index
    %c0_511 = arith.constant 0 : index
    %1278 = vector.load %arg7[%c24_510, %c0_511] : memref<32x1664xf32, #tpu.memory_space<vmem>>, vector<8x128xf32>
    tpu.vector_store %arg7[%c24_510, %c0_511], %1193 {strides = array<i32>} : memref<32x1664xf32, #tpu.memory_space<vmem>>, vector<8x128xf32>,
    %c24_512 = arith.constant 24 : index
    %c128_513 = arith.constant 128 : index
    %1279 = vector.load %arg7[%c24_512, %c128_513] : memref<32x1664xf32, #tpu.memory_space<vmem>>, vector<8x128xf32>
    tpu.vector_store %arg7[%c24_512, %c128_513], %1200 {strides = array<i32>} : memref<32x1664xf32, #tpu.memory_space<vmem>>, vector<8x128xf32>,
    %c24_514 = arith.constant 24 : index
    %c256_515 = arith.constant 256 : index
    %1280 = vector.load %arg7[%c24_514, %c256_515] : memref<32x1664xf32, #tpu.memory_space<vmem>>, vector<8x128xf32>
    tpu.vector_store %arg7[%c24_514, %c256_515], %1207 {strides = array<i32>} : memref<32x1664xf32, #tpu.memory_space<vmem>>, vector<8x128xf32>,
    %c24_516 = arith.constant 24 : index
    %c384_517 = arith.constant 384 : index
    %1281 = vector.load %arg7[%c24_516, %c384_517] : memref<32x1664xf32, #tpu.memory_space<vmem>>, vector<8x128xf32>
    tpu.vector_store %arg7[%c24_516, %c384_517], %1214 {strides = array<i32>} : memref<32x1664xf32, #tpu.memory_space<vmem>>, vector<8x128xf32>,
    %c24_518 = arith.constant 24 : index
    %c512_519 = arith.constant 512 : index
    %1282 = vector.load %arg7[%c24_518, %c512_519] : memref<32x1664xf32, #tpu.memory_space<vmem>>, vector<8x128xf32>
    tpu.vector_store %arg7[%c24_518, %c512_519], %1221 {strides = array<i32>} : memref<32x1664xf32, #tpu.memory_space<vmem>>, vector<8x128xf32>,
    %c24_520 = arith.constant 24 : index
    %c640_521 = arith.constant 640 : index
    %1283 = vector.load %arg7[%c24_520, %c640_521] : memref<32x1664xf32, #tpu.memory_space<vmem>>, vector<8x128xf32>
    tpu.vector_store %arg7[%c24_520, %c640_521], %1228 {strides = array<i32>} : memref<32x1664xf32, #tpu.memory_space<vmem>>, vector<8x128xf32>,
    %c24_522 = arith.constant 24 : index
    %c768_523 = arith.constant 768 : index
    %1284 = vector.load %arg7[%c24_522, %c768_523] : memref<32x1664xf32, #tpu.memory_space<vmem>>, vector<8x128xf32>
    tpu.vector_store %arg7[%c24_522, %c768_523], %1235 {strides = array<i32>} : memref<32x1664xf32, #tpu.memory_space<vmem>>, vector<8x128xf32>,
    %c24_524 = arith.constant 24 : index
    %c896_525 = arith.constant 896 : index
    %1285 = vector.load %arg7[%c24_524, %c896_525] : memref<32x1664xf32, #tpu.memory_space<vmem>>, vector<8x128xf32>
    tpu.vector_store %arg7[%c24_524, %c896_525], %1242 {strides = array<i32>} : memref<32x1664xf32, #tpu.memory_space<vmem>>, vector<8x128xf32>,
    %c24_526 = arith.constant 24 : index
    %c1024_527 = arith.constant 1024 : index
    %1286 = vector.load %arg7[%c24_526, %c1024_527] : memref<32x1664xf32, #tpu.memory_space<vmem>>, vector<8x128xf32>
    tpu.vector_store %arg7[%c24_526, %c1024_527], %1249 {strides = array<i32>} : memref<32x1664xf32, #tpu.memory_space<vmem>>, vector<8x128xf32>,
    %c24_528 = arith.constant 24 : index
    %c1152_529 = arith.constant 1152 : index
    %1287 = vector.load %arg7[%c24_528, %c1152_529] : memref<32x1664xf32, #tpu.memory_space<vmem>>, vector<8x128xf32>
    tpu.vector_store %arg7[%c24_528, %c1152_529], %1256 {strides = array<i32>} : memref<32x1664xf32, #tpu.memory_space<vmem>>, vector<8x128xf32>,
    %c24_530 = arith.constant 24 : index
    %c1280_531 = arith.constant 1280 : index
    %1288 = vector.load %arg7[%c24_530, %c1280_531] : memref<32x1664xf32, #tpu.memory_space<vmem>>, vector<8x128xf32>
    tpu.vector_store %arg7[%c24_530, %c1280_531], %1263 {strides = array<i32>} : memref<32x1664xf32, #tpu.memory_space<vmem>>, vector<8x128xf32>,
    %c24_532 = arith.constant 24 : index
    %c1408_533 = arith.constant 1408 : index
    %1289 = vector.load %arg7[%c24_532, %c1408_533] : memref<32x1664xf32, #tpu.memory_space<vmem>>, vector<8x128xf32>
    tpu.vector_store %arg7[%c24_532, %c1408_533], %1270 {strides = array<i32>} : memref<32x1664xf32, #tpu.memory_space<vmem>>, vector<8x128xf32>,
    %c24_534 = arith.constant 24 : index
    %c1536_535 = arith.constant 1536 : index
    %1290 = vector.load %arg7[%c24_534, %c1536_535] : memref<32x1664xf32, #tpu.memory_space<vmem>>, vector<8x128xf32>
    tpu.vector_store %arg7[%c24_534, %c1536_535], %1277 {strides = array<i32>} : memref<32x1664xf32, #tpu.memory_space<vmem>>, vector<8x128xf32>,
    %c0_536 = arith.constant 0 : index
    %c0_537 = arith.constant 0 : index
    %1291 = vector.load %arg7[%c0_536, %c0_537] : memref<32x1664xf32, #tpu.memory_space<vmem>>, vector<32x1664xf32>
    %c0_538 = arith.constant 0 : index
    %c0_539 = arith.constant 0 : index
    %1292 = vector.load %arg5[%c0_538, %c0_539] : memref<1664x128xf32, #tpu.memory_space<vmem>>, vector<1664x128xf32>
    %cst_540 = arith.constant dense<0.000000e+00> : vector<32x128xf32>
    %1293 = tpu.matmul %1291, %1292, %cst_540 {dimension_numbers = #tpu.dot_dimension_numbers<[1], [0], [0], [1], [0, 0, 1, 1], [], []>} : vector<32x1664xf32>, vector<1664x128xf32>, vector<32x128xf32> -> vector<32x128xf32>
    %c0_541 = arith.constant 0 : index
    %c0_542 = arith.constant 0 : index
    %1294 = vector.load %arg6[%c0_541, %c0_542] : memref<32x128xf32, #tpu.memory_space<vmem>>, vector<32x128xf32>
    %cst_543 = arith.constant 0.000000e+00 : f32
    %1295 = vector.broadcast %cst_543 : f32 to vector<32x128xf32>
    %1296 = arith.maximumf %1294, %1295 : vector<32x128xf32>
    %c0_544 = arith.constant 0 : index
    %c0_545 = arith.constant 0 : index
    %1297 = vector.load %arg4[%c0_544, %c0_545] : memref<128x128xf32, #tpu.memory_space<vmem>>, vector<128x128xf32>
    %cst_546 = arith.constant dense<0.000000e+00> : vector<32x128xf32>
    %1298 = tpu.matmul %1296, %1297, %cst_546 {dimension_numbers = #tpu.dot_dimension_numbers<[1], [0], [0], [1], [0, 0, 1, 1], [], []>} : vector<32x128xf32>, vector<128x128xf32>, vector<32x128xf32> -> vector<32x128xf32>
    %1299 = arith.addf %1298, %1293 : vector<32x128xf32>
    %c0_547 = arith.constant 0 : index
    %c0_548 = arith.constant 0 : index
    %1300 = vector.load %arg6[%c0_547, %c0_548] : memref<32x128xf32, #tpu.memory_space<vmem>>, vector<32x128xf32>
    tpu.vector_store %arg6[%c0_547, %c0_548], %1299 {strides = array<i32>} : memref<32x128xf32, #tpu.memory_space<vmem>>, vector<32x128xf32>,
    return
  }
  func.func @transform_0(%arg0: i32) -> (i32, i32, i32) {
    %c0_i32 = arith.constant 0 : i32
    %c0_i32_0 = arith.constant 0 : i32
    %c0_i32_1 = arith.constant 0 : i32
    return %c0_i32, %arg0, %c0_i32_0 : i32, i32, i32
  }
  func.func @transform_1(%arg0: i32) -> (i32, i32, i32) {
    %c0_i32 = arith.constant 0 : i32
    %c0_i32_0 = arith.constant 0 : i32
    %c0_i32_1 = arith.constant 0 : i32
    %c0_i32_2 = arith.constant 0 : i32
    return %c0_i32, %c0_i32_0, %c0_i32_1 : i32, i32, i32
  }
  func.func @transform_2(%arg0: i32) -> (i32, i32) {
    %c0_i32 = arith.constant 0 : i32
    %c0_i32_0 = arith.constant 0 : i32
    %c0_i32_1 = arith.constant 0 : i32
    return %c0_i32, %c0_i32_0 : i32, i32
  }
  func.func @transform_3(%arg0: i32) -> (i32, i32) {
    %c0_i32 = arith.constant 0 : i32
    %c0_i32_0 = arith.constant 0 : i32
    %c0_i32_1 = arith.constant 0 : i32
    return %c0_i32, %c0_i32_0 : i32, i32
  }
  func.func @transform_4(%arg0: i32) -> (i32, i32) {
    %c0_i32 = arith.constant 0 : i32
    %c0_i32_0 = arith.constant 0 : i32
    %c0_i32_1 = arith.constant 0 : i32
    return %c0_i32, %c0_i32_0 : i32, i32
  }
  func.func @transform_5(%arg0: i32) -> (i32, i32) {
    %c0_i32 = arith.constant 0 : i32
    %c0_i32_0 = arith.constant 0 : i32
    return %arg0, %c0_i32 : i32, i32
  }
}

</mosaic_0001>

<llo_original>
// kernel: tpu_custom_call.1
$region0: #{tpu_custom_call.1}
  #allocation0 [shape = 'u32[]', space=smem, size = 0x4, offset = 0x4, fixed_abs, tag = 'smem constant byte address 0x4 - core index']
  #allocation1 [shape = 'u32[144,128]{1,0:T(1,128)}', space=vmem, size = 0x12000, scoped, tag = 'internal scratch']
  #allocation2 [shape = 'f32[32,1664]{1,0:T(8,128)}', space=vmem, size = 0x34000, scoped, tag = 'scratch operand']
  #allocation12 [shape = 's32[]', space=sflag, size = 0x4, offset = 0, fixed_abs, tag = 'sflag constant byte address 0x0 - dummy sync flag']
  %s0 = inlined_call_operand.hbm [shape: f32[4,64,256], index: 0, kind: input, shape index: {}]
  %s1 = inlined_call_operand.hbm [shape: f32[4,256,128], index: 1, kind: input, shape index: {}]
  %s2 = inlined_call_operand.vmem [shape: f32[1,128], index: 2, kind: input, shape index: {}]
  %s3 = inlined_call_operand.hbm [shape: f32[128,128], index: 3, kind: input, shape index: {}]
  %s4 = inlined_call_operand.hbm [shape: f32[1664,128], index: 4, kind: input, shape index: {}]
  %s5 = inlined_call_operand.hbm [shape: f32[64,128], index: 5, kind: output, shape index: {}]
  %s6 = sld [smem:[#allocation0]]
  $region69: #{tpu_custom_call.1} parent=0
    _
  %s8 = ssub.s32 1, %s6
  %s9 = scalar_select 0, %s8, %s6
  $region1: #{tpu_custom_call.1} parent=0
    #allocation3 [shape = 'u8[262144]{0}', space=vmem, size = 0x40000, scoped, tag = 'input window, operand 0']
    #allocation4 [shape = 's32[2]{0}', space=sflag, size = 0x8, scoped, tag = 'scoped memory for tpu_custom_call.1']
    #allocation5 [shape = 's32[2]{0}', space=sflag, size = 0x8, scoped, tag = 'scoped memory for tpu_custom_call.1']
    #allocation6 [shape = 'u8[524288]{0}', space=vmem, size = 0x80000, scoped, tag = 'input window, operand 1, single buffered']
    #allocation7 [shape = 's32[1]{0}', space=sflag, size = 0x4, scoped, tag = 'scoped memory for tpu_custom_call.1']
    #allocation8 [shape = 'u8[65536]{0}', space=vmem, size = 0x10000, scoped, tag = 'input window, operand 3, single buffered']
    #allocation9 [shape = 'u8[851968]{0}', space=vmem, size = 0xd0000, scoped, tag = 'input window, operand 4, single buffered']
    #allocation10 [shape = 's32[1]{0}', space=sflag, size = 0x4, scoped, tag = 'scoped memory for tpu_custom_call.1']
    #allocation11 [shape = 'u8[32768]{0}', space=vmem, size = 0x8000, scoped, tag = 'output window, operand 0']
    %10 = vsyncpa [#allocation4], 0
    %s11 = scalar_lea.sflag [#allocation4], 1
    %12 = vsyncpa %s11, 0
    %13 = vsyncpa [#allocation7], 0
    %14 = vsyncpa [#allocation10], 0
    %15 = vsyncpa [#allocation5], 0
    %s16 = scalar_lea.sflag [#allocation5], 1
    %17 = vsyncpa %s16, 0
    loop: start=0, step=1, limit=4
    $region2: #{tpu_custom_call.1} parent=1 // loop_pre_header
      _
    $region3: #{tpu_custom_call.1} parent=1 // loop_header
      %s19 = sphi 0, %s23
      %p20 = scmp.ge.s32.totalorder %s19, 4
      %s29 = sphi 0, %s31
      %s32 = sphi 0, %s29
      %s33 = sphi 0, %s32
      %s49 = sphi 0, %s33
      %s53 = sphi 0, %s53
      %s55 = sphi 0, %s53
      %s56 = sphi 0, %s55
      %s70 = sphi 0, %s56
      %s74 = sphi 0, %s74
      %s76 = sphi 0, %s74
      %s77 = sphi 0, %s76
      %s91 = sphi 0, %s77
      %s95 = sphi 0, %s95
      %s97 = sphi 0, %s95
      %s98 = sphi 0, %s97
      %s112 = sphi 0, %s98
      %s116 = sphi 0, %s116
      %s118 = sphi 0, %s116
      %s119 = sphi 0, %s118
      %s133 = sphi 0, %s119
      %s139 = sphi 0, %s141
      %s142 = sphi 0, %s139
      %s143 = sphi 0, %s142
      %s159 = sphi 0, %s143
    $region4: #{tpu_custom_call.1} parent=1 // loop_header_branch
      %22 = sbr.rel (%p20) target = $region8
    $region5: #{tpu_custom_call.1} parent=1 // loop_body
      %s24 = ssub.s32 %s19, 1
      %s25 = ssub.s32 %s19, 2
      %s26 = sadd.s32 %s19, 1
      %s27 = ssub.s32 %s19, %s26
      %p28 = scmp.eq.s32.totalorder %s27, 0
      %s30 = sadd.s32 %s29, 1
      %s31 = scalar_select %p28, %s29, %s30
      %p34 = pneg %p28
      %p35 = scmp.eq.s32.totalorder %s19, 1
      %p36 = por %p34, %p35
      %p37 = scmp.ne.s32.totalorder %s29, %s32
      %p38 = scmp.eq.s32.totalorder %s19, 0
      %p39 = por %p37, %p38
      %p40 = scmp.ne.s32.totalorder %s29, %s32
      %p41 = scmp.eq.s32.totalorder %s24, 1
      %p42 = por %p40, %p41
      %p43 = scmp.ne.s32.totalorder %s32, %s33
      %p44 = scmp.eq.s32.totalorder %s24, 0
      %p45 = por %p43, %p44
      %p46 = scmp.ne.s32.totalorder %s32, %s33
      %p47 = scmp.eq.s32.totalorder %s25, 1
      %p48 = por %p46, %p47
      %p50 = scmp.ne.s32.totalorder %s33, %s49
      %p51 = scmp.eq.s32.totalorder %s25, 0
      %p52 = por %p50, %p51
      %s54 = sadd.s32 %s53, 1
      %p57 = scmp.eq.s32.totalorder %s19, 1
      %p58 = scmp.ne.s32.totalorder %s53, %s55
      %p59 = scmp.eq.s32.totalorder %s19, 0
      %p60 = por %p58, %p59
      %p61 = scmp.ne.s32.totalorder %s53, %s55
      %p62 = scmp.eq.s32.totalorder %s24, 1
      %p63 = por %p61, %p62
      %p64 = scmp.ne.s32.totalorder %s55, %s56
      %p65 = scmp.eq.s32.totalorder %s24, 0
      %p66 = por %p64, %p65
      %p67 = scmp.ne.s32.totalorder %s55, %s56
      %p68 = scmp.eq.s32.totalorder %s25, 1
      %p69 = por %p67, %p68
      %p71 = scmp.ne.s32.totalorder %s56, %s70
      %p72 = scmp.eq.s32.totalorder %s25, 0
      %p73 = por %p71, %p72
      %s75 = sadd.s32 %s74, 1
      %p78 = scmp.eq.s32.totalorder %s19, 1
      %p79 = scmp.ne.s32.totalorder %s74, %s76
      %p80 = scmp.eq.s32.totalorder %s19, 0
      %p81 = por %p79, %p80
      %p82 = scmp.ne.s32.totalorder %s74, %s76
      %p83 = scmp.eq.s32.totalorder %s24, 1
      %p84 = por %p82, %p83
      %p85 = scmp.ne.s32.totalorder %s76, %s77
      %p86 = scmp.eq.s32.totalorder %s24, 0
      %p87 = por %p85, %p86
      %p88 = scmp.ne.s32.totalorder %s76, %s77
      %p89 = scmp.eq.s32.totalorder %s25, 1
      %p90 = por %p88, %p89
      %p92 = scmp.ne.s32.totalorder %s77, %s91
      %p93 = scmp.eq.s32.totalorder %s25, 0
      %p94 = por %p92, %p93
      %s96 = sadd.s32 %s95, 1
      %p99 = scmp.eq.s32.totalorder %s19, 1
      %p100 = scmp.ne.s32.totalorder %s95, %s97
      %p101 = scmp.eq.s32.totalorder %s19, 0
      %p102 = por %p100, %p101
      %p103 = scmp.ne.s32.totalorder %s95, %s97
      %p104 = scmp.eq.s32.totalorder %s24, 1
      %p105 = por %p103, %p104
      %p106 = scmp.ne.s32.totalorder %s97, %s98
      %p107 = scmp.eq.s32.totalorder %s24, 0
      %p108 = por %p106, %p107
      %p109 = scmp.ne.s32.totalorder %s97, %s98
      %p110 = scmp.eq.s32.totalorder %s25, 1
      %p111 = por %p109, %p110
      %p113 = scmp.ne.s32.totalorder %s98, %s112
      %p114 = scmp.eq.s32.totalorder %s25, 0
      %p115 = por %p113, %p114
      %s117 = sadd.s32 %s116, 1
      %p120 = scmp.eq.s32.totalorder %s19, 1
      %p121 = scmp.ne.s32.totalorder %s116, %s118
      %p122 = scmp.eq.s32.totalorder %s19, 0
      %p123 = por %p121, %p122
      %p124 = scmp.ne.s32.totalorder %s116, %s118
      %p125 = scmp.eq.s32.totalorder %s24, 1
      %p126 = por %p124, %p125
      %p127 = scmp.ne.s32.totalorder %s118, %s119
      %p128 = scmp.eq.s32.totalorder %s24, 0
      %p129 = por %p127, %p128
      %p130 = scmp.ne.s32.totalorder %s118, %s119
      %p131 = scmp.eq.s32.totalorder %s25, 1
      %p132 = por %p130, %p131
      %p134 = scmp.ne.s32.totalorder %s119, %s133
      %p135 = scmp.eq.s32.totalorder %s25, 0
      %p136 = por %p134, %p135
      %s137 = ssub.s32 %s19, %s26
      %p138 = scmp.eq.s32.totalorder %s137, 0
      %s140 = sadd.s32 %s139, 1
      %s141 = scalar_select %p138, %s139, %s140
      %p144 = pneg %p138
      %p145 = scmp.eq.s32.totalorder %s19, 1
      %p146 = por %p144, %p145
      %p147 = scmp.ne.s32.totalorder %s139, %s142
      %p148 = scmp.eq.s32.totalorder %s19, 0
      %p149 = por %p147, %p148
      %p150 = scmp.ne.s32.totalorder %s139, %s142
      %p151 = scmp.eq.s32.totalorder %s24, 1
      %p152 = por %p150, %p151
      %p153 = scmp.ne.s32.totalorder %s142, %s143
      %p154 = scmp.eq.s32.totalorder %s24, 0
      %p155 = por %p153, %p154
      %p156 = scmp.ne.s32.totalorder %s142, %s143
      %p157 = scmp.eq.s32.totalorder %s25, 1
      %p158 = por %p156, %p157
      %p160 = scmp.ne.s32.totalorder %s143, %s159
      %p161 = scmp.eq.s32.totalorder %s25, 0
      %p162 = por %p160, %p161
      %p163 = scmp.le.s32.totalorder 1, %s19
      %p164 = scmp.lt.s32.totalorder %s19, 3
      %p165 = pnand %p163, %p164
      %p166 = pneg %p165
      // Predicated region
      $region9: #{tpu_custom_call.1} parent=5 // pred_check
        _
      $region10: #{tpu_custom_call.1} parent=5 // pred_check_branch
        %168 = sbr.rel (%p165) target = $region12
      $region11: #{tpu_custom_call.1} parent=5 // pred_region
        %s169 = ssub.s32 %s19, 1
        // Predicated region
        $region13: #{tpu_custom_call.1} parent=11 // pred_check
          %p170 = pneg %p66
        $region14: #{tpu_custom_call.1} parent=11 // pred_check_branch
          %172 = sbr.rel (%p170) target = $region16
        $region15: #{tpu_custom_call.1} parent=11 // pred_region
          %s174 = ssub.s32 16384, 16384
          %175 = vsyncadd [#allocation7], %s174
          %s176 = sshll.u32 [#allocation6], 4
          %s177 = int_to_ptr.vmem [resolvable:$true] %s176
          %182 = dma.hbm_to_vmem [thread:$0]  %s1, 16384, %s177, [#allocation7], 128, 128, 8
        $region16: #{tpu_custom_call.1} parent=11 // pred_fallthru
          _
        // Predicated region
        $region17: #{tpu_custom_call.1} parent=11 // pred_check
          %p183 = pneg %p87
        $region18: #{tpu_custom_call.1} parent=11 // pred_check_branch
          %185 = sbr.rel (%p183) target = $region20
        $region19: #{tpu_custom_call.1} parent=11 // pred_region
          _
        $region20: #{tpu_custom_call.1} parent=11 // pred_fallthru
          _
        // Predicated region
        $region21: #{tpu_custom_call.1} parent=11 // pred_check
          %p186 = pneg %p108
        $region22: #{tpu_custom_call.1} parent=11 // pred_check_branch
          %188 = sbr.rel (%p186) target = $region24
        $region23: #{tpu_custom_call.1} parent=11 // pred_region
          %s190 = ssub.s32 2048, 2048
          %191 = vsyncadd [#allocation7], %s190
          %s192 = sshll.u32 [#allocation8], 4
          %s193 = int_to_ptr.vmem [resolvable:$true] %s192
          %198 = dma.hbm_to_vmem [thread:$0]  %s3, 2048, %s193, [#allocation7], 128, 128, 8
        $region24: #{tpu_custom_call.1} parent=11 // pred_fallthru
          _
        // Predicated region
        $region25: #{tpu_custom_call.1} parent=11 // pred_check
          %p199 = pneg %p129
        $region26: #{tpu_custom_call.1} parent=11 // pred_check_branch
          %201 = sbr.rel (%p199) target = $region28
        $region27: #{tpu_custom_call.1} parent=11 // pred_region
          %s203 = ssub.s32 26624, 26624
          %204 = vsyncadd [#allocation10], %s203
          %s205 = sshll.u32 [#allocation9], 4
          %s206 = int_to_ptr.vmem [resolvable:$true] %s205
          %211 = dma.hbm_to_vmem [thread:$0]  %s4, 26624, %s206, [#allocation10], 128, 128, 8
        $region28: #{tpu_custom_call.1} parent=11 // pred_fallthru
          _
      $region12: #{tpu_custom_call.1} parent=5 // pred_fallthru
        _
      %p212 = scmp.lt.s32.totalorder %s19, 2
      // Predicated region
      $region29: #{tpu_custom_call.1} parent=5 // pred_check
        %p213 = pneg %p212
      $region30: #{tpu_custom_call.1} parent=5 // pred_check_branch
        %215 = sbr.rel (%p213) target = $region32
      $region31: #{tpu_custom_call.1} parent=5 // pred_region
        // Predicated region
        $region33: #{tpu_custom_call.1} parent=31 // pred_check
          %p216 = pneg %p39
        $region34: #{tpu_custom_call.1} parent=31 // pred_check_branch
          %218 = sbr.rel (%p216) target = $region36
        $region35: #{tpu_custom_call.1} parent=31 // pred_region
          #allocation13 [shape = 'u32[6]{0}', space=smem, size = 0x18, scoped, tag = 'DMA stride descriptor']
          %s219 = sand.u32 %s29, 1
          %s220 = scalar_lea.sflag [#allocation4], %s219
          %s221 = sand.u32 %s29, 1
          %s222 = smul.addr %s221, 256
          %s223 = scalar_lea.vmem [#allocation3], %s222
          %s224 = smul.u32 4, %s19
          %s226 = ssub.s32 4096, 4096
          %227 = vsyncadd %s220, %s226
          %s228 = smul.addr %s224, 2
          %s229 = smul.addr %s228, 128
          %s230 = scalar_lea.hbm %s0, %s229
          %s232 = sshll.u32 1, 14
          %s233 = sxor.u32 4294967295, %s232
          %s235 = sld [smem:[#allocation0]]
          %s236 = sadd.s32 2, %s235
          %s238 = sshll.u32 7, 26
          %s239 = sxor.u32 4294967295, %s238
          %s240 = sand.u32 0, %s239
          %s241 = sshll.u32 %s236, 26
          %s242 = sor.u32 %s240, %s241
          %s243 = sshll.u32 %s223, 4
          %s244 = int_to_ptr.vmem [resolvable:$true] %s243
          %250 = sst [smem:[#allocation13]] 2048
          %s251 = scalar_lea.smem [#allocation13], 1
          %252 = sst [smem:[%s251]] 1024
          %s253 = scalar_lea.smem [#allocation13], 2
          %254 = sst [smem:[%s253]] 4
          %s255 = scalar_lea.smem [#allocation13], 3
          %256 = sst [smem:[%s255]] 256
          %s257 = scalar_lea.smem [#allocation13], 4
          %258 = sst [smem:[%s257]] 256
          %s259 = scalar_lea.smem [#allocation13], 5
          %260 = sst [smem:[%s259]] 16
          %262 = dma.general %s230, 4096, %s244, %s220, 131072, [#allocation13], %s242, 0
        $region36: #{tpu_custom_call.1} parent=31 // pred_fallthru
          _
      $region32: #{tpu_custom_call.1} parent=5 // pred_fallthru
        _
      %p263 = scmp.le.s32.totalorder 1, %s19
      %p264 = scmp.lt.s32.totalorder %s19, 3
      %p265 = pnand %p263, %p264
      %p266 = pneg %p265
      // Predicated region
      $region37: #{tpu_custom_call.1} parent=5 // pred_check
        _
      $region38: #{tpu_custom_call.1} parent=5 // pred_check_branch
        %268 = sbr.rel (%p265) target = $region40
      $region39: #{tpu_custom_call.1} parent=5 // pred_region
        %s269 = ssub.s32 %s19, 1
        %s270 = sand.u32 %s32, 1
        %s271 = scalar_lea.sflag [#allocation4], %s270
        %s272 = sand.u32 %s32, 1
        %s273 = smul.addr %s272, 256
        %s274 = scalar_lea.vmem [#allocation3], %s273
        // Predicated region
        $region41: #{tpu_custom_call.1} parent=39 // pred_check
          %p275 = pneg %p45
        $region42: #{tpu_custom_call.1} parent=39 // pred_check_branch
          %277 = sbr.rel (%p275) target = $region44
        $region43: #{tpu_custom_call.1} parent=39 // pred_region
          %278 = dma.done %s271, 4096
        $region44: #{tpu_custom_call.1} parent=39 // pred_fallthru
          _
        // Predicated region
        $region45: #{tpu_custom_call.1} parent=39 // pred_check
          %p279 = pneg %p66
        $region46: #{tpu_custom_call.1} parent=39 // pred_check_branch
          %281 = sbr.rel (%p279) target = $region48
        $region47: #{tpu_custom_call.1} parent=39 // pred_region
          %282 = dma.done [#allocation7], 16384
        $region48: #{tpu_custom_call.1} parent=39 // pred_fallthru
          _
        // Predicated region
        $region49: #{tpu_custom_call.1} parent=39 // pred_check
          %p283 = pneg %p108
        $region50: #{tpu_custom_call.1} parent=39 // pred_check_branch
          %285 = sbr.rel (%p283) target = $region52
        $region51: #{tpu_custom_call.1} parent=39 // pred_region
          %286 = dma.done [#allocation7], 2048
        $region52: #{tpu_custom_call.1} parent=39 // pred_fallthru
          _
        // Predicated region
        $region53: #{tpu_custom_call.1} parent=39 // pred_check
          %p287 = pneg %p129
        $region54: #{tpu_custom_call.1} parent=39 // pred_check_branch
          %289 = sbr.rel (%p287) target = $region56
        $region55: #{tpu_custom_call.1} parent=39 // pred_region
          %290 = dma.done [#allocation10], 26624
        $region56: #{tpu_custom_call.1} parent=39 // pred_fallthru
          _
        %s291 = sand.u32 %s32, 1
        %s292 = scalar_lea.sflag [#allocation4], %s291
        %s293 = sand.u32 %s32, 1
        %s294 = smul.addr %s293, 256
        %s295 = scalar_lea.vmem [#allocation3], %s294
        %p296 = pneg %p45
        %p297 = pneg %p42
        %p298 = pneg %p66
        %p299 = pneg %p63
        %p300 = pneg %p87
        %p301 = pneg %p84
        %p302 = pneg %p108
        %p303 = pneg %p105
        %p304 = pneg %p129
        %p305 = pneg %p126
        %p306 = pneg %p155
        %p307 = pneg %p152
        %s308 = sand.u32 %s142, 1
        %s309 = scalar_lea.sflag [#allocation5], %s308
        %s310 = sand.u32 %s142, 1
        %s311 = smul.addr %s310, 32
        %s312 = scalar_lea.vmem [#allocation11], %s311
        %s313 = smul.u32 4, %s24
        %s314 = smul.u32 4, %s24
        %v315 = vld [vmem:[%s274] sm:$0xff]
        %v316 = vld [vmem:[%s274 + $0x8] sm:$0xff]
        %v317 = vld [vmem:[%s274 + $0x10] sm:$0xff]
        %v318 = vld [vmem:[%s274 + $0x18] sm:$0xff]
        %v319 = vld [vmem:[%s274 + $0x20] sm:$0xff]
        %v320 = vld [vmem:[%s274 + $0x28] sm:$0xff]
        %v321 = vld [vmem:[%s274 + $0x30] sm:$0xff]
        %v322 = vld [vmem:[%s274 + $0x38] sm:$0xff]
        %v323 = vld [vmem:[#allocation6] sm:$0xff]
        %v324 = vld [vmem:[#allocation6 + $0x8] sm:$0xff]
        %v325 = vld [vmem:[#allocation6 + $0x10] sm:$0xff]
        %v326 = vld [vmem:[#allocation6 + $0x18] sm:$0xff]
        %v327 = vld [vmem:[#allocation6 + $0x20] sm:$0xff]
        %v328 = vld [vmem:[#allocation6 + $0x28] sm:$0xff]
        %v329 = vld [vmem:[#allocation6 + $0x30] sm:$0xff]
        %v330 = vld [vmem:[#allocation6 + $0x38] sm:$0xff]
        %v331 = vld [vmem:[#allocation6 + $0x40] sm:$0xff]
        %v332 = vld [vmem:[#allocation6 + $0x48] sm:$0xff]
        %v333 = vld [vmem:[#allocation6 + $0x50] sm:$0xff]
        %v334 = vld [vmem:[#allocation6 + $0x58] sm:$0xff]
        %v335 = vld [vmem:[#allocation6 + $0x60] sm:$0xff]
        %v336 = vld [vmem:[#allocation6 + $0x68] sm:$0xff]
        %v337 = vld [vmem:[#allocation6 + $0x70] sm:$0xff]
        %v338 = vld [vmem:[#allocation6 + $0x78] sm:$0xff]
        %v339 = vld [vmem:[#allocation6 + $0x80] sm:$0xff]
        %v340 = vld [vmem:[#allocation6 + $0x88] sm:$0xff]
        %v341 = vld [vmem:[#allocation6 + $0x90] sm:$0xff]
        %v342 = vld [vmem:[#allocation6 + $0x98] sm:$0xff]
        %v343 = vld [vmem:[#allocation6 + $0xa0] sm:$0xff]
        %v344 = vld [vmem:[#allocation6 + $0xa8] sm:$0xff]
        %v345 = vld [vmem:[#allocation6 + $0xb0] sm:$0xff]
        %v346 = vld [vmem:[#allocation6 + $0xb8] sm:$0xff]
        %v347 = vld [vmem:[#allocation6 + $0xc0] sm:$0xff]
        %v348 = vld [vmem:[#allocation6 + $0xc8] sm:$0xff]
        %v349 = vld [vmem:[#allocation6 + $0xd0] sm:$0xff]
        %v350 = vld [vmem:[#allocation6 + $0xd8] sm:$0xff]
        %v351 = vld [vmem:[#allocation6 + $0xe0] sm:$0xff]
        %v352 = vld [vmem:[#allocation6 + $0xe8] sm:$0xff]
        %v353 = vld [vmem:[#allocation6 + $0xf0] sm:$0xff]
        %v354 = vld [vmem:[#allocation6 + $0xf8] sm:$0xff]
        %v355 = vld [vmem:[%s2] sm:$0x1]
        %v357 = vlaneseq
        %v358 = vshrl.u32 %v357, 7
        %v359 = vsub.s32 0, %v358
        %v360 = vrot.slane %v355, %v359
        %362 = vmatprep.subr.mxu0 0.0
        %363 = vmatpush1.msra.mxu0 %v338
        %364 = vmatprep.subr.mxu0 0.0
        %365 = vmatpush1.msra.mxu0 %v337
        %366 = vmatprep.subr.mxu0 0.0
        %367 = vmatpush1.msra.mxu0 %v336
        %368 = vmatprep.subr.mxu0 0.0
        %369 = vmatpush1.msra.mxu0 %v335
        %370 = vmatprep.subr.mxu0 0.0
        %371 = vmatpush1.msra.mxu0 %v334
        %372 = vmatprep.subr.mxu0 0.0
        %373 = vmatpush1.msra.mxu0 %v333
        %374 = vmatprep.subr.mxu0 0.0
        %375 = vmatpush1.msra.mxu0 %v332
        %376 = vmatprep.subr.mxu0 0.0
        %377 = vmatpush1.msra.mxu0 %v331
        %378 = vmatprep.subr.mxu0 0.0
        %379 = vmatpush1.msra.mxu0 %v330
        %380 = vmatprep.subr.mxu0 0.0
        %381 = vmatpush1.msra.mxu0 %v329
        %382 = vmatprep.subr.mxu0 0.0
        %383 = vmatpush1.msra.mxu0 %v328
        %384 = vmatprep.subr.mxu0 0.0
        %385 = vmatpush1.msra.mxu0 %v327
        %386 = vmatprep.subr.mxu0 0.0
        %387 = vmatpush1.msra.mxu0 %v326
        %388 = vmatprep.subr.mxu0 0.0
        %389 = vmatpush1.msra.mxu0 %v325
        %390 = vmatprep.subr.mxu0 0.0
        %391 = vmatpush1.msra.mxu0 %v324
        %392 = vmatprep.subr.mxu0 0.0
        %393 = vmatpush1.msra.mxu0 %v323
        %394 = vmatprep.subr.mxu0 0.0
        %395 = vmatpush2.msra.mxu0 %v354
        %396 = vmatprep.subr.mxu0 0.0
        %397 = vmatpush2.msra.mxu0 %v353
        %398 = vmatprep.subr.mxu0 0.0
        %399 = vmatpush2.msra.mxu0 %v352
        %400 = vmatprep.subr.mxu0 0.0
        %401 = vmatpush2.msra.mxu0 %v351
        %402 = vmatprep.subr.mxu0 0.0
        %403 = vmatpush2.msra.mxu0 %v350
        %404 = vmatprep.subr.mxu0 0.0
        %405 = vmatpush2.msra.mxu0 %v349
        %406 = vmatprep.subr.mxu0 0.0
        %407 = vmatpush2.msra.mxu0 %v348
        %408 = vmatprep.subr.mxu0 0.0
        %409 = vmatpush2.msra.mxu0 %v347
        %410 = vmatprep.subr.mxu0 0.0
        %411 = vmatpush2.msra.mxu0 %v346
        %412 = vmatprep.subr.mxu0 0.0
        %413 = vmatpush2.msra.mxu0 %v345
        %414 = vmatprep.subr.mxu0 0.0
        %415 = vmatpush2.msra.mxu0 %v344
        %416 = vmatprep.subr.mxu0 0.0
        %417 = vmatpush2.msra.mxu0 %v343
        %418 = vmatprep.subr.mxu0 0.0
        %419 = vmatpush2.msra.mxu0 %v342
        %420 = vmatprep.subr.mxu0 0.0
        %421 = vmatpush2.msra.mxu0 %v341
        %422 = vmatprep.subr.mxu0 0.0
        %423 = vmatpush2.msra.mxu0 %v340
        %424 = vmatprep.subr.mxu0 0.0
        %425 = vmatpush2.msra.mxu0 %v339
        %426 = vmatprep.mubr.f32.mxu0 %v316
        %427 = vmatmul.mubr.f32.gmra.mxu0 %v315
        %v428 = vpop.f32.mrf.mxu0
        %v429 = vadd.f32 %v360, %v428
        %v430 = vpop.f32.mrf.mxu0
        %431 = vmatprep.mubr.f32.mxu0 %v318
        %432 = vmatmul.mubr.f32.gmra.mxu0 %v317
        %v433 = vpop.f32.mrf.mxu0
        %v434 = vadd.f32 %v360, %v433
        %v435 = vpop.f32.mrf.mxu0
        %436 = vmatprep.mubr.f32.mxu0 %v320
        %437 = vmatmul.mubr.f32.gmra.mxu0 %v319
        %v438 = vpop.f32.mrf.mxu0
        %v439 = vadd.f32 %v360, %v438
        %v440 = vpop.f32.mrf.mxu0
        %441 = vmatprep.mubr.f32.mxu0 %v322
        %442 = vmatmul.mubr.f32.gmra.mxu0 %v321
        %v443 = vpop.f32.mrf.mxu0
        %v444 = vadd.f32 %v360, %v443
        %v445 = vpop.f32.mrf.mxu0
        %446 = vdwg.mxu0
        %s447 = scalar_lea.vmem %s274, 64 [#allocation3]
        %v448 = vld [vmem:[%s447] sm:$0xff]
        %v449 = vld [vmem:[%s447 + $0x8] sm:$0xff]
        %v450 = vld [vmem:[%s447 + $0x10] sm:$0xff]
        %v451 = vld [vmem:[%s447 + $0x18] sm:$0xff]
        %v452 = vld [vmem:[%s447 + $0x20] sm:$0xff]
        %v453 = vld [vmem:[%s447 + $0x28] sm:$0xff]
        %v454 = vld [vmem:[%s447 + $0x30] sm:$0xff]
        %v455 = vld [vmem:[%s447 + $0x38] sm:$0xff]
        %s456 = scalar_lea.vmem [#allocation6], 256
        %v457 = vld [vmem:[%s456] sm:$0xff]
        %v458 = vld [vmem:[%s456 + $0x8] sm:$0xff]
        %v459 = vld [vmem:[%s456 + $0x10] sm:$0xff]
        %v460 = vld [vmem:[%s456 + $0x18] sm:$0xff]
        %v461 = vld [vmem:[%s456 + $0x20] sm:$0xff]
        %v462 = vld [vmem:[%s456 + $0x28] sm:$0xff]
        %v463 = vld [vmem:[%s456 + $0x30] sm:$0xff]
        %v464 = vld [vmem:[%s456 + $0x38] sm:$0xff]
        %v465 = vld [vmem:[%s456 + $0x40] sm:$0xff]
        %v466 = vld [vmem:[%s456 + $0x48] sm:$0xff]
        %v467 = vld [vmem:[%s456 + $0x50] sm:$0xff]
        %v468 = vld [vmem:[%s456 + $0x58] sm:$0xff]
        %v469 = vld [vmem:[%s456 + $0x60] sm:$0xff]
        %v470 = vld [vmem:[%s456 + $0x68] sm:$0xff]
        %v471 = vld [vmem:[%s456 + $0x70] sm:$0xff]
        %v472 = vld [vmem:[%s456 + $0x78] sm:$0xff]
        %v473 = vld [vmem:[%s456 + $0x80] sm:$0xff]
        %v474 = vld [vmem:[%s456 + $0x88] sm:$0xff]
        %v475 = vld [vmem:[%s456 + $0x90] sm:$0xff]
        %v476 = vld [vmem:[%s456 + $0x98] sm:$0xff]
        %v477 = vld [vmem:[%s456 + $0xa0] sm:$0xff]
        %v478 = vld [vmem:[%s456 + $0xa8] sm:$0xff]
        %v479 = vld [vmem:[%s456 + $0xb0] sm:$0xff]
        %v480 = vld [vmem:[%s456 + $0xb8] sm:$0xff]
        %v481 = vld [vmem:[%s456 + $0xc0] sm:$0xff]
        %v482 = vld [vmem:[%s456 + $0xc8] sm:$0xff]
        %v483 = vld [vmem:[%s456 + $0xd0] sm:$0xff]
        %v484 = vld [vmem:[%s456 + $0xd8] sm:$0xff]
        %v485 = vld [vmem:[%s456 + $0xe0] sm:$0xff]
        %v486 = vld [vmem:[%s456 + $0xe8] sm:$0xff]
        %v487 = vld [vmem:[%s456 + $0xf0] sm:$0xff]
        %v488 = vld [vmem:[%s456 + $0xf8] sm:$0xff]
        %489 = vmatprep.subr.mxu0 0.0
        %490 = vmatpush1.msra.mxu0 %v472
        %491 = vmatprep.subr.mxu0 0.0
        %492 = vmatpush1.msra.mxu0 %v471
        %493 = vmatprep.subr.mxu0 0.0
        %494 = vmatpush1.msra.mxu0 %v470
        %495 = vmatprep.subr.mxu0 0.0
        %496 = vmatpush1.msra.mxu0 %v469
        %497 = vmatprep.subr.mxu0 0.0
        %498 = vmatpush1.msra.mxu0 %v468
        %499 = vmatprep.subr.mxu0 0.0
        %500 = vmatpush1.msra.mxu0 %v467
        %501 = vmatprep.subr.mxu0 0.0
        %502 = vmatpush1.msra.mxu0 %v466
        %503 = vmatprep.subr.mxu0 0.0
        %504 = vmatpush1.msra.mxu0 %v465
        %505 = vmatprep.subr.mxu0 0.0
        %506 = vmatpush1.msra.mxu0 %v464
        %507 = vmatprep.subr.mxu0 0.0
        %508 = vmatpush1.msra.mxu0 %v463
        %509 = vmatprep.subr.mxu0 0.0
        %510 = vmatpush1.msra.mxu0 %v462
        %511 = vmatprep.subr.mxu0 0.0
        %512 = vmatpush1.msra.mxu0 %v461
        %513 = vmatprep.subr.mxu0 0.0
        %514 = vmatpush1.msra.mxu0 %v460
        %515 = vmatprep.subr.mxu0 0.0
        %516 = vmatpush1.msra.mxu0 %v459
        %517 = vmatprep.subr.mxu0 0.0
        %518 = vmatpush1.msra.mxu0 %v458
        %519 = vmatprep.subr.mxu0 0.0
        %520 = vmatpush1.msra.mxu0 %v457
        %521 = vmatprep.subr.mxu0 0.0
        %522 = vmatpush2.msra.mxu0 %v488
        %523 = vmatprep.subr.mxu0 0.0
        %524 = vmatpush2.msra.mxu0 %v487
        %525 = vmatprep.subr.mxu0 0.0
        %526 = vmatpush2.msra.mxu0 %v486
        %527 = vmatprep.subr.mxu0 0.0
        %528 = vmatpush2.msra.mxu0 %v485
        %529 = vmatprep.subr.mxu0 0.0
        %530 = vmatpush2.msra.mxu0 %v484
        %531 = vmatprep.subr.mxu0 0.0
        %532 = vmatpush2.msra.mxu0 %v483
        %533 = vmatprep.subr.mxu0 0.0
        %534 = vmatpush2.msra.mxu0 %v482
        %535 = vmatprep.subr.mxu0 0.0
        %536 = vmatpush2.msra.mxu0 %v481
        %537 = vmatprep.subr.mxu0 0.0
        %538 = vmatpush2.msra.mxu0 %v480
        %539 = vmatprep.subr.mxu0 0.0
        %540 = vmatpush2.msra.mxu0 %v479
        %541 = vmatprep.subr.mxu0 0.0
        %542 = vmatpush2.msra.mxu0 %v478
        %543 = vmatprep.subr.mxu0 0.0
        %544 = vmatpush2.msra.mxu0 %v477
        %545 = vmatprep.subr.mxu0 0.0
        %546 = vmatpush2.msra.mxu0 %v476
        %547 = vmatprep.subr.mxu0 0.0
        %548 = vmatpush2.msra.mxu0 %v475
        %549 = vmatprep.subr.mxu0 0.0
        %550 = vmatpush2.msra.mxu0 %v474
        %551 = vmatprep.subr.mxu0 0.0
        %552 = vmatpush2.msra.mxu0 %v473
        %553 = vmatprep.mubr.f32.mxu0 %v449
        %554 = vmatmul.mubr.f32.gmra.mxu0 %v448
        %v555 = vpop.f32.mrf.mxu0
        %v556 = vadd.f32 0.0, %v555
        %v557 = vpop.f32.mrf.mxu0
        %558 = vmatprep.mubr.f32.mxu0 %v451
        %559 = vmatmul.mubr.f32.gmra.mxu0 %v450
        %v560 = vpop.f32.mrf.mxu0
        %v561 = vadd.f32 0.0, %v560
        %v562 = vpop.f32.mrf.mxu0
        %563 = vmatprep.mubr.f32.mxu0 %v453
        %564 = vmatmul.mubr.f32.gmra.mxu0 %v452
        %v565 = vpop.f32.mrf.mxu0
        %v566 = vadd.f32 0.0, %v565
        %v567 = vpop.f32.mrf.mxu0
        %568 = vmatprep.mubr.f32.mxu0 %v455
        %569 = vmatmul.mubr.f32.gmra.mxu0 %v454
        %v570 = vpop.f32.mrf.mxu0
        %v571 = vadd.f32 0.0, %v570
        %v572 = vpop.f32.mrf.mxu0
        %573 = vdwg.mxu0
        %v574 = vadd.f32 %v429, %v556
        %v575 = vadd.f32 %v434, %v561
        %v576 = vadd.f32 %v439, %v566
        %v577 = vadd.f32 %v444, %v571
        %s578 = scalar_lea.vmem %s274, 128 [#allocation3]
        %v579 = vld [vmem:[%s578] sm:$0xff]
        %v580 = vld [vmem:[%s578 + $0x8] sm:$0xff]
        %v581 = vld [vmem:[%s578 + $0x10] sm:$0xff]
        %v582 = vld [vmem:[%s578 + $0x18] sm:$0xff]
        %v583 = vld [vmem:[%s578 + $0x20] sm:$0xff]
        %v584 = vld [vmem:[%s578 + $0x28] sm:$0xff]
        %v585 = vld [vmem:[%s578 + $0x30] sm:$0xff]
        %v586 = vld [vmem:[%s578 + $0x38] sm:$0xff]
        %s587 = scalar_lea.vmem [#allocation6], 512
        %v588 = vld [vmem:[%s587] sm:$0xff]
        %v589 = vld [vmem:[%s587 + $0x8] sm:$0xff]
        %v590 = vld [vmem:[%s587 + $0x10] sm:$0xff]
        %v591 = vld [vmem:[%s587 + $0x18] sm:$0xff]
        %v592 = vld [vmem:[%s587 + $0x20] sm:$0xff]
        %v593 = vld [vmem:[%s587 + $0x28] sm:$0xff]
        %v594 = vld [vmem:[%s587 + $0x30] sm:$0xff]
        %v595 = vld [vmem:[%s587 + $0x38] sm:$0xff]
        %v596 = vld [vmem:[%s587 + $0x40] sm:$0xff]
        %v597 = vld [vmem:[%s587 + $0x48] sm:$0xff]
        %v598 = vld [vmem:[%s587 + $0x50] sm:$0xff]
        %v599 = vld [vmem:[%s587 + $0x58] sm:$0xff]
        %v600 = vld [vmem:[%s587 + $0x60] sm:$0xff]
        %v601 = vld [vmem:[%s587 + $0x68] sm:$0xff]
        %v602 = vld [vmem:[%s587 + $0x70] sm:$0xff]
        %v603 = vld [vmem:[%s587 + $0x78] sm:$0xff]
        %v604 = vld [vmem:[%s587 + $0x80] sm:$0xff]
        %v605 = vld [vmem:[%s587 + $0x88] sm:$0xff]
        %v606 = vld [vmem:[%s587 + $0x90] sm:$0xff]
        %v607 = vld [vmem:[%s587 + $0x98] sm:$0xff]
        %v608 = vld [vmem:[%s587 + $0xa0] sm:$0xff]
        %v609 = vld [vmem:[%s587 + $0xa8] sm:$0xff]
        %v610 = vld [vmem:[%s587 + $0xb0] sm:$0xff]
        %v611 = vld [vmem:[%s587 + $0xb8] sm:$0xff]
        %v612 = vld [vmem:[%s587 + $0xc0] sm:$0xff]
        %v613 = vld [vmem:[%s587 + $0xc8] sm:$0xff]
        %v614 = vld [vmem:[%s587 + $0xd0] sm:$0xff]
        %v615 = vld [vmem:[%s587 + $0xd8] sm:$0xff]
        %v616 = vld [vmem:[%s587 + $0xe0] sm:$0xff]
        %v617 = vld [vmem:[%s587 + $0xe8] sm:$0xff]
        %v618 = vld [vmem:[%s587 + $0xf0] sm:$0xff]
        %v619 = vld [vmem:[%s587 + $0xf8] sm:$0xff]
        %620 = vmatprep.subr.mxu0 0.0
        %621 = vmatpush1.msra.mxu0 %v603
        %622 = vmatprep.subr.mxu0 0.0
        %623 = vmatpush1.msra.mxu0 %v602
        %624 = vmatprep.subr.mxu0 0.0
        %625 = vmatpush1.msra.mxu0 %v601
        %626 = vmatprep.subr.mxu0 0.0
        %627 = vmatpush1.msra.mxu0 %v600
        %628 = vmatprep.subr.mxu0 0.0
        %629 = vmatpush1.msra.mxu0 %v599
        %630 = vmatprep.subr.mxu0 0.0
        %631 = vmatpush1.msra.mxu0 %v598
        %632 = vmatprep.subr.mxu0 0.0
        %633 = vmatpush1.msra.mxu0 %v597
        %634 = vmatprep.subr.mxu0 0.0
        %635 = vmatpush1.msra.mxu0 %v596
        %636 = vmatprep.subr.mxu0 0.0
        %637 = vmatpush1.msra.mxu0 %v595
        %638 = vmatprep.subr.mxu0 0.0
        %639 = vmatpush1.msra.mxu0 %v594
        %640 = vmatprep.subr.mxu0 0.0
        %641 = vmatpush1.msra.mxu0 %v593
        %642 = vmatprep.subr.mxu0 0.0
        %643 = vmatpush1.msra.mxu0 %v592
        %644 = vmatprep.subr.mxu0 0.0
        %645 = vmatpush1.msra.mxu0 %v591
        %646 = vmatprep.subr.mxu0 0.0
        %647 = vmatpush1.msra.mxu0 %v590
        %648 = vmatprep.subr.mxu0 0.0
        %649 = vmatpush1.msra.mxu0 %v589
        %650 = vmatprep.subr.mxu0 0.0
        %651 = vmatpush1.msra.mxu0 %v588
        %652 = vmatprep.subr.mxu0 0.0
        %653 = vmatpush2.msra.mxu0 %v619
        %654 = vmatprep.subr.mxu0 0.0
        %655 = vmatpush2.msra.mxu0 %v618
        %656 = vmatprep.subr.mxu0 0.0
        %657 = vmatpush2.msra.mxu0 %v617
        %658 = vmatprep.subr.mxu0 0.0
        %659 = vmatpush2.msra.mxu0 %v616
        %660 = vmatprep.subr.mxu0 0.0
        %661 = vmatpush2.msra.mxu0 %v615
        %662 = vmatprep.subr.mxu0 0.0
        %663 = vmatpush2.msra.mxu0 %v614
        %664 = vmatprep.subr.mxu0 0.0
        %665 = vmatpush2.msra.mxu0 %v613
        %666 = vmatprep.subr.mxu0 0.0
        %667 = vmatpush2.msra.mxu0 %v612
        %668 = vmatprep.subr.mxu0 0.0
        %669 = vmatpush2.msra.mxu0 %v611
        %670 = vmatprep.subr.mxu0 0.0
        %671 = vmatpush2.msra.mxu0 %v610
        %672 = vmatprep.subr.mxu0 0.0
        %673 = vmatpush2.msra.mxu0 %v609
        %674 = vmatprep.subr.mxu0 0.0
        %675 = vmatpush2.msra.mxu0 %v608
        %676 = vmatprep.subr.mxu0 0.0
        %677 = vmatpush2.msra.mxu0 %v607
        %678 = vmatprep.subr.mxu0 0.0
        %679 = vmatpush2.msra.mxu0 %v606
        %680 = vmatprep.subr.mxu0 0.0
        %681 = vmatpush2.msra.mxu0 %v605
        %682 = vmatprep.subr.mxu0 0.0
        %683 = vmatpush2.msra.mxu0 %v604
        %684 = vmatprep.mubr.f32.mxu0 %v580
        %685 = vmatmul.mubr.f32.gmra.mxu0 %v579
        %v686 = vpop.f32.mrf.mxu0
        %v687 = vadd.f32 0.0, %v686
        %v688 = vpop.f32.mrf.mxu0
        %689 = vmatprep.mubr.f32.mxu0 %v582
        %690 = vmatmul.mubr.f32.gmra.mxu0 %v581
        %v691 = vpop.f32.mrf.mxu0
        %v692 = vadd.f32 0.0, %v691
        %v693 = vpop.f32.mrf.mxu0
        %694 = vmatprep.mubr.f32.mxu0 %v584
        %695 = vmatmul.mubr.f32.gmra.mxu0 %v583
        %v696 = vpop.f32.mrf.mxu0
        %v697 = vadd.f32 0.0, %v696
        %v698 = vpop.f32.mrf.mxu0
        %699 = vmatprep.mubr.f32.mxu0 %v586
        %700 = vmatmul.mubr.f32.gmra.mxu0 %v585
        %v701 = vpop.f32.mrf.mxu0
        %v702 = vadd.f32 0.0, %v701
        %v703 = vpop.f32.mrf.mxu0
        %704 = vdwg.mxu0
        %v705 = vadd.f32 %v574, %v687
        %v706 = vadd.f32 %v575, %v692
        %v707 = vadd.f32 %v576, %v697
        %v708 = vadd.f32 %v577, %v702
        %s709 = scalar_lea.vmem %s274, 192 [#allocation3]
        %v710 = vld [vmem:[%s709] sm:$0xff]
        %v711 = vld [vmem:[%s709 + $0x8] sm:$0xff]
        %v712 = vld [vmem:[%s709 + $0x10] sm:$0xff]
        %v713 = vld [vmem:[%s709 + $0x18] sm:$0xff]
        %v714 = vld [vmem:[%s709 + $0x20] sm:$0xff]
        %v715 = vld [vmem:[%s709 + $0x28] sm:$0xff]
        %v716 = vld [vmem:[%s709 + $0x30] sm:$0xff]
        %v717 = vld [vmem:[%s709 + $0x38] sm:$0xff]
        %s718 = scalar_lea.vmem [#allocation6], 768
        %v719 = vld [vmem:[%s718] sm:$0xff]
        %v720 = vld [vmem:[%s718 + $0x8] sm:$0xff]
        %v721 = vld [vmem:[%s718 + $0x10] sm:$0xff]
        %v722 = vld [vmem:[%s718 + $0x18] sm:$0xff]
        %v723 = vld [vmem:[%s718 + $0x20] sm:$0xff]
        %v724 = vld [vmem:[%s718 + $0x28] sm:$0xff]
        %v725 = vld [vmem:[%s718 + $0x30] sm:$0xff]
        %v726 = vld [vmem:[%s718 + $0x38] sm:$0xff]
        %v727 = vld [vmem:[%s718 + $0x40] sm:$0xff]
        %v728 = vld [vmem:[%s718 + $0x48] sm:$0xff]
        %v729 = vld [vmem:[%s718 + $0x50] sm:$0xff]
        %v730 = vld [vmem:[%s718 + $0x58] sm:$0xff]
        %v731 = vld [vmem:[%s718 + $0x60] sm:$0xff]
        %v732 = vld [vmem:[%s718 + $0x68] sm:$0xff]
        %v733 = vld [vmem:[%s718 + $0x70] sm:$0xff]
        %v734 = vld [vmem:[%s718 + $0x78] sm:$0xff]
        %v735 = vld [vmem:[%s718 + $0x80] sm:$0xff]
        %v736 = vld [vmem:[%s718 + $0x88] sm:$0xff]
        %v737 = vld [vmem:[%s718 + $0x90] sm:$0xff]
        %v738 = vld [vmem:[%s718 + $0x98] sm:$0xff]
        %v739 = vld [vmem:[%s718 + $0xa0] sm:$0xff]
        %v740 = vld [vmem:[%s718 + $0xa8] sm:$0xff]
        %v741 = vld [vmem:[%s718 + $0xb0] sm:$0xff]
        %v742 = vld [vmem:[%s718 + $0xb8] sm:$0xff]
        %v743 = vld [vmem:[%s718 + $0xc0] sm:$0xff]
        %v744 = vld [vmem:[%s718 + $0xc8] sm:$0xff]
        %v745 = vld [vmem:[%s718 + $0xd0] sm:$0xff]
        %v746 = vld [vmem:[%s718 + $0xd8] sm:$0xff]
        %v747 = vld [vmem:[%s718 + $0xe0] sm:$0xff]
        %v748 = vld [vmem:[%s718 + $0xe8] sm:$0xff]
        %v749 = vld [vmem:[%s718 + $0xf0] sm:$0xff]
        %v750 = vld [vmem:[%s718 + $0xf8] sm:$0xff]
        %751 = vmatprep.subr.mxu0 0.0
        %752 = vmatpush1.msra.mxu0 %v734
        %753 = vmatprep.subr.mxu0 0.0
        %754 = vmatpush1.msra.mxu0 %v733
        %755 = vmatprep.subr.mxu0 0.0
        %756 = vmatpush1.msra.mxu0 %v732
        %757 = vmatprep.subr.mxu0 0.0
        %758 = vmatpush1.msra.mxu0 %v731
        %759 = vmatprep.subr.mxu0 0.0
        %760 = vmatpush1.msra.mxu0 %v730
        %761 = vmatprep.subr.mxu0 0.0
        %762 = vmatpush1.msra.mxu0 %v729
        %763 = vmatprep.subr.mxu0 0.0
        %764 = vmatpush1.msra.mxu0 %v728
        %765 = vmatprep.subr.mxu0 0.0
        %766 = vmatpush1.msra.mxu0 %v727
        %767 = vmatprep.subr.mxu0 0.0
        %768 = vmatpush1.msra.mxu0 %v726
        %769 = vmatprep.subr.mxu0 0.0
        %770 = vmatpush1.msra.mxu0 %v725
        %771 = vmatprep.subr.mxu0 0.0
        %772 = vmatpush1.msra.mxu0 %v724
        %773 = vmatprep.subr.mxu0 0.0
        %774 = vmatpush1.msra.mxu0 %v723
        %775 = vmatprep.subr.mxu0 0.0
        %776 = vmatpush1.msra.mxu0 %v722
        %777 = vmatprep.subr.mxu0 0.0
        %778 = vmatpush1.msra.mxu0 %v721
        %779 = vmatprep.subr.mxu0 0.0
        %780 = vmatpush1.msra.mxu0 %v720
        %781 = vmatprep.subr.mxu0 0.0
        %782 = vmatpush1.msra.mxu0 %v719
        %783 = vmatprep.subr.mxu0 0.0
        %784 = vmatpush2.msra.mxu0 %v750
        %785 = vmatprep.subr.mxu0 0.0
        %786 = vmatpush2.msra.mxu0 %v749
        %787 = vmatprep.subr.mxu0 0.0
        %788 = vmatpush2.msra.mxu0 %v748
        %789 = vmatprep.subr.mxu0 0.0
        %790 = vmatpush2.msra.mxu0 %v747
        %791 = vmatprep.subr.mxu0 0.0
        %792 = vmatpush2.msra.mxu0 %v746
        %793 = vmatprep.subr.mxu0 0.0
        %794 = vmatpush2.msra.mxu0 %v745
        %795 = vmatprep.subr.mxu0 0.0
        %796 = vmatpush2.msra.mxu0 %v744
        %797 = vmatprep.subr.mxu0 0.0
        %798 = vmatpush2.msra.mxu0 %v743
        %799 = vmatprep.subr.mxu0 0.0
        %800 = vmatpush2.msra.mxu0 %v742
        %801 = vmatprep.subr.mxu0 0.0
        %802 = vmatpush2.msra.mxu0 %v741
        %803 = vmatprep.subr.mxu0 0.0
        %804 = vmatpush2.msra.mxu0 %v740
        %805 = vmatprep.subr.mxu0 0.0
        %806 = vmatpush2.msra.mxu0 %v739
        %807 = vmatprep.subr.mxu0 0.0
        %808 = vmatpush2.msra.mxu0 %v738
        %809 = vmatprep.subr.mxu0 0.0
        %810 = vmatpush2.msra.mxu0 %v737
        %811 = vmatprep.subr.mxu0 0.0
        %812 = vmatpush2.msra.mxu0 %v736
        %813 = vmatprep.subr.mxu0 0.0
        %814 = vmatpush2.msra.mxu0 %v735
        %815 = vmatprep.mubr.f32.mxu0 %v711
        %816 = vmatmul.mubr.f32.gmra.mxu0 %v710
        %v817 = vpop.f32.mrf.mxu0
        %v818 = vadd.f32 0.0, %v817
        %v819 = vpop.f32.mrf.mxu0
        %820 = vmatprep.mubr.f32.mxu0 %v713
        %821 = vmatmul.mubr.f32.gmra.mxu0 %v712
        %v822 = vpop.f32.mrf.mxu0
        %v823 = vadd.f32 0.0, %v822
        %v824 = vpop.f32.mrf.mxu0
        %825 = vmatprep.mubr.f32.mxu0 %v715
        %826 = vmatmul.mubr.f32.gmra.mxu0 %v714
        %v827 = vpop.f32.mrf.mxu0
        %v828 = vadd.f32 0.0, %v827
        %v829 = vpop.f32.mrf.mxu0
        %830 = vmatprep.mubr.f32.mxu0 %v717
        %831 = vmatmul.mubr.f32.gmra.mxu0 %v716
        %v832 = vpop.f32.mrf.mxu0
        %v833 = vadd.f32 0.0, %v832
        %v834 = vpop.f32.mrf.mxu0
        %835 = vdwg.mxu0
        %v836 = vadd.f32 %v705, %v818
        %v837 = vadd.f32 %v706, %v823
        %v838 = vadd.f32 %v707, %v828
        %v839 = vadd.f32 %v708, %v833
        %840 = vst [vmem:[%s312] sm:$0xff] %v836
        %841 = vst [vmem:[%s312 + $0x8] sm:$0xff] %v837
        %842 = vst [vmem:[%s312 + $0x10] sm:$0xff] %v838
        %843 = vst [vmem:[%s312 + $0x18] sm:$0xff] %v839
        %v844 = vld [vmem:[%s312] sm:$0xff]
        %v845 = vsub.f32 %v844, -1.6
        %v846 = vmul.f32 %v845, 5.0
        %v847 = vsub.f32 %v846, 1.0
        %v848 = vand.u32 2147483647, %v847
        %v849 = vsub.f32 1.0, %v848
        %v850 = vmax.f32 %v849, 0.0
        %v851 = vsub.f32 %v846, 2.0
        %v852 = vand.u32 2147483647, %v851
        %v853 = vsub.f32 1.0, %v852
        %v854 = vmax.f32 %v853, 0.0
        %v855 = vsub.f32 %v846, 3.0
        %v856 = vand.u32 2147483647, %v855
        %v857 = vsub.f32 1.0, %v856
        %v858 = vmax.f32 %v857, 0.0
        %v859 = vsub.f32 %v846, 4.0
        %v860 = vand.u32 2147483647, %v859
        %v861 = vsub.f32 1.0, %v860
        %v862 = vmax.f32 %v861, 0.0
        %v863 = vsub.f32 %v846, 5.0
        %v864 = vand.u32 2147483647, %v863
        %v865 = vsub.f32 1.0, %v864
        %v866 = vmax.f32 %v865, 0.0
        %v867 = vsub.f32 %v846, 6.0
        %v868 = vand.u32 2147483647, %v867
        %v869 = vsub.f32 1.0, %v868
        %v870 = vmax.f32 %v869, 0.0
        %v871 = vsub.f32 %v846, 7.0
        %v872 = vand.u32 2147483647, %v871
        %v873 = vsub.f32 1.0, %v872
        %v874 = vmax.f32 %v873, 0.0
        %v875 = vsub.f32 %v846, 8.0
        %v876 = vand.u32 2147483647, %v875
        %v877 = vsub.f32 1.0, %v876
        %v878 = vmax.f32 %v877, 0.0
        %v879 = vsub.f32 %v846, 9.0
        %v880 = vand.u32 2147483647, %v879
        %v881 = vsub.f32 1.0, %v880
        %v882 = vmax.f32 %v881, 0.0
        %v883 = vsub.f32 %v846, 10.0
        %v884 = vand.u32 2147483647, %v883
        %v885 = vsub.f32 1.0, %v884
        %v886 = vmax.f32 %v885, 0.0
        %v887 = vsub.f32 %v846, 11.0
        %v888 = vand.u32 2147483647, %v887
        %v889 = vsub.f32 1.0, %v888
        %v890 = vmax.f32 %v889, 0.0
        %v891 = vsub.f32 %v846, 12.0
        %v892 = vand.u32 2147483647, %v891
        %v893 = vsub.f32 1.0, %v892
        %v894 = vmax.f32 %v893, 0.0
        %v895 = vsub.f32 %v846, 13.0
        %v896 = vand.u32 2147483647, %v895
        %v897 = vsub.f32 1.0, %v896
        %v898 = vmax.f32 %v897, 0.0
        %v899 = vsub.f32 %v846, 14.0
        %v900 = vand.u32 2147483647, %v899
        %v901 = vsub.f32 1.0, %v900
        %v902 = vmax.f32 %v901, 0.0
        %v903 = vsub.f32 %v846, 15.0
        %v904 = vand.u32 2147483647, %v903
        %v905 = vsub.f32 1.0, %v904
        %v906 = vmax.f32 %v905, 0.0
        %v907 = vmul.f32 %v846, 0.5
        %v908 = vmul.f32 %v907, %v850
        %v909 = vsub.f32 %v907, 1.5
        %v910 = vmul.f32 %v909, %v854
        %v911 = vsub.f32 %v908, %v910
        %v912 = vsub.f32 %v907, 0.5
        %v913 = vmul.f32 %v912, %v854
        %v914 = vsub.f32 %v907, 2.0
        %v915 = vmul.f32 %v914, %v858
        %v916 = vsub.f32 %v913, %v915
        %v917 = vsub.f32 %v907, 1.0
        %v918 = vmul.f32 %v917, %v858
        %v919 = vsub.f32 %v907, 2.5
        %v920 = vmul.f32 %v919, %v862
        %v921 = vsub.f32 %v918, %v920
        %v922 = vmul.f32 %v909, %v862
        %v923 = vsub.f32 %v907, 3.0
        %v924 = vmul.f32 %v923, %v866
        %v925 = vsub.f32 %v922, %v924
        %v926 = vmul.f32 %v914, %v866
        %v927 = vsub.f32 %v907, 3.5
        %v928 = vmul.f32 %v927, %v870
        %v929 = vsub.f32 %v926, %v928
        %v930 = vmul.f32 %v919, %v870
        %v931 = vsub.f32 %v907, 4.0
        %v932 = vmul.f32 %v931, %v874
        %v933 = vsub.f32 %v930, %v932
        %v934 = vmul.f32 %v923, %v874
        %v935 = vsub.f32 %v907, 4.5
        %v936 = vmul.f32 %v935, %v878
        %v937 = vsub.f32 %v934, %v936
        %v938 = vmul.f32 %v927, %v878
        %v939 = vsub.f32 %v907, 5.0
        %v940 = vmul.f32 %v939, %v882
        %v941 = vsub.f32 %v938, %v940
        %v942 = vmul.f32 %v931, %v882
        %v943 = vsub.f32 %v907, 5.5
        %v944 = vmul.f32 %v943, %v886
        %v945 = vsub.f32 %v942, %v944
        %v946 = vmul.f32 %v935, %v886
        %v947 = vsub.f32 %v907, 6.0
        %v948 = vmul.f32 %v947, %v890
        %v949 = vsub.f32 %v946, %v948
        %v950 = vmul.f32 %v939, %v890
        %v951 = vsub.f32 %v907, 6.5
        %v952 = vmul.f32 %v951, %v894
        %v953 = vsub.f32 %v950, %v952
        %v954 = vmul.f32 %v943, %v894
        %v955 = vsub.f32 %v907, 7.0
        %v956 = vmul.f32 %v955, %v898
        %v957 = vsub.f32 %v954, %v956
        %v958 = vmul.f32 %v947, %v898
        %v959 = vsub.f32 %v907, 7.5
        %v960 = vmul.f32 %v959, %v902
        %v961 = vsub.f32 %v958, %v960
        %v962 = vmul.f32 %v951, %v902
        %v963 = vsub.f32 %v907, 8.0
        %v964 = vmul.f32 %v963, %v906
        %v965 = vsub.f32 %v962, %v964
        %v966 = vmul.f32 %v846, 0.33333334
        %v967 = vmul.f32 %v966, %v911
        %v968 = vsub.f32 %v966, 1.3333334
        %v969 = vmul.f32 %v968, %v916
        %v970 = vsub.f32 %v967, %v969
        %v971 = vsub.f32 %v966, 0.33333334
        %v972 = vmul.f32 %v971, %v916
        %v973 = vsub.f32 %v966, 1.6666666
        %v974 = vmul.f32 %v973, %v921
        %v975 = vsub.f32 %v972, %v974
        %v976 = vsub.f32 %v966, 0.6666667
        %v977 = vmul.f32 %v976, %v921
        %v978 = vsub.f32 %v966, 2.0
        %v979 = vmul.f32 %v978, %v925
        %v980 = vsub.f32 %v977, %v979
        %v981 = vsub.f32 %v966, 1.0
        %v982 = vmul.f32 %v981, %v925
        %v983 = vsub.f32 %v966, 2.3333333
        %v984 = vmul.f32 %v983, %v929
        %v985 = vsub.f32 %v982, %v984
        %v986 = vmul.f32 %v968, %v929
        %v987 = vsub.f32 %v966, 2.6666667
        %v988 = vmul.f32 %v987, %v933
        %v989 = vsub.f32 %v986, %v988
        %v990 = vmul.f32 %v973, %v933
        %v991 = vsub.f32 %v966, 3.0
        %v992 = vmul.f32 %v991, %v937
        %v993 = vsub.f32 %v990, %v992
        %v994 = vmul.f32 %v978, %v937
        %v995 = vsub.f32 %v966, 3.3333333
        %v996 = vmul.f32 %v995, %v941
        %v997 = vsub.f32 %v994, %v996
        %v998 = vmul.f32 %v983, %v941
        %v999 = vsub.f32 %v966, 3.6666667
        %v1000 = vmul.f32 %v999, %v945
        %v1001 = vsub.f32 %v998, %v1000
        %v1002 = vmul.f32 %v987, %v945
        %v1003 = vsub.f32 %v966, 4.0
        %v1004 = vmul.f32 %v1003, %v949
        %v1005 = vsub.f32 %v1002, %v1004
        %v1006 = vmul.f32 %v991, %v949
        %v1007 = vsub.f32 %v966, 4.3333335
        %v1008 = vmul.f32 %v1007, %v953
        %v1009 = vsub.f32 %v1006, %v1008
        %v1010 = vmul.f32 %v995, %v953
        %v1011 = vsub.f32 %v966, 4.6666665
        %v1012 = vmul.f32 %v1011, %v957
        %v1013 = vsub.f32 %v1010, %v1012
        %v1014 = vmul.f32 %v999, %v957
        %v1015 = vsub.f32 %v966, 5.0
        %v1016 = vmul.f32 %v1015, %v961
        %v1017 = vsub.f32 %v1014, %v1016
        %v1018 = vmul.f32 %v1003, %v961
        %v1019 = vsub.f32 %v966, 5.3333335
        %v1020 = vmul.f32 %v1019, %v965
        %v1021 = vsub.f32 %v1018, %v1020
        %1022 = vst [vmem:[#allocation2] sm:$0xff] %v970
        %1023 = vst [vmem:[#allocation2 + $0x8] sm:$0xff] %v975
        %1024 = vst [vmem:[#allocation2 + $0x10] sm:$0xff] %v980
        %1025 = vst [vmem:[#allocation2 + $0x18] sm:$0xff] %v985
        %1026 = vst [vmem:[#allocation2 + $0x20] sm:$0xff] %v989
        %1027 = vst [vmem:[#allocation2 + $0x28] sm:$0xff] %v993
        %1028 = vst [vmem:[#allocation2 + $0x30] sm:$0xff] %v997
        %1029 = vst [vmem:[#allocation2 + $0x38] sm:$0xff] %v1001
        %1030 = vst [vmem:[#allocation2 + $0x40] sm:$0xff] %v1005
        %1031 = vst [vmem:[#allocation2 + $0x48] sm:$0xff] %v1009
        %1032 = vst [vmem:[#allocation2 + $0x50] sm:$0xff] %v1013
        %1033 = vst [vmem:[#allocation2 + $0x58] sm:$0xff] %v1017
        %1034 = vst [vmem:[#allocation2 + $0x60] sm:$0xff] %v1021
        %v1035 = vld [vmem:[%s312 + $0x8] sm:$0xff]
        %v1036 = vsub.f32 %v1035, -1.6
        %v1037 = vmul.f32 %v1036, 5.0
        %v1038 = vsub.f32 %v1037, 1.0
        %v1039 = vand.u32 2147483647, %v1038
        %v1040 = vsub.f32 1.0, %v1039
        %v1041 = vmax.f32 %v1040, 0.0
        %v1042 = vsub.f32 %v1037, 2.0
        %v1043 = vand.u32 2147483647, %v1042
        %v1044 = vsub.f32 1.0, %v1043
        %v1045 = vmax.f32 %v1044, 0.0
        %v1046 = vsub.f32 %v1037, 3.0
        %v1047 = vand.u32 2147483647, %v1046
        %v1048 = vsub.f32 1.0, %v1047
        %v1049 = vmax.f32 %v1048, 0.0
        %v1050 = vsub.f32 %v1037, 4.0
        %v1051 = vand.u32 2147483647, %v1050
        %v1052 = vsub.f32 1.0, %v1051
        %v1053 = vmax.f32 %v1052, 0.0
        %v1054 = vsub.f32 %v1037, 5.0
        %v1055 = vand.u32 2147483647, %v1054
        %v1056 = vsub.f32 1.0, %v1055
        %v1057 = vmax.f32 %v1056, 0.0
        %v1058 = vsub.f32 %v1037, 6.0
        %v1059 = vand.u32 2147483647, %v1058
        %v1060 = vsub.f32 1.0, %v1059
        %v1061 = vmax.f32 %v1060, 0.0
        %v1062 = vsub.f32 %v1037, 7.0
        %v1063 = vand.u32 2147483647, %v1062
        %v1064 = vsub.f32 1.0, %v1063
        %v1065 = vmax.f32 %v1064, 0.0
        %v1066 = vsub.f32 %v1037, 8.0
        %v1067 = vand.u32 2147483647, %v1066
        %v1068 = vsub.f32 1.0, %v1067
        %v1069 = vmax.f32 %v1068, 0.0
        %v1070 = vsub.f32 %v1037, 9.0
        %v1071 = vand.u32 2147483647, %v1070
        %v1072 = vsub.f32 1.0, %v1071
        %v1073 = vmax.f32 %v1072, 0.0
        %v1074 = vsub.f32 %v1037, 10.0
        %v1075 = vand.u32 2147483647, %v1074
        %v1076 = vsub.f32 1.0, %v1075
        %v1077 = vmax.f32 %v1076, 0.0
        %v1078 = vsub.f32 %v1037, 11.0
        %v1079 = vand.u32 2147483647, %v1078
        %v1080 = vsub.f32 1.0, %v1079
        %v1081 = vmax.f32 %v1080, 0.0
        %v1082 = vsub.f32 %v1037, 12.0
        %v1083 = vand.u32 2147483647, %v1082
        %v1084 = vsub.f32 1.0, %v1083
        %v1085 = vmax.f32 %v1084, 0.0
        %v1086 = vsub.f32 %v1037, 13.0
        %v1087 = vand.u32 2147483647, %v1086
        %v1088 = vsub.f32 1.0, %v1087
        %v1089 = vmax.f32 %v1088, 0.0
        %v1090 = vsub.f32 %v1037, 14.0
        %v1091 = vand.u32 2147483647, %v1090
        %v1092 = vsub.f32 1.0, %v1091
        %v1093 = vmax.f32 %v1092, 0.0
        %v1094 = vsub.f32 %v1037, 15.0
        %v1095 = vand.u32 2147483647, %v1094
        %v1096 = vsub.f32 1.0, %v1095
        %v1097 = vmax.f32 %v1096, 0.0
        %v1098 = vmul.f32 %v1037, 0.5
        %v1099 = vmul.f32 %v1098, %v1041
        %v1100 = vsub.f32 %v1098, 1.5
        %v1101 = vmul.f32 %v1100, %v1045
        %v1102 = vsub.f32 %v1099, %v1101
        %v1103 = vsub.f32 %v1098, 0.5
        %v1104 = vmul.f32 %v1103, %v1045
        %v1105 = vsub.f32 %v1098, 2.0
        %v1106 = vmul.f32 %v1105, %v1049
        %v1107 = vsub.f32 %v1104, %v1106
        %v1108 = vsub.f32 %v1098, 1.0
        %v1109 = vmul.f32 %v1108, %v1049
        %v1110 = vsub.f32 %v1098, 2.5
        %v1111 = vmul.f32 %v1110, %v1053
        %v1112 = vsub.f32 %v1109, %v1111
        %v1113 = vmul.f32 %v1100, %v1053
        %v1114 = vsub.f32 %v1098, 3.0
        %v1115 = vmul.f32 %v1114, %v1057
        %v1116 = vsub.f32 %v1113, %v1115
        %v1117 = vmul.f32 %v1105, %v1057
        %v1118 = vsub.f32 %v1098, 3.5
        %v1119 = vmul.f32 %v1118, %v1061
        %v1120 = vsub.f32 %v1117, %v1119
        %v1121 = vmul.f32 %v1110, %v1061
        %v1122 = vsub.f32 %v1098, 4.0
        %v1123 = vmul.f32 %v1122, %v1065
        %v1124 = vsub.f32 %v1121, %v1123
        %v1125 = vmul.f32 %v1114, %v1065
        %v1126 = vsub.f32 %v1098, 4.5
        %v1127 = vmul.f32 %v1126, %v1069
        %v1128 = vsub.f32 %v1125, %v1127
        %v1129 = vmul.f32 %v1118, %v1069
        %v1130 = vsub.f32 %v1098, 5.0
        %v1131 = vmul.f32 %v1130, %v1073
        %v1132 = vsub.f32 %v1129, %v1131
        %v1133 = vmul.f32 %v1122, %v1073
        %v1134 = vsub.f32 %v1098, 5.5
        %v1135 = vmul.f32 %v1134, %v1077
        %v1136 = vsub.f32 %v1133, %v1135
        %v1137 = vmul.f32 %v1126, %v1077
        %v1138 = vsub.f32 %v1098, 6.0
        %v1139 = vmul.f32 %v1138, %v1081
        %v1140 = vsub.f32 %v1137, %v1139
        %v1141 = vmul.f32 %v1130, %v1081
        %v1142 = vsub.f32 %v1098, 6.5
        %v1143 = vmul.f32 %v1142, %v1085
        %v1144 = vsub.f32 %v1141, %v1143
        %v1145 = vmul.f32 %v1134, %v1085
        %v1146 = vsub.f32 %v1098, 7.0
        %v1147 = vmul.f32 %v1146, %v1089
        %v1148 = vsub.f32 %v1145, %v1147
        %v1149 = vmul.f32 %v1138, %v1089
        %v1150 = vsub.f32 %v1098, 7.5
        %v1151 = vmul.f32 %v1150, %v1093
        %v1152 = vsub.f32 %v1149, %v1151
        %v1153 = vmul.f32 %v1142, %v1093
        %v1154 = vsub.f32 %v1098, 8.0
        %v1155 = vmul.f32 %v1154, %v1097
        %v1156 = vsub.f32 %v1153, %v1155
        %v1157 = vmul.f32 %v1037, 0.33333334
        %v1158 = vmul.f32 %v1157, %v1102
        %v1159 = vsub.f32 %v1157, 1.3333334
        %v1160 = vmul.f32 %v1159, %v1107
        %v1161 = vsub.f32 %v1158, %v1160
        %v1162 = vsub.f32 %v1157, 0.33333334
        %v1163 = vmul.f32 %v1162, %v1107
        %v1164 = vsub.f32 %v1157, 1.6666666
        %v1165 = vmul.f32 %v1164, %v1112
        %v1166 = vsub.f32 %v1163, %v1165
        %v1167 = vsub.f32 %v1157, 0.6666667
        %v1168 = vmul.f32 %v1167, %v1112
        %v1169 = vsub.f32 %v1157, 2.0
        %v1170 = vmul.f32 %v1169, %v1116
        %v1171 = vsub.f32 %v1168, %v1170
        %v1172 = vsub.f32 %v1157, 1.0
        %v1173 = vmul.f32 %v1172, %v1116
        %v1174 = vsub.f32 %v1157, 2.3333333
        %v1175 = vmul.f32 %v1174, %v1120
        %v1176 = vsub.f32 %v1173, %v1175
        %v1177 = vmul.f32 %v1159, %v1120
        %v1178 = vsub.f32 %v1157, 2.6666667
        %v1179 = vmul.f32 %v1178, %v1124
        %v1180 = vsub.f32 %v1177, %v1179
        %v1181 = vmul.f32 %v1164, %v1124
        %v1182 = vsub.f32 %v1157, 3.0
        %v1183 = vmul.f32 %v1182, %v1128
        %v1184 = vsub.f32 %v1181, %v1183
        %v1185 = vmul.f32 %v1169, %v1128
        %v1186 = vsub.f32 %v1157, 3.3333333
        %v1187 = vmul.f32 %v1186, %v1132
        %v1188 = vsub.f32 %v1185, %v1187
        %v1189 = vmul.f32 %v1174, %v1132
        %v1190 = vsub.f32 %v1157, 3.6666667
        %v1191 = vmul.f32 %v1190, %v1136
        %v1192 = vsub.f32 %v1189, %v1191
        %v1193 = vmul.f32 %v1178, %v1136
        %v1194 = vsub.f32 %v1157, 4.0
        %v1195 = vmul.f32 %v1194, %v1140
        %v1196 = vsub.f32 %v1193, %v1195
        %v1197 = vmul.f32 %v1182, %v1140
        %v1198 = vsub.f32 %v1157, 4.3333335
        %v1199 = vmul.f32 %v1198, %v1144
        %v1200 = vsub.f32 %v1197, %v1199
        %v1201 = vmul.f32 %v1186, %v1144
        %v1202 = vsub.f32 %v1157, 4.6666665
        %v1203 = vmul.f32 %v1202, %v1148
        %v1204 = vsub.f32 %v1201, %v1203
        %v1205 = vmul.f32 %v1190, %v1148
        %v1206 = vsub.f32 %v1157, 5.0
        %v1207 = vmul.f32 %v1206, %v1152
        %v1208 = vsub.f32 %v1205, %v1207
        %v1209 = vmul.f32 %v1194, %v1152
        %v1210 = vsub.f32 %v1157, 5.3333335
        %v1211 = vmul.f32 %v1210, %v1156
        %v1212 = vsub.f32 %v1209, %v1211
        %1213 = vst [vmem:[#allocation2 + $0x68] sm:$0xff] %v1161
        %1214 = vst [vmem:[#allocation2 + $0x70] sm:$0xff] %v1166
        %1215 = vst [vmem:[#allocation2 + $0x78] sm:$0xff] %v1171
        %1216 = vst [vmem:[#allocation2 + $0x80] sm:$0xff] %v1176
        %1217 = vst [vmem:[#allocation2 + $0x88] sm:$0xff] %v1180
        %1218 = vst [vmem:[#allocation2 + $0x90] sm:$0xff] %v1184
        %1219 = vst [vmem:[#allocation2 + $0x98] sm:$0xff] %v1188
        %1220 = vst [vmem:[#allocation2 + $0xa0] sm:$0xff] %v1192
        %1221 = vst [vmem:[#allocation2 + $0xa8] sm:$0xff] %v1196
        %1222 = vst [vmem:[#allocation2 + $0xb0] sm:$0xff] %v1200
        %1223 = vst [vmem:[#allocation2 + $0xb8] sm:$0xff] %v1204
        %1224 = vst [vmem:[#allocation2 + $0xc0] sm:$0xff] %v1208
        %1225 = vst [vmem:[#allocation2 + $0xc8] sm:$0xff] %v1212
        %v1226 = vld [vmem:[%s312 + $0x10] sm:$0xff]
        %v1227 = vsub.f32 %v1226, -1.6
        %v1228 = vmul.f32 %v1227, 5.0
        %v1229 = vsub.f32 %v1228, 1.0
        %v1230 = vand.u32 2147483647, %v1229
        %v1231 = vsub.f32 1.0, %v1230
        %v1232 = vmax.f32 %v1231, 0.0
        %v1233 = vsub.f32 %v1228, 2.0
        %v1234 = vand.u32 2147483647, %v1233
        %v1235 = vsub.f32 1.0, %v1234
        %v1236 = vmax.f32 %v1235, 0.0
        %v1237 = vsub.f32 %v1228, 3.0
        %v1238 = vand.u32 2147483647, %v1237
        %v1239 = vsub.f32 1.0, %v1238
        %v1240 = vmax.f32 %v1239, 0.0
        %v1241 = vsub.f32 %v1228, 4.0
        %v1242 = vand.u32 2147483647, %v1241
        %v1243 = vsub.f32 1.0, %v1242
        %v1244 = vmax.f32 %v1243, 0.0
        %v1245 = vsub.f32 %v1228, 5.0
        %v1246 = vand.u32 2147483647, %v1245
        %v1247 = vsub.f32 1.0, %v1246
        %v1248 = vmax.f32 %v1247, 0.0
        %v1249 = vsub.f32 %v1228, 6.0
        %v1250 = vand.u32 2147483647, %v1249
        %v1251 = vsub.f32 1.0, %v1250
        %v1252 = vmax.f32 %v1251, 0.0
        %v1253 = vsub.f32 %v1228, 7.0
        %v1254 = vand.u32 2147483647, %v1253
        %v1255 = vsub.f32 1.0, %v1254
        %v1256 = vmax.f32 %v1255, 0.0
        %v1257 = vsub.f32 %v1228, 8.0
        %v1258 = vand.u32 2147483647, %v1257
        %v1259 = vsub.f32 1.0, %v1258
        %v1260 = vmax.f32 %v1259, 0.0
        %v1261 = vsub.f32 %v1228, 9.0
        %v1262 = vand.u32 2147483647, %v1261
        %v1263 = vsub.f32 1.0, %v1262
        %v1264 = vmax.f32 %v1263, 0.0
        %v1265 = vsub.f32 %v1228, 10.0
        %v1266 = vand.u32 2147483647, %v1265
        %v1267 = vsub.f32 1.0, %v1266
        %v1268 = vmax.f32 %v1267, 0.0
        %v1269 = vsub.f32 %v1228, 11.0
        %v1270 = vand.u32 2147483647, %v1269
        %v1271 = vsub.f32 1.0, %v1270
        %v1272 = vmax.f32 %v1271, 0.0
        %v1273 = vsub.f32 %v1228, 12.0
        %v1274 = vand.u32 2147483647, %v1273
        %v1275 = vsub.f32 1.0, %v1274
        %v1276 = vmax.f32 %v1275, 0.0
        %v1277 = vsub.f32 %v1228, 13.0
        %v1278 = vand.u32 2147483647, %v1277
        %v1279 = vsub.f32 1.0, %v1278
        %v1280 = vmax.f32 %v1279, 0.0
        %v1281 = vsub.f32 %v1228, 14.0
        %v1282 = vand.u32 2147483647, %v1281
        %v1283 = vsub.f32 1.0, %v1282
        %v1284 = vmax.f32 %v1283, 0.0
        %v1285 = vsub.f32 %v1228, 15.0
        %v1286 = vand.u32 2147483647, %v1285
        %v1287 = vsub.f32 1.0, %v1286
        %v1288 = vmax.f32 %v1287, 0.0
        %v1289 = vmul.f32 %v1228, 0.5
        %v1290 = vmul.f32 %v1289, %v1232
        %v1291 = vsub.f32 %v1289, 1.5
        %v1292 = vmul.f32 %v1291, %v1236
        %v1293 = vsub.f32 %v1290, %v1292
        %v1294 = vsub.f32 %v1289, 0.5
        %v1295 = vmul.f32 %v1294, %v1236
        %v1296 = vsub.f32 %v1289, 2.0
        %v1297 = vmul.f32 %v1296, %v1240
        %v1298 = vsub.f32 %v1295, %v1297
        %v1299 = vsub.f32 %v1289, 1.0
        %v1300 = vmul.f32 %v1299, %v1240
        %v1301 = vsub.f32 %v1289, 2.5
        %v1302 = vmul.f32 %v1301, %v1244
        %v1303 = vsub.f32 %v1300, %v1302
        %v1304 = vmul.f32 %v1291, %v1244
        %v1305 = vsub.f32 %v1289, 3.0
        %v1306 = vmul.f32 %v1305, %v1248
        %v1307 = vsub.f32 %v1304, %v1306
        %v1308 = vmul.f32 %v1296, %v1248
        %v1309 = vsub.f32 %v1289, 3.5
        %v1310 = vmul.f32 %v1309, %v1252
        %v1311 = vsub.f32 %v1308, %v1310
        %v1312 = vmul.f32 %v1301, %v1252
        %v1313 = vsub.f32 %v1289, 4.0
        %v1314 = vmul.f32 %v1313, %v1256
        %v1315 = vsub.f32 %v1312, %v1314
        %v1316 = vmul.f32 %v1305, %v1256
        %v1317 = vsub.f32 %v1289, 4.5
        %v1318 = vmul.f32 %v1317, %v1260
        %v1319 = vsub.f32 %v1316, %v1318
        %v1320 = vmul.f32 %v1309, %v1260
        %v1321 = vsub.f32 %v1289, 5.0
        %v1322 = vmul.f32 %v1321, %v1264
        %v1323 = vsub.f32 %v1320, %v1322
        %v1324 = vmul.f32 %v1313, %v1264
        %v1325 = vsub.f32 %v1289, 5.5
        %v1326 = vmul.f32 %v1325, %v1268
        %v1327 = vsub.f32 %v1324, %v1326
        %v1328 = vmul.f32 %v1317, %v1268
        %v1329 = vsub.f32 %v1289, 6.0
        %v1330 = vmul.f32 %v1329, %v1272
        %v1331 = vsub.f32 %v1328, %v1330
        %v1332 = vmul.f32 %v1321, %v1272
        %v1333 = vsub.f32 %v1289, 6.5
        %v1334 = vmul.f32 %v1333, %v1276
        %v1335 = vsub.f32 %v1332, %v1334
        %v1336 = vmul.f32 %v1325, %v1276
        %v1337 = vsub.f32 %v1289, 7.0
        %v1338 = vmul.f32 %v1337, %v1280
        %v1339 = vsub.f32 %v1336, %v1338
        %v1340 = vmul.f32 %v1329, %v1280
        %v1341 = vsub.f32 %v1289, 7.5
        %v1342 = vmul.f32 %v1341, %v1284
        %v1343 = vsub.f32 %v1340, %v1342
        %v1344 = vmul.f32 %v1333, %v1284
        %v1345 = vsub.f32 %v1289, 8.0
        %v1346 = vmul.f32 %v1345, %v1288
        %v1347 = vsub.f32 %v1344, %v1346
        %v1348 = vmul.f32 %v1228, 0.33333334
        %v1349 = vmul.f32 %v1348, %v1293
        %v1350 = vsub.f32 %v1348, 1.3333334
        %v1351 = vmul.f32 %v1350, %v1298
        %v1352 = vsub.f32 %v1349, %v1351
        %v1353 = vsub.f32 %v1348, 0.33333334
        %v1354 = vmul.f32 %v1353, %v1298
        %v1355 = vsub.f32 %v1348, 1.6666666
        %v1356 = vmul.f32 %v1355, %v1303
        %v1357 = vsub.f32 %v1354, %v1356
        %v1358 = vsub.f32 %v1348, 0.6666667
        %v1359 = vmul.f32 %v1358, %v1303
        %v1360 = vsub.f32 %v1348, 2.0
        %v1361 = vmul.f32 %v1360, %v1307
        %v1362 = vsub.f32 %v1359, %v1361
        %v1363 = vsub.f32 %v1348, 1.0
        %v1364 = vmul.f32 %v1363, %v1307
        %v1365 = vsub.f32 %v1348, 2.3333333
        %v1366 = vmul.f32 %v1365, %v1311
        %v1367 = vsub.f32 %v1364, %v1366
        %v1368 = vmul.f32 %v1350, %v1311
        %v1369 = vsub.f32 %v1348, 2.6666667
        %v1370 = vmul.f32 %v1369, %v1315
        %v1371 = vsub.f32 %v1368, %v1370
        %v1372 = vmul.f32 %v1355, %v1315
        %v1373 = vsub.f32 %v1348, 3.0
        %v1374 = vmul.f32 %v1373, %v1319
        %v1375 = vsub.f32 %v1372, %v1374
        %v1376 = vmul.f32 %v1360, %v1319
        %v1377 = vsub.f32 %v1348, 3.3333333
        %v1378 = vmul.f32 %v1377, %v1323
        %v1379 = vsub.f32 %v1376, %v1378
        %v1380 = vmul.f32 %v1365, %v1323
        %v1381 = vsub.f32 %v1348, 3.6666667
        %v1382 = vmul.f32 %v1381, %v1327
        %v1383 = vsub.f32 %v1380, %v1382
        %v1384 = vmul.f32 %v1369, %v1327
        %v1385 = vsub.f32 %v1348, 4.0
        %v1386 = vmul.f32 %v1385, %v1331
        %v1387 = vsub.f32 %v1384, %v1386
        %v1388 = vmul.f32 %v1373, %v1331
        %v1389 = vsub.f32 %v1348, 4.3333335
        %v1390 = vmul.f32 %v1389, %v1335
        %v1391 = vsub.f32 %v1388, %v1390
        %v1392 = vmul.f32 %v1377, %v1335
        %v1393 = vsub.f32 %v1348, 4.6666665
        %v1394 = vmul.f32 %v1393, %v1339
        %v1395 = vsub.f32 %v1392, %v1394
        %v1396 = vmul.f32 %v1381, %v1339
        %v1397 = vsub.f32 %v1348, 5.0
        %v1398 = vmul.f32 %v1397, %v1343
        %v1399 = vsub.f32 %v1396, %v1398
        %v1400 = vmul.f32 %v1385, %v1343
        %v1401 = vsub.f32 %v1348, 5.3333335
        %v1402 = vmul.f32 %v1401, %v1347
        %v1403 = vsub.f32 %v1400, %v1402
        %1404 = vst [vmem:[#allocation2 + $0xd0] sm:$0xff] %v1352
        %1405 = vst [vmem:[#allocation2 + $0xd8] sm:$0xff] %v1357
        %1406 = vst [vmem:[#allocation2 + $0xe0] sm:$0xff] %v1362
        %1407 = vst [vmem:[#allocation2 + $0xe8] sm:$0xff] %v1367
        %1408 = vst [vmem:[#allocation2 + $0xf0] sm:$0xff] %v1371
        %1409 = vst [vmem:[#allocation2 + $0xf8] sm:$0xff] %v1375
        %1410 = vst [vmem:[#allocation2 + $0x100] sm:$0xff] %v1379
        %1411 = vst [vmem:[#allocation2 + $0x108] sm:$0xff] %v1383
        %1412 = vst [vmem:[#allocation2 + $0x110] sm:$0xff] %v1387
        %1413 = vst [vmem:[#allocation2 + $0x118] sm:$0xff] %v1391
        %1414 = vst [vmem:[#allocation2 + $0x120] sm:$0xff] %v1395
        %1415 = vst [vmem:[#allocation2 + $0x128] sm:$0xff] %v1399
        %1416 = vst [vmem:[#allocation2 + $0x130] sm:$0xff] %v1403
        %v1417 = vld [vmem:[%s312 + $0x18] sm:$0xff]
        %v1418 = vsub.f32 %v1417, -1.6
        %v1419 = vmul.f32 %v1418, 5.0
        %v1420 = vsub.f32 %v1419, 1.0
        %v1421 = vand.u32 2147483647, %v1420
        %v1422 = vsub.f32 1.0, %v1421
        %v1423 = vmax.f32 %v1422, 0.0
        %v1424 = vsub.f32 %v1419, 2.0
        %v1425 = vand.u32 2147483647, %v1424
        %v1426 = vsub.f32 1.0, %v1425
        %v1427 = vmax.f32 %v1426, 0.0
        %v1428 = vsub.f32 %v1419, 3.0
        %v1429 = vand.u32 2147483647, %v1428
        %v1430 = vsub.f32 1.0, %v1429
        %v1431 = vmax.f32 %v1430, 0.0
        %v1432 = vsub.f32 %v1419, 4.0
        %v1433 = vand.u32 2147483647, %v1432
        %v1434 = vsub.f32 1.0, %v1433
        %v1435 = vmax.f32 %v1434, 0.0
        %v1436 = vsub.f32 %v1419, 5.0
        %v1437 = vand.u32 2147483647, %v1436
        %v1438 = vsub.f32 1.0, %v1437
        %v1439 = vmax.f32 %v1438, 0.0
        %v1440 = vsub.f32 %v1419, 6.0
        %v1441 = vand.u32 2147483647, %v1440
        %v1442 = vsub.f32 1.0, %v1441
        %v1443 = vmax.f32 %v1442, 0.0
        %v1444 = vsub.f32 %v1419, 7.0
        %v1445 = vand.u32 2147483647, %v1444
        %v1446 = vsub.f32 1.0, %v1445
        %v1447 = vmax.f32 %v1446, 0.0
        %v1448 = vsub.f32 %v1419, 8.0
        %v1449 = vand.u32 2147483647, %v1448
        %v1450 = vsub.f32 1.0, %v1449
        %v1451 = vmax.f32 %v1450, 0.0
        %v1452 = vsub.f32 %v1419, 9.0
        %v1453 = vand.u32 2147483647, %v1452
        %v1454 = vsub.f32 1.0, %v1453
        %v1455 = vmax.f32 %v1454, 0.0
        %v1456 = vsub.f32 %v1419, 10.0
        %v1457 = vand.u32 2147483647, %v1456
        %v1458 = vsub.f32 1.0, %v1457
        %v1459 = vmax.f32 %v1458, 0.0
        %v1460 = vsub.f32 %v1419, 11.0
        %v1461 = vand.u32 2147483647, %v1460
        %v1462 = vsub.f32 1.0, %v1461
        %v1463 = vmax.f32 %v1462, 0.0
        %v1464 = vsub.f32 %v1419, 12.0
        %v1465 = vand.u32 2147483647, %v1464
        %v1466 = vsub.f32 1.0, %v1465
        %v1467 = vmax.f32 %v1466, 0.0
        %v1468 = vsub.f32 %v1419, 13.0
        %v1469 = vand.u32 2147483647, %v1468
        %v1470 = vsub.f32 1.0, %v1469
        %v1471 = vmax.f32 %v1470, 0.0
        %v1472 = vsub.f32 %v1419, 14.0
        %v1473 = vand.u32 2147483647, %v1472
        %v1474 = vsub.f32 1.0, %v1473
        %v1475 = vmax.f32 %v1474, 0.0
        %v1476 = vsub.f32 %v1419, 15.0
        %v1477 = vand.u32 2147483647, %v1476
        %v1478 = vsub.f32 1.0, %v1477
        %v1479 = vmax.f32 %v1478, 0.0
        %v1480 = vmul.f32 %v1419, 0.5
        %v1481 = vmul.f32 %v1480, %v1423
        %v1482 = vsub.f32 %v1480, 1.5
        %v1483 = vmul.f32 %v1482, %v1427
        %v1484 = vsub.f32 %v1481, %v1483
        %v1485 = vsub.f32 %v1480, 0.5
        %v1486 = vmul.f32 %v1485, %v1427
        %v1487 = vsub.f32 %v1480, 2.0
        %v1488 = vmul.f32 %v1487, %v1431
        %v1489 = vsub.f32 %v1486, %v1488
        %v1490 = vsub.f32 %v1480, 1.0
        %v1491 = vmul.f32 %v1490, %v1431
        %v1492 = vsub.f32 %v1480, 2.5
        %v1493 = vmul.f32 %v1492, %v1435
        %v1494 = vsub.f32 %v1491, %v1493
        %v1495 = vmul.f32 %v1482, %v1435
        %v1496 = vsub.f32 %v1480, 3.0
        %v1497 = vmul.f32 %v1496, %v1439
        %v1498 = vsub.f32 %v1495, %v1497
        %v1499 = vmul.f32 %v1487, %v1439
        %v1500 = vsub.f32 %v1480, 3.5
        %v1501 = vmul.f32 %v1500, %v1443
        %v1502 = vsub.f32 %v1499, %v1501
        %v1503 = vmul.f32 %v1492, %v1443
        %v1504 = vsub.f32 %v1480, 4.0
        %v1505 = vmul.f32 %v1504, %v1447
        %v1506 = vsub.f32 %v1503, %v1505
        %v1507 = vmul.f32 %v1496, %v1447
        %v1508 = vsub.f32 %v1480, 4.5
        %v1509 = vmul.f32 %v1508, %v1451
        %v1510 = vsub.f32 %v1507, %v1509
        %v1511 = vmul.f32 %v1500, %v1451
        %v1512 = vsub.f32 %v1480, 5.0
        %v1513 = vmul.f32 %v1512, %v1455
        %v1514 = vsub.f32 %v1511, %v1513
        %v1515 = vmul.f32 %v1504, %v1455
        %v1516 = vsub.f32 %v1480, 5.5
        %v1517 = vmul.f32 %v1516, %v1459
        %v1518 = vsub.f32 %v1515, %v1517
        %v1519 = vmul.f32 %v1508, %v1459
        %v1520 = vsub.f32 %v1480, 6.0
        %v1521 = vmul.f32 %v1520, %v1463
        %v1522 = vsub.f32 %v1519, %v1521
        %v1523 = vmul.f32 %v1512, %v1463
        %v1524 = vsub.f32 %v1480, 6.5
        %v1525 = vmul.f32 %v1524, %v1467
        %v1526 = vsub.f32 %v1523, %v1525
        %v1527 = vmul.f32 %v1516, %v1467
        %v1528 = vsub.f32 %v1480, 7.0
        %v1529 = vmul.f32 %v1528, %v1471
        %v1530 = vsub.f32 %v1527, %v1529
        %v1531 = vmul.f32 %v1520, %v1471
        %v1532 = vsub.f32 %v1480, 7.5
        %v1533 = vmul.f32 %v1532, %v1475
        %v1534 = vsub.f32 %v1531, %v1533
        %v1535 = vmul.f32 %v1524, %v1475
        %v1536 = vsub.f32 %v1480, 8.0
        %v1537 = vmul.f32 %v1536, %v1479
        %v1538 = vsub.f32 %v1535, %v1537
        %v1539 = vmul.f32 %v1419, 0.33333334
        %v1540 = vmul.f32 %v1539, %v1484
        %v1541 = vsub.f32 %v1539, 1.3333334
        %v1542 = vmul.f32 %v1541, %v1489
        %v1543 = vsub.f32 %v1540, %v1542
        %v1544 = vsub.f32 %v1539, 0.33333334
        %v1545 = vmul.f32 %v1544, %v1489
        %v1546 = vsub.f32 %v1539, 1.6666666
        %v1547 = vmul.f32 %v1546, %v1494
        %v1548 = vsub.f32 %v1545, %v1547
        %v1549 = vsub.f32 %v1539, 0.6666667
        %v1550 = vmul.f32 %v1549, %v1494
        %v1551 = vsub.f32 %v1539, 2.0
        %v1552 = vmul.f32 %v1551, %v1498
        %v1553 = vsub.f32 %v1550, %v1552
        %v1554 = vsub.f32 %v1539, 1.0
        %v1555 = vmul.f32 %v1554, %v1498
        %v1556 = vsub.f32 %v1539, 2.3333333
        %v1557 = vmul.f32 %v1556, %v1502
        %v1558 = vsub.f32 %v1555, %v1557
        %v1559 = vmul.f32 %v1541, %v1502
        %v1560 = vsub.f32 %v1539, 2.6666667
        %v1561 = vmul.f32 %v1560, %v1506
        %v1562 = vsub.f32 %v1559, %v1561
        %v1563 = vmul.f32 %v1546, %v1506
        %v1564 = vsub.f32 %v1539, 3.0
        %v1565 = vmul.f32 %v1564, %v1510
        %v1566 = vsub.f32 %v1563, %v1565
        %v1567 = vmul.f32 %v1551, %v1510
        %v1568 = vsub.f32 %v1539, 3.3333333
        %v1569 = vmul.f32 %v1568, %v1514
        %v1570 = vsub.f32 %v1567, %v1569
        %v1571 = vmul.f32 %v1556, %v1514
        %v1572 = vsub.f32 %v1539, 3.6666667
        %v1573 = vmul.f32 %v1572, %v1518
        %v1574 = vsub.f32 %v1571, %v1573
        %v1575 = vmul.f32 %v1560, %v1518
        %v1576 = vsub.f32 %v1539, 4.0
        %v1577 = vmul.f32 %v1576, %v1522
        %v1578 = vsub.f32 %v1575, %v1577
        %v1579 = vmul.f32 %v1564, %v1522
        %v1580 = vsub.f32 %v1539, 4.3333335
        %v1581 = vmul.f32 %v1580, %v1526
        %v1582 = vsub.f32 %v1579, %v1581
        %v1583 = vmul.f32 %v1568, %v1526
        %v1584 = vsub.f32 %v1539, 4.6666665
        %v1585 = vmul.f32 %v1584, %v1530
        %v1586 = vsub.f32 %v1583, %v1585
        %v1587 = vmul.f32 %v1572, %v1530
        %v1588 = vsub.f32 %v1539, 5.0
        %v1589 = vmul.f32 %v1588, %v1534
        %v1590 = vsub.f32 %v1587, %v1589
        %v1591 = vmul.f32 %v1576, %v1534
        %v1592 = vsub.f32 %v1539, 5.3333335
        %v1593 = vmul.f32 %v1592, %v1538
        %v1594 = vsub.f32 %v1591, %v1593
        %1595 = vst [vmem:[#allocation2 + $0x138] sm:$0xff] %v1543
        %1596 = vst [vmem:[#allocation2 + $0x140] sm:$0xff] %v1548
        %1597 = vst [vmem:[#allocation2 + $0x148] sm:$0xff] %v1553
        %1598 = vst [vmem:[#allocation2 + $0x150] sm:$0xff] %v1558
        %1599 = vst [vmem:[#allocation2 + $0x158] sm:$0xff] %v1562
        %1600 = vst [vmem:[#allocation2 + $0x160] sm:$0xff] %v1566
        %1601 = vst [vmem:[#allocation2 + $0x168] sm:$0xff] %v1570
        %1602 = vst [vmem:[#allocation2 + $0x170] sm:$0xff] %v1574
        %1603 = vst [vmem:[#allocation2 + $0x178] sm:$0xff] %v1578
        %1604 = vst [vmem:[#allocation2 + $0x180] sm:$0xff] %v1582
        %1605 = vst [vmem:[#allocation2 + $0x188] sm:$0xff] %v1586
        %1606 = vst [vmem:[#allocation2 + $0x190] sm:$0xff] %v1590
        %1607 = vst [vmem:[#allocation2 + $0x198] sm:$0xff] %v1594
        %v1608 = vld [vmem:[#allocation2] sm:$0xff]
        %v1609 = vld [vmem:[#allocation2 + $0x8] sm:$0xff]
        %v1610 = vld [vmem:[#allocation2 + $0x10] sm:$0xff]
        %v1611 = vld [vmem:[#allocation2 + $0x18] sm:$0xff]
        %v1612 = vld [vmem:[#allocation2 + $0x20] sm:$0xff]
        %v1613 = vld [vmem:[#allocation2 + $0x28] sm:$0xff]
        %v1614 = vld [vmem:[#allocation2 + $0x30] sm:$0xff]
        %v1615 = vld [vmem:[#allocation2 + $0x38] sm:$0xff]
        %v1616 = vld [vmem:[#allocation2 + $0x40] sm:$0xff]
        %v1617 = vld [vmem:[#allocation2 + $0x48] sm:$0xff]
        %v1618 = vld [vmem:[#allocation2 + $0x50] sm:$0xff]
        %v1619 = vld [vmem:[#allocation2 + $0x58] sm:$0xff]
        %v1620 = vld [vmem:[#allocation2 + $0x60] sm:$0xff]
        %v1621 = vld [vmem:[#allocation2 + $0x68] sm:$0xff]
        %v1622 = vld [vmem:[#allocation2 + $0x70] sm:$0xff]
        %v1623 = vld [vmem:[#allocation2 + $0x78] sm:$0xff]
        %v1624 = vld [vmem:[#allocation2 + $0x80] sm:$0xff]
        %v1625 = vld [vmem:[#allocation2 + $0x88] sm:$0xff]
        %v1626 = vld [vmem:[#allocation2 + $0x90] sm:$0xff]
        %v1627 = vld [vmem:[#allocation2 + $0x98] sm:$0xff]
        %v1628 = vld [vmem:[#allocation2 + $0xa0] sm:$0xff]
        %v1629 = vld [vmem:[#allocation2 + $0xa8] sm:$0xff]
        %v1630 = vld [vmem:[#allocation2 + $0xb0] sm:$0xff]
        %v1631 = vld [vmem:[#allocation2 + $0xb8] sm:$0xff]
        %v1632 = vld [vmem:[#allocation2 + $0xc0] sm:$0xff]
        %v1633 = vld [vmem:[#allocation2 + $0xc8] sm:$0xff]
        %v1634 = vld [vmem:[#allocation2 + $0xd0] sm:$0xff]
        %v1635 = vld [vmem:[#allocation2 + $0xd8] sm:$0xff]
        %v1636 = vld [vmem:[#allocation2 + $0xe0] sm:$0xff]
        %v1637 = vld [vmem:[#allocation2 + $0xe8] sm:$0xff]
        %v1638 = vld [vmem:[#allocation2 + $0xf0] sm:$0xff]
        %v1639 = vld [vmem:[#allocation2 + $0xf8] sm:$0xff]
        %v1640 = vld [vmem:[#allocation2 + $0x100] sm:$0xff]
        %v1641 = vld [vmem:[#allocation2 + $0x108] sm:$0xff]
        %v1642 = vld [vmem:[#allocation2 + $0x110] sm:$0xff]
        %v1643 = vld [vmem:[#allocation2 + $0x118] sm:$0xff]
        %v1644 = vld [vmem:[#allocation2 + $0x120] sm:$0xff]
        %v1645 = vld [vmem:[#allocation2 + $0x128] sm:$0xff]
        %v1646 = vld [vmem:[#allocation2 + $0x130] sm:$0xff]
        %v1647 = vld [vmem:[#allocation2 + $0x138] sm:$0xff]
        %v1648 = vld [vmem:[#allocation2 + $0x140] sm:$0xff]
        %v1649 = vld [vmem:[#allocation2 + $0x148] sm:$0xff]
        %v1650 = vld [vmem:[#allocation2 + $0x150] sm:$0xff]
        %v1651 = vld [vmem:[#allocation2 + $0x158] sm:$0xff]
        %v1652 = vld [vmem:[#allocation2 + $0x160] sm:$0xff]
        %v1653 = vld [vmem:[#allocation2 + $0x168] sm:$0xff]
        %v1654 = vld [vmem:[#allocation2 + $0x170] sm:$0xff]
        %v1655 = vld [vmem:[#allocation2 + $0x178] sm:$0xff]
        %v1656 = vld [vmem:[#allocation2 + $0x180] sm:$0xff]
        %v1657 = vld [vmem:[#allocation2 + $0x188] sm:$0xff]
        %v1658 = vld [vmem:[#allocation2 + $0x190] sm:$0xff]
        %v1659 = vld [vmem:[#allocation2 + $0x198] sm:$0xff]
        %v1660 = vld [vmem:[#allocation9] sm:$0xff]
        %v1661 = vld [vmem:[#allocation9 + $0x8] sm:$0xff]
        %v1662 = vld [vmem:[#allocation9 + $0x10] sm:$0xff]
        %v1663 = vld [vmem:[#allocation9 + $0x18] sm:$0xff]
        %v1664 = vld [vmem:[#allocation9 + $0x20] sm:$0xff]
        %v1665 = vld [vmem:[#allocation9 + $0x28] sm:$0xff]
        %v1666 = vld [vmem:[#allocation9 + $0x30] sm:$0xff]
        %v1667 = vld [vmem:[#allocation9 + $0x38] sm:$0xff]
        %v1668 = vld [vmem:[#allocation9 + $0x40] sm:$0xff]
        %v1669 = vld [vmem:[#allocation9 + $0x48] sm:$0xff]
        %v1670 = vld [vmem:[#allocation9 + $0x50] sm:$0xff]
        %v1671 = vld [vmem:[#allocation9 + $0x58] sm:$0xff]
        %v1672 = vld [vmem:[#allocation9 + $0x60] sm:$0xff]
        %v1673 = vld [vmem:[#allocation9 + $0x68] sm:$0xff]
        %v1674 = vld [vmem:[#allocation9 + $0x70] sm:$0xff]
        %v1675 = vld [vmem:[#allocation9 + $0x78] sm:$0xff]
        %v1676 = vld [vmem:[#allocation9 + $0x80] sm:$0xff]
        %v1677 = vld [vmem:[#allocation9 + $0x88] sm:$0xff]
        %v1678 = vld [vmem:[#allocation9 + $0x90] sm:$0xff]
        %v1679 = vld [vmem:[#allocation9 + $0x98] sm:$0xff]
        %v1680 = vld [vmem:[#allocation9 + $0xa0] sm:$0xff]
        %v1681 = vld [vmem:[#allocation9 + $0xa8] sm:$0xff]
        %v1682 = vld [vmem:[#allocation9 + $0xb0] sm:$0xff]
        %v1683 = vld [vmem:[#allocation9 + $0xb8] sm:$0xff]
        %v1684 = vld [vmem:[#allocation9 + $0xc0] sm:$0xff]
        %v1685 = vld [vmem:[#allocation9 + $0xc8] sm:$0xff]
        %v1686 = vld [vmem:[#allocation9 + $0xd0] sm:$0xff]
        %v1687 = vld [vmem:[#allocation9 + $0xd8] sm:$0xff]
        %v1688 = vld [vmem:[#allocation9 + $0xe0] sm:$0xff]
        %v1689 = vld [vmem:[#allocation9 + $0xe8] sm:$0xff]
        %v1690 = vld [vmem:[#allocation9 + $0xf0] sm:$0xff]
        %v1691 = vld [vmem:[#allocation9 + $0xf8] sm:$0xff]
        %v1692 = vld [vmem:[#allocation9 + $0x100] sm:$0xff]
        %v1693 = vld [vmem:[#allocation9 + $0x108] sm:$0xff]
        %v1694 = vld [vmem:[#allocation9 + $0x110] sm:$0xff]
        %v1695 = vld [vmem:[#allocation9 + $0x118] sm:$0xff]
        %v1696 = vld [vmem:[#allocation9 + $0x120] sm:$0xff]
        %v1697 = vld [vmem:[#allocation9 + $0x128] sm:$0xff]
        %v1698 = vld [vmem:[#allocation9 + $0x130] sm:$0xff]
        %v1699 = vld [vmem:[#allocation9 + $0x138] sm:$0xff]
        %v1700 = vld [vmem:[#allocation9 + $0x140] sm:$0xff]
        %v1701 = vld [vmem:[#allocation9 + $0x148] sm:$0xff]
        %v1702 = vld [vmem:[#allocation9 + $0x150] sm:$0xff]
        %v1703 = vld [vmem:[#allocation9 + $0x158] sm:$0xff]
        %v1704 = vld [vmem:[#allocation9 + $0x160] sm:$0xff]
        %v1705 = vld [vmem:[#allocation9 + $0x168] sm:$0xff]
        %v1706 = vld [vmem:[#allocation9 + $0x170] sm:$0xff]
        %v1707 = vld [vmem:[#allocation9 + $0x178] sm:$0xff]
        %v1708 = vld [vmem:[#allocation9 + $0x180] sm:$0xff]
        %v1709 = vld [vmem:[#allocation9 + $0x188] sm:$0xff]
        %v1710 = vld [vmem:[#allocation9 + $0x190] sm:$0xff]
        %v1711 = vld [vmem:[#allocation9 + $0x198] sm:$0xff]
        %v1712 = vld [vmem:[#allocation9 + $0x1a0] sm:$0xff]
        %v1713 = vld [vmem:[#allocation9 + $0x1a8] sm:$0xff]
        %v1714 = vld [vmem:[#allocation9 + $0x1b0] sm:$0xff]
        %v1715 = vld [vmem:[#allocation9 + $0x1b8] sm:$0xff]
        %v1716 = vld [vmem:[#allocation9 + $0x1c0] sm:$0xff]
        %v1717 = vld [vmem:[#allocation9 + $0x1c8] sm:$0xff]
        %v1718 = vld [vmem:[#allocation9 + $0x1d0] sm:$0xff]
        %v1719 = vld [vmem:[#allocation9 + $0x1d8] sm:$0xff]
        %v1720 = vld [vmem:[#allocation9 + $0x1e0] sm:$0xff]
        %v1721 = vld [vmem:[#allocation9 + $0x1e8] sm:$0xff]
        %v1722 = vld [vmem:[#allocation9 + $0x1f0] sm:$0xff]
        %v1723 = vld [vmem:[#allocation9 + $0x1f8] sm:$0xff]
        %v1724 = vld [vmem:[#allocation9 + $0x200] sm:$0xff]
        %v1725 = vld [vmem:[#allocation9 + $0x208] sm:$0xff]
        %v1726 = vld [vmem:[#allocation9 + $0x210] sm:$0xff]
        %v1727 = vld [vmem:[#allocation9 + $0x218] sm:$0xff]
        %v1728 = vld [vmem:[#allocation9 + $0x220] sm:$0xff]
        %v1729 = vld [vmem:[#allocation9 + $0x228] sm:$0xff]
        %v1730 = vld [vmem:[#allocation9 + $0x230] sm:$0xff]
        %v1731 = vld [vmem:[#allocation9 + $0x238] sm:$0xff]
        %v1732 = vld [vmem:[#allocation9 + $0x240] sm:$0xff]
        %v1733 = vld [vmem:[#allocation9 + $0x248] sm:$0xff]
        %v1734 = vld [vmem:[#allocation9 + $0x250] sm:$0xff]
        %v1735 = vld [vmem:[#allocation9 + $0x258] sm:$0xff]
        %v1736 = vld [vmem:[#allocation9 + $0x260] sm:$0xff]
        %v1737 = vld [vmem:[#allocation9 + $0x268] sm:$0xff]
        %v1738 = vld [vmem:[#allocation9 + $0x270] sm:$0xff]
        %v1739 = vld [vmem:[#allocation9 + $0x278] sm:$0xff]
        %v1740 = vld [vmem:[#allocation9 + $0x280] sm:$0xff]
        %v1741 = vld [vmem:[#allocation9 + $0x288] sm:$0xff]
        %v1742 = vld [vmem:[#allocation9 + $0x290] sm:$0xff]
        %v1743 = vld [vmem:[#allocation9 + $0x298] sm:$0xff]
        %v1744 = vld [vmem:[#allocation9 + $0x2a0] sm:$0xff]
        %v1745 = vld [vmem:[#allocation9 + $0x2a8] sm:$0xff]
        %v1746 = vld [vmem:[#allocation9 + $0x2b0] sm:$0xff]
        %v1747 = vld [vmem:[#allocation9 + $0x2b8] sm:$0xff]
        %v1748 = vld [vmem:[#allocation9 + $0x2c0] sm:$0xff]
        %v1749 = vld [vmem:[#allocation9 + $0x2c8] sm:$0xff]
        %v1750 = vld [vmem:[#allocation9 + $0x2d0] sm:$0xff]
        %v1751 = vld [vmem:[#allocation9 + $0x2d8] sm:$0xff]
        %v1752 = vld [vmem:[#allocation9 + $0x2e0] sm:$0xff]
        %v1753 = vld [vmem:[#allocation9 + $0x2e8] sm:$0xff]
        %v1754 = vld [vmem:[#allocation9 + $0x2f0] sm:$0xff]
        %v1755 = vld [vmem:[#allocation9 + $0x2f8] sm:$0xff]
        %v1756 = vld [vmem:[#allocation9 + $0x300] sm:$0xff]
        %v1757 = vld [vmem:[#allocation9 + $0x308] sm:$0xff]
        %v1758 = vld [vmem:[#allocation9 + $0x310] sm:$0xff]
        %v1759 = vld [vmem:[#allocation9 + $0x318] sm:$0xff]
        %v1760 = vld [vmem:[#allocation9 + $0x320] sm:$0xff]
        %v1761 = vld [vmem:[#allocation9 + $0x328] sm:$0xff]
        %v1762 = vld [vmem:[#allocation9 + $0x330] sm:$0xff]
        %v1763 = vld [vmem:[#allocation9 + $0x338] sm:$0xff]
        %v1764 = vld [vmem:[#allocation9 + $0x340] sm:$0xff]
        %v1765 = vld [vmem:[#allocation9 + $0x348] sm:$0xff]
        %v1766 = vld [vmem:[#allocation9 + $0x350] sm:$0xff]
        %v1767 = vld [vmem:[#allocation9 + $0x358] sm:$0xff]
        %v1768 = vld [vmem:[#allocation9 + $0x360] sm:$0xff]
        %v1769 = vld [vmem:[#allocation9 + $0x368] sm:$0xff]
        %v1770 = vld [vmem:[#allocation9 + $0x370] sm:$0xff]
        %v1771 = vld [vmem:[#allocation9 + $0x378] sm:$0xff]
        %v1772 = vld [vmem:[#allocation9 + $0x380] sm:$0xff]
        %v1773 = vld [vmem:[#allocation9 + $0x388] sm:$0xff]
        %v1774 = vld [vmem:[#allocation9 + $0x390] sm:$0xff]
        %v1775 = vld [vmem:[#allocation9 + $0x398] sm:$0xff]
        %v1776 = vld [vmem:[#allocation9 + $0x3a0] sm:$0xff]
        %v1777 = vld [vmem:[#allocation9 + $0x3a8] sm:$0xff]
        %v1778 = vld [vmem:[#allocation9 + $0x3b0] sm:$0xff]
        %v1779 = vld [vmem:[#allocation9 + $0x3b8] sm:$0xff]
        %v1780 = vld [vmem:[#allocation9 + $0x3c0] sm:$0xff]
        %v1781 = vld [vmem:[#allocation9 + $0x3c8] sm:$0xff]
        %v1782 = vld [vmem:[#allocation9 + $0x3d0] sm:$0xff]
        %v1783 = vld [vmem:[#allocation9 + $0x3d8] sm:$0xff]
        %v1784 = vld [vmem:[#allocation9 + $0x3e0] sm:$0xff]
        %v1785 = vld [vmem:[#allocation9 + $0x3e8] sm:$0xff]
        %v1786 = vld [vmem:[#allocation9 + $0x3f0] sm:$0xff]
        %v1787 = vld [vmem:[#allocation9 + $0x3f8] sm:$0xff]
        %v1788 = vld [vmem:[#allocation9 + $0x400] sm:$0xff]
        %v1789 = vld [vmem:[#allocation9 + $0x408] sm:$0xff]
        %v1790 = vld [vmem:[#allocation9 + $0x410] sm:$0xff]
        %v1791 = vld [vmem:[#allocation9 + $0x418] sm:$0xff]
        %v1792 = vld [vmem:[#allocation9 + $0x420] sm:$0xff]
        %v1793 = vld [vmem:[#allocation9 + $0x428] sm:$0xff]
        %v1794 = vld [vmem:[#allocation9 + $0x430] sm:$0xff]
        %v1795 = vld [vmem:[#allocation9 + $0x438] sm:$0xff]
        %v1796 = vld [vmem:[#allocation9 + $0x440] sm:$0xff]
        %v1797 = vld [vmem:[#allocation9 + $0x448] sm:$0xff]
        %v1798 = vld [vmem:[#allocation9 + $0x450] sm:$0xff]
        %v1799 = vld [vmem:[#allocation9 + $0x458] sm:$0xff]
        %v1800 = vld [vmem:[#allocation9 + $0x460] sm:$0xff]
        %v1801 = vld [vmem:[#allocation9 + $0x468] sm:$0xff]
        %v1802 = vld [vmem:[#allocation9 + $0x470] sm:$0xff]
        %v1803 = vld [vmem:[#allocation9 + $0x478] sm:$0xff]
        %v1804 = vld [vmem:[#allocation9 + $0x480] sm:$0xff]
        %v1805 = vld [vmem:[#allocation9 + $0x488] sm:$0xff]
        %v1806 = vld [vmem:[#allocation9 + $0x490] sm:$0xff]
        %v1807 = vld [vmem:[#allocation9 + $0x498] sm:$0xff]
        %v1808 = vld [vmem:[#allocation9 + $0x4a0] sm:$0xff]
        %v1809 = vld [vmem:[#allocation9 + $0x4a8] sm:$0xff]
        %v1810 = vld [vmem:[#allocation9 + $0x4b0] sm:$0xff]
        %v1811 = vld [vmem:[#allocation9 + $0x4b8] sm:$0xff]
        %v1812 = vld [vmem:[#allocation9 + $0x4c0] sm:$0xff]
        %v1813 = vld [vmem:[#allocation9 + $0x4c8] sm:$0xff]
        %v1814 = vld [vmem:[#allocation9 + $0x4d0] sm:$0xff]
        %v1815 = vld [vmem:[#allocation9 + $0x4d8] sm:$0xff]
        %v1816 = vld [vmem:[#allocation9 + $0x4e0] sm:$0xff]
        %v1817 = vld [vmem:[#allocation9 + $0x4e8] sm:$0xff]
        %v1818 = vld [vmem:[#allocation9 + $0x4f0] sm:$0xff]
        %v1819 = vld [vmem:[#allocation9 + $0x4f8] sm:$0xff]
        %v1820 = vld [vmem:[#allocation9 + $0x500] sm:$0xff]
        %v1821 = vld [vmem:[#allocation9 + $0x508] sm:$0xff]
        %v1822 = vld [vmem:[#allocation9 + $0x510] sm:$0xff]
        %v1823 = vld [vmem:[#allocation9 + $0x518] sm:$0xff]
        %v1824 = vld [vmem:[#allocation9 + $0x520] sm:$0xff]
        %v1825 = vld [vmem:[#allocation9 + $0x528] sm:$0xff]
        %v1826 = vld [vmem:[#allocation9 + $0x530] sm:$0xff]
        %v1827 = vld [vmem:[#allocation9 + $0x538] sm:$0xff]
        %v1828 = vld [vmem:[#allocation9 + $0x540] sm:$0xff]
        %v1829 = vld [vmem:[#allocation9 + $0x548] sm:$0xff]
        %v1830 = vld [vmem:[#allocation9 + $0x550] sm:$0xff]
        %v1831 = vld [vmem:[#allocation9 + $0x558] sm:$0xff]
        %v1832 = vld [vmem:[#allocation9 + $0x560] sm:$0xff]
        %v1833 = vld [vmem:[#allocation9 + $0x568] sm:$0xff]
        %v1834 = vld [vmem:[#allocation9 + $0x570] sm:$0xff]
        %v1835 = vld [vmem:[#allocation9 + $0x578] sm:$0xff]
        %v1836 = vld [vmem:[#allocation9 + $0x580] sm:$0xff]
        %v1837 = vld [vmem:[#allocation9 + $0x588] sm:$0xff]
        %v1838 = vld [vmem:[#allocation9 + $0x590] sm:$0xff]
        %v1839 = vld [vmem:[#allocation9 + $0x598] sm:$0xff]
        %v1840 = vld [vmem:[#allocation9 + $0x5a0] sm:$0xff]
        %v1841 = vld [vmem:[#allocation9 + $0x5a8] sm:$0xff]
        %v1842 = vld [vmem:[#allocation9 + $0x5b0] sm:$0xff]
        %v1843 = vld [vmem:[#allocation9 + $0x5b8] sm:$0xff]
        %v1844 = vld [vmem:[#allocation9 + $0x5c0] sm:$0xff]
        %v1845 = vld [vmem:[#allocation9 + $0x5c8] sm:$0xff]
        %v1846 = vld [vmem:[#allocation9 + $0x5d0] sm:$0xff]
        %v1847 = vld [vmem:[#allocation9 + $0x5d8] sm:$0xff]
        %v1848 = vld [vmem:[#allocation9 + $0x5e0] sm:$0xff]
        %v1849 = vld [vmem:[#allocation9 + $0x5e8] sm:$0xff]
        %v1850 = vld [vmem:[#allocation9 + $0x5f0] sm:$0xff]
        %v1851 = vld [vmem:[#allocation9 + $0x5f8] sm:$0xff]
        %v1852 = vld [vmem:[#allocation9 + $0x600] sm:$0xff]
        %v1853 = vld [vmem:[#allocation9 + $0x608] sm:$0xff]
        %v1854 = vld [vmem:[#allocation9 + $0x610] sm:$0xff]
        %v1855 = vld [vmem:[#allocation9 + $0x618] sm:$0xff]
        %v1856 = vld [vmem:[#allocation9 + $0x620] sm:$0xff]
        %v1857 = vld [vmem:[#allocation9 + $0x628] sm:$0xff]
        %v1858 = vld [vmem:[#allocation9 + $0x630] sm:$0xff]
        %v1859 = vld [vmem:[#allocation9 + $0x638] sm:$0xff]
        %v1860 = vld [vmem:[#allocation9 + $0x640] sm:$0xff]
        %v1861 = vld [vmem:[#allocation9 + $0x648] sm:$0xff]
        %v1862 = vld [vmem:[#allocation9 + $0x650] sm:$0xff]
        %v1863 = vld [vmem:[#allocation9 + $0x658] sm:$0xff]
        %v1864 = vld [vmem:[#allocation9 + $0x660] sm:$0xff]
        %v1865 = vld [vmem:[#allocation9 + $0x668] sm:$0xff]
        %v1866 = vld [vmem:[#allocation9 + $0x670] sm:$0xff]
        %v1867 = vld [vmem:[#allocation9 + $0x678] sm:$0xff]
        %1868 = vmatprep.subr.mxu0 0.0
        %1869 = vmatpush1.msra.mxu0 %v1675
        %1870 = vmatprep.subr.mxu0 0.0
        %1871 = vmatpush1.msra.mxu0 %v1674
        %1872 = vmatprep.subr.mxu0 0.0
        %1873 = vmatpush1.msra.mxu0 %v1673
        %1874 = vmatprep.subr.mxu0 0.0
        %1875 = vmatpush1.msra.mxu0 %v1672
        %1876 = vmatprep.subr.mxu0 0.0
        %1877 = vmatpush1.msra.mxu0 %v1671
        %1878 = vmatprep.subr.mxu0 0.0
        %1879 = vmatpush1.msra.mxu0 %v1670
        %1880 = vmatprep.subr.mxu0 0.0
        %1881 = vmatpush1.msra.mxu0 %v1669
        %1882 = vmatprep.subr.mxu0 0.0
        %1883 = vmatpush1.msra.mxu0 %v1668
        %1884 = vmatprep.subr.mxu0 0.0
        %1885 = vmatpush1.msra.mxu0 %v1667
        %1886 = vmatprep.subr.mxu0 0.0
        %1887 = vmatpush1.msra.mxu0 %v1666
        %1888 = vmatprep.subr.mxu0 0.0
        %1889 = vmatpush1.msra.mxu0 %v1665
        %1890 = vmatprep.subr.mxu0 0.0
        %1891 = vmatpush1.msra.mxu0 %v1664
        %1892 = vmatprep.subr.mxu0 0.0
        %1893 = vmatpush1.msra.mxu0 %v1663
        %1894 = vmatprep.subr.mxu0 0.0
        %1895 = vmatpush1.msra.mxu0 %v1662
        %1896 = vmatprep.subr.mxu0 0.0
        %1897 = vmatpush1.msra.mxu0 %v1661
        %1898 = vmatprep.subr.mxu0 0.0
        %1899 = vmatpush1.msra.mxu0 %v1660
        %1900 = vmatprep.subr.mxu0 0.0
        %1901 = vmatpush2.msra.mxu0 %v1691
        %1902 = vmatprep.subr.mxu0 0.0
        %1903 = vmatpush2.msra.mxu0 %v1690
        %1904 = vmatprep.subr.mxu0 0.0
        %1905 = vmatpush2.msra.mxu0 %v1689
        %1906 = vmatprep.subr.mxu0 0.0
        %1907 = vmatpush2.msra.mxu0 %v1688
        %1908 = vmatprep.subr.mxu0 0.0
        %1909 = vmatpush2.msra.mxu0 %v1687
        %1910 = vmatprep.subr.mxu0 0.0
        %1911 = vmatpush2.msra.mxu0 %v1686
        %1912 = vmatprep.subr.mxu0 0.0
        %1913 = vmatpush2.msra.mxu0 %v1685
        %1914 = vmatprep.subr.mxu0 0.0
        %1915 = vmatpush2.msra.mxu0 %v1684
        %1916 = vmatprep.subr.mxu0 0.0
        %1917 = vmatpush2.msra.mxu0 %v1683
        %1918 = vmatprep.subr.mxu0 0.0
        %1919 = vmatpush2.msra.mxu0 %v1682
        %1920 = vmatprep.subr.mxu0 0.0
        %1921 = vmatpush2.msra.mxu0 %v1681
        %1922 = vmatprep.subr.mxu0 0.0
        %1923 = vmatpush2.msra.mxu0 %v1680
        %1924 = vmatprep.subr.mxu0 0.0
        %1925 = vmatpush2.msra.mxu0 %v1679
        %1926 = vmatprep.subr.mxu0 0.0
        %1927 = vmatpush2.msra.mxu0 %v1678
        %1928 = vmatprep.subr.mxu0 0.0
        %1929 = vmatpush2.msra.mxu0 %v1677
        %1930 = vmatprep.subr.mxu0 0.0
        %1931 = vmatpush2.msra.mxu0 %v1676
        %1932 = vmatprep.mubr.f32.mxu0 %v1609
        %1933 = vmatmul.mubr.f32.gmra.mxu0 %v1608
        %v1934 = vpop.f32.mrf.mxu0
        %v1935 = vadd.f32 0.0, %v1934
        %v1936 = vpop.f32.mrf.mxu0
        %1937 = vmatprep.mubr.f32.mxu0 %v1622
        %1938 = vmatmul.mubr.f32.gmra.mxu0 %v1621
        %v1939 = vpop.f32.mrf.mxu0
        %v1940 = vadd.f32 0.0, %v1939
        %v1941 = vpop.f32.mrf.mxu0
        %1942 = vmatprep.mubr.f32.mxu0 %v1635
        %1943 = vmatmul.mubr.f32.gmra.mxu0 %v1634
        %v1944 = vpop.f32.mrf.mxu0
        %v1945 = vadd.f32 0.0, %v1944
        %v1946 = vpop.f32.mrf.mxu0
        %1947 = vmatprep.mubr.f32.mxu0 %v1648
        %1948 = vmatmul.mubr.f32.gmra.mxu0 %v1647
        %v1949 = vpop.f32.mrf.mxu0
        %v1950 = vadd.f32 0.0, %v1949
        %v1951 = vpop.f32.mrf.mxu0
        %1952 = vdwg.mxu0
        %1953 = vmatprep.subr.mxu0 0.0
        %1954 = vmatpush1.msra.mxu0 %v1707
        %1955 = vmatprep.subr.mxu0 0.0
        %1956 = vmatpush1.msra.mxu0 %v1706
        %1957 = vmatprep.subr.mxu0 0.0
        %1958 = vmatpush1.msra.mxu0 %v1705
        %1959 = vmatprep.subr.mxu0 0.0
        %1960 = vmatpush1.msra.mxu0 %v1704
        %1961 = vmatprep.subr.mxu0 0.0
        %1962 = vmatpush1.msra.mxu0 %v1703
        %1963 = vmatprep.subr.mxu0 0.0
        %1964 = vmatpush1.msra.mxu0 %v1702
        %1965 = vmatprep.subr.mxu0 0.0
        %1966 = vmatpush1.msra.mxu0 %v1701
        %1967 = vmatprep.subr.mxu0 0.0
        %1968 = vmatpush1.msra.mxu0 %v1700
        %1969 = vmatprep.subr.mxu0 0.0
        %1970 = vmatpush1.msra.mxu0 %v1699
        %1971 = vmatprep.subr.mxu0 0.0
        %1972 = vmatpush1.msra.mxu0 %v1698
        %1973 = vmatprep.subr.mxu0 0.0
        %1974 = vmatpush1.msra.mxu0 %v1697
        %1975 = vmatprep.subr.mxu0 0.0
        %1976 = vmatpush1.msra.mxu0 %v1696
        %1977 = vmatprep.subr.mxu0 0.0
        %1978 = vmatpush1.msra.mxu0 %v1695
        %1979 = vmatprep.subr.mxu0 0.0
        %1980 = vmatpush1.msra.mxu0 %v1694
        %1981 = vmatprep.subr.mxu0 0.0
        %1982 = vmatpush1.msra.mxu0 %v1693
        %1983 = vmatprep.subr.mxu0 0.0
        %1984 = vmatpush1.msra.mxu0 %v1692
        %1985 = vmatprep.subr.mxu0 0.0
        %1986 = vmatpush2.msra.mxu0 %v1723
        %1987 = vmatprep.subr.mxu0 0.0
        %1988 = vmatpush2.msra.mxu0 %v1722
        %1989 = vmatprep.subr.mxu0 0.0
        %1990 = vmatpush2.msra.mxu0 %v1721
        %1991 = vmatprep.subr.mxu0 0.0
        %1992 = vmatpush2.msra.mxu0 %v1720
        %1993 = vmatprep.subr.mxu0 0.0
        %1994 = vmatpush2.msra.mxu0 %v1719
        %1995 = vmatprep.subr.mxu0 0.0
        %1996 = vmatpush2.msra.mxu0 %v1718
        %1997 = vmatprep.subr.mxu0 0.0
        %1998 = vmatpush2.msra.mxu0 %v1717
        %1999 = vmatprep.subr.mxu0 0.0
        %2000 = vmatpush2.msra.mxu0 %v1716
        %2001 = vmatprep.subr.mxu0 0.0
        %2002 = vmatpush2.msra.mxu0 %v1715
        %2003 = vmatprep.subr.mxu0 0.0
        %2004 = vmatpush2.msra.mxu0 %v1714
        %2005 = vmatprep.subr.mxu0 0.0
        %2006 = vmatpush2.msra.mxu0 %v1713
        %2007 = vmatprep.subr.mxu0 0.0
        %2008 = vmatpush2.msra.mxu0 %v1712
        %2009 = vmatprep.subr.mxu0 0.0
        %2010 = vmatpush2.msra.mxu0 %v1711
        %2011 = vmatprep.subr.mxu0 0.0
        %2012 = vmatpush2.msra.mxu0 %v1710
        %2013 = vmatprep.subr.mxu0 0.0
        %2014 = vmatpush2.msra.mxu0 %v1709
        %2015 = vmatprep.subr.mxu0 0.0
        %2016 = vmatpush2.msra.mxu0 %v1708
        %2017 = vmatprep.mubr.f32.mxu0 %v1611
        %2018 = vmatmul.mubr.f32.gmra.mxu0 %v1610
        %v2019 = vpop.f32.mrf.mxu0
        %v2020 = vadd.f32 %v1935, %v2019
        %v2021 = vpop.f32.mrf.mxu0
        %2022 = vmatprep.mubr.f32.mxu0 %v1624
        %2023 = vmatmul.mubr.f32.gmra.mxu0 %v1623
        %v2024 = vpop.f32.mrf.mxu0
        %v2025 = vadd.f32 %v1940, %v2024
        %v2026 = vpop.f32.mrf.mxu0
        %2027 = vmatprep.mubr.f32.mxu0 %v1637
        %2028 = vmatmul.mubr.f32.gmra.mxu0 %v1636
        %v2029 = vpop.f32.mrf.mxu0
        %v2030 = vadd.f32 %v1945, %v2029
        %v2031 = vpop.f32.mrf.mxu0
        %2032 = vmatprep.mubr.f32.mxu0 %v1650
        %2033 = vmatmul.mubr.f32.gmra.mxu0 %v1649
        %v2034 = vpop.f32.mrf.mxu0
        %v2035 = vadd.f32 %v1950, %v2034
        %v2036 = vpop.f32.mrf.mxu0
        %2037 = vdwg.mxu0
        %2038 = vmatprep.subr.mxu0 0.0
        %2039 = vmatpush1.msra.mxu0 %v1739
        %2040 = vmatprep.subr.mxu0 0.0
        %2041 = vmatpush1.msra.mxu0 %v1738
        %2042 = vmatprep.subr.mxu0 0.0
        %2043 = vmatpush1.msra.mxu0 %v1737
        %2044 = vmatprep.subr.mxu0 0.0
        %2045 = vmatpush1.msra.mxu0 %v1736
        %2046 = vmatprep.subr.mxu0 0.0
        %2047 = vmatpush1.msra.mxu0 %v1735
        %2048 = vmatprep.subr.mxu0 0.0
        %2049 = vmatpush1.msra.mxu0 %v1734
        %2050 = vmatprep.subr.mxu0 0.0
        %2051 = vmatpush1.msra.mxu0 %v1733
        %2052 = vmatprep.subr.mxu0 0.0
        %2053 = vmatpush1.msra.mxu0 %v1732
        %2054 = vmatprep.subr.mxu0 0.0
        %2055 = vmatpush1.msra.mxu0 %v1731
        %2056 = vmatprep.subr.mxu0 0.0
        %2057 = vmatpush1.msra.mxu0 %v1730
        %2058 = vmatprep.subr.mxu0 0.0
        %2059 = vmatpush1.msra.mxu0 %v1729
        %2060 = vmatprep.subr.mxu0 0.0
        %2061 = vmatpush1.msra.mxu0 %v1728
        %2062 = vmatprep.subr.mxu0 0.0
        %2063 = vmatpush1.msra.mxu0 %v1727
        %2064 = vmatprep.subr.mxu0 0.0
        %2065 = vmatpush1.msra.mxu0 %v1726
        %2066 = vmatprep.subr.mxu0 0.0
        %2067 = vmatpush1.msra.mxu0 %v1725
        %2068 = vmatprep.subr.mxu0 0.0
        %2069 = vmatpush1.msra.mxu0 %v1724
        %2070 = vmatprep.subr.mxu0 0.0
        %2071 = vmatpush2.msra.mxu0 %v1755
        %2072 = vmatprep.subr.mxu0 0.0
        %2073 = vmatpush2.msra.mxu0 %v1754
        %2074 = vmatprep.subr.mxu0 0.0
        %2075 = vmatpush2.msra.mxu0 %v1753
        %2076 = vmatprep.subr.mxu0 0.0
        %2077 = vmatpush2.msra.mxu0 %v1752
        %2078 = vmatprep.subr.mxu0 0.0
        %2079 = vmatpush2.msra.mxu0 %v1751
        %2080 = vmatprep.subr.mxu0 0.0
        %2081 = vmatpush2.msra.mxu0 %v1750
        %2082 = vmatprep.subr.mxu0 0.0
        %2083 = vmatpush2.msra.mxu0 %v1749
        %2084 = vmatprep.subr.mxu0 0.0
        %2085 = vmatpush2.msra.mxu0 %v1748
        %2086 = vmatprep.subr.mxu0 0.0
        %2087 = vmatpush2.msra.mxu0 %v1747
        %2088 = vmatprep.subr.mxu0 0.0
        %2089 = vmatpush2.msra.mxu0 %v1746
        %2090 = vmatprep.subr.mxu0 0.0
        %2091 = vmatpush2.msra.mxu0 %v1745
        %2092 = vmatprep.subr.mxu0 0.0
        %2093 = vmatpush2.msra.mxu0 %v1744
        %2094 = vmatprep.subr.mxu0 0.0
        %2095 = vmatpush2.msra.mxu0 %v1743
        %2096 = vmatprep.subr.mxu0 0.0
        %2097 = vmatpush2.msra.mxu0 %v1742
        %2098 = vmatprep.subr.mxu0 0.0
        %2099 = vmatpush2.msra.mxu0 %v1741
        %2100 = vmatprep.subr.mxu0 0.0
        %2101 = vmatpush2.msra.mxu0 %v1740
        %2102 = vmatprep.mubr.f32.mxu0 %v1613
        %2103 = vmatmul.mubr.f32.gmra.mxu0 %v1612
        %v2104 = vpop.f32.mrf.mxu0
        %v2105 = vadd.f32 %v2020, %v2104
        %v2106 = vpop.f32.mrf.mxu0
        %2107 = vmatprep.mubr.f32.mxu0 %v1626
        %2108 = vmatmul.mubr.f32.gmra.mxu0 %v1625
        %v2109 = vpop.f32.mrf.mxu0
        %v2110 = vadd.f32 %v2025, %v2109
        %v2111 = vpop.f32.mrf.mxu0
        %2112 = vmatprep.mubr.f32.mxu0 %v1639
        %2113 = vmatmul.mubr.f32.gmra.mxu0 %v1638
        %v2114 = vpop.f32.mrf.mxu0
        %v2115 = vadd.f32 %v2030, %v2114
        %v2116 = vpop.f32.mrf.mxu0
        %2117 = vmatprep.mubr.f32.mxu0 %v1652
        %2118 = vmatmul.mubr.f32.gmra.mxu0 %v1651
        %v2119 = vpop.f32.mrf.mxu0
        %v2120 = vadd.f32 %v2035, %v2119
        %v2121 = vpop.f32.mrf.mxu0
        %2122 = vdwg.mxu0
        %2123 = vmatprep.subr.mxu0 0.0
        %2124 = vmatpush1.msra.mxu0 %v1771
        %2125 = vmatprep.subr.mxu0 0.0
        %2126 = vmatpush1.msra.mxu0 %v1770
        %2127 = vmatprep.subr.mxu0 0.0
        %2128 = vmatpush1.msra.mxu0 %v1769
        %2129 = vmatprep.subr.mxu0 0.0
        %2130 = vmatpush1.msra.mxu0 %v1768
        %2131 = vmatprep.subr.mxu0 0.0
        %2132 = vmatpush1.msra.mxu0 %v1767
        %2133 = vmatprep.subr.mxu0 0.0
        %2134 = vmatpush1.msra.mxu0 %v1766
        %2135 = vmatprep.subr.mxu0 0.0
        %2136 = vmatpush1.msra.mxu0 %v1765
        %2137 = vmatprep.subr.mxu0 0.0
        %2138 = vmatpush1.msra.mxu0 %v1764
        %2139 = vmatprep.subr.mxu0 0.0
        %2140 = vmatpush1.msra.mxu0 %v1763
        %2141 = vmatprep.subr.mxu0 0.0
        %2142 = vmatpush1.msra.mxu0 %v1762
        %2143 = vmatprep.subr.mxu0 0.0
        %2144 = vmatpush1.msra.mxu0 %v1761
        %2145 = vmatprep.subr.mxu0 0.0
        %2146 = vmatpush1.msra.mxu0 %v1760
        %2147 = vmatprep.subr.mxu0 0.0
        %2148 = vmatpush1.msra.mxu0 %v1759
        %2149 = vmatprep.subr.mxu0 0.0
        %2150 = vmatpush1.msra.mxu0 %v1758
        %2151 = vmatprep.subr.mxu0 0.0
        %2152 = vmatpush1.msra.mxu0 %v1757
        %2153 = vmatprep.subr.mxu0 0.0
        %2154 = vmatpush1.msra.mxu0 %v1756
        %2155 = vmatprep.subr.mxu0 0.0
        %2156 = vmatpush2.msra.mxu0 %v1787
        %2157 = vmatprep.subr.mxu0 0.0
        %2158 = vmatpush2.msra.mxu0 %v1786
        %2159 = vmatprep.subr.mxu0 0.0
        %2160 = vmatpush2.msra.mxu0 %v1785
        %2161 = vmatprep.subr.mxu0 0.0
        %2162 = vmatpush2.msra.mxu0 %v1784
        %2163 = vmatprep.subr.mxu0 0.0
        %2164 = vmatpush2.msra.mxu0 %v1783
        %2165 = vmatprep.subr.mxu0 0.0
        %2166 = vmatpush2.msra.mxu0 %v1782
        %2167 = vmatprep.subr.mxu0 0.0
        %2168 = vmatpush2.msra.mxu0 %v1781
        %2169 = vmatprep.subr.mxu0 0.0
        %2170 = vmatpush2.msra.mxu0 %v1780
        %2171 = vmatprep.subr.mxu0 0.0
        %2172 = vmatpush2.msra.mxu0 %v1779
        %2173 = vmatprep.subr.mxu0 0.0
        %2174 = vmatpush2.msra.mxu0 %v1778
        %2175 = vmatprep.subr.mxu0 0.0
        %2176 = vmatpush2.msra.mxu0 %v1777
        %2177 = vmatprep.subr.mxu0 0.0
        %2178 = vmatpush2.msra.mxu0 %v1776
        %2179 = vmatprep.subr.mxu0 0.0
        %2180 = vmatpush2.msra.mxu0 %v1775
        %2181 = vmatprep.subr.mxu0 0.0
        %2182 = vmatpush2.msra.mxu0 %v1774
        %2183 = vmatprep.subr.mxu0 0.0
        %2184 = vmatpush2.msra.mxu0 %v1773
        %2185 = vmatprep.subr.mxu0 0.0
        %2186 = vmatpush2.msra.mxu0 %v1772
        %2187 = vmatprep.mubr.f32.mxu0 %v1615
        %2188 = vmatmul.mubr.f32.gmra.mxu0 %v1614
        %v2189 = vpop.f32.mrf.mxu0
        %v2190 = vadd.f32 %v2105, %v2189
        %v2191 = vpop.f32.mrf.mxu0
        %2192 = vmatprep.mubr.f32.mxu0 %v1628
        %2193 = vmatmul.mubr.f32.gmra.mxu0 %v1627
        %v2194 = vpop.f32.mrf.mxu0
        %v2195 = vadd.f32 %v2110, %v2194
        %v2196 = vpop.f32.mrf.mxu0
        %2197 = vmatprep.mubr.f32.mxu0 %v1641
        %2198 = vmatmul.mubr.f32.gmra.mxu0 %v1640
        %v2199 = vpop.f32.mrf.mxu0
        %v2200 = vadd.f32 %v2115, %v2199
        %v2201 = vpop.f32.mrf.mxu0
        %2202 = vmatprep.mubr.f32.mxu0 %v1654
        %2203 = vmatmul.mubr.f32.gmra.mxu0 %v1653
        %v2204 = vpop.f32.mrf.mxu0
        %v2205 = vadd.f32 %v2120, %v2204
        %v2206 = vpop.f32.mrf.mxu0
        %2207 = vdwg.mxu0
        %2208 = vmatprep.subr.mxu0 0.0
        %2209 = vmatpush1.msra.mxu0 %v1803
        %2210 = vmatprep.subr.mxu0 0.0
        %2211 = vmatpush1.msra.mxu0 %v1802
        %2212 = vmatprep.subr.mxu0 0.0
        %2213 = vmatpush1.msra.mxu0 %v1801
        %2214 = vmatprep.subr.mxu0 0.0
        %2215 = vmatpush1.msra.mxu0 %v1800
        %2216 = vmatprep.subr.mxu0 0.0
        %2217 = vmatpush1.msra.mxu0 %v1799
        %2218 = vmatprep.subr.mxu0 0.0
        %2219 = vmatpush1.msra.mxu0 %v1798
        %2220 = vmatprep.subr.mxu0 0.0
        %2221 = vmatpush1.msra.mxu0 %v1797
        %2222 = vmatprep.subr.mxu0 0.0
        %2223 = vmatpush1.msra.mxu0 %v1796
        %2224 = vmatprep.subr.mxu0 0.0
        %2225 = vmatpush1.msra.mxu0 %v1795
        %2226 = vmatprep.subr.mxu0 0.0
        %2227 = vmatpush1.msra.mxu0 %v1794
        %2228 = vmatprep.subr.mxu0 0.0
        %2229 = vmatpush1.msra.mxu0 %v1793
        %2230 = vmatprep.subr.mxu0 0.0
        %2231 = vmatpush1.msra.mxu0 %v1792
        %2232 = vmatprep.subr.mxu0 0.0
        %2233 = vmatpush1.msra.mxu0 %v1791
        %2234 = vmatprep.subr.mxu0 0.0
        %2235 = vmatpush1.msra.mxu0 %v1790
        %2236 = vmatprep.subr.mxu0 0.0
        %2237 = vmatpush1.msra.mxu0 %v1789
        %2238 = vmatprep.subr.mxu0 0.0
        %2239 = vmatpush1.msra.mxu0 %v1788
        %2240 = vmatprep.subr.mxu0 0.0
        %2241 = vmatpush2.msra.mxu0 %v1819
        %2242 = vmatprep.subr.mxu0 0.0
        %2243 = vmatpush2.msra.mxu0 %v1818
        %2244 = vmatprep.subr.mxu0 0.0
        %2245 = vmatpush2.msra.mxu0 %v1817
        %2246 = vmatprep.subr.mxu0 0.0
        %2247 = vmatpush2.msra.mxu0 %v1816
        %2248 = vmatprep.subr.mxu0 0.0
        %2249 = vmatpush2.msra.mxu0 %v1815
        %2250 = vmatprep.subr.mxu0 0.0
        %2251 = vmatpush2.msra.mxu0 %v1814
        %2252 = vmatprep.subr.mxu0 0.0
        %2253 = vmatpush2.msra.mxu0 %v1813
        %2254 = vmatprep.subr.mxu0 0.0
        %2255 = vmatpush2.msra.mxu0 %v1812
        %2256 = vmatprep.subr.mxu0 0.0
        %2257 = vmatpush2.msra.mxu0 %v1811
        %2258 = vmatprep.subr.mxu0 0.0
        %2259 = vmatpush2.msra.mxu0 %v1810
        %2260 = vmatprep.subr.mxu0 0.0
        %2261 = vmatpush2.msra.mxu0 %v1809
        %2262 = vmatprep.subr.mxu0 0.0
        %2263 = vmatpush2.msra.mxu0 %v1808
        %2264 = vmatprep.subr.mxu0 0.0
        %2265 = vmatpush2.msra.mxu0 %v1807
        %2266 = vmatprep.subr.mxu0 0.0
        %2267 = vmatpush2.msra.mxu0 %v1806
        %2268 = vmatprep.subr.mxu0 0.0
        %2269 = vmatpush2.msra.mxu0 %v1805
        %2270 = vmatprep.subr.mxu0 0.0
        %2271 = vmatpush2.msra.mxu0 %v1804
        %2272 = vmatprep.mubr.f32.mxu0 %v1617
        %2273 = vmatmul.mubr.f32.gmra.mxu0 %v1616
        %v2274 = vpop.f32.mrf.mxu0
        %v2275 = vadd.f32 %v2190, %v2274
        %v2276 = vpop.f32.mrf.mxu0
        %2277 = vmatprep.mubr.f32.mxu0 %v1630
        %2278 = vmatmul.mubr.f32.gmra.mxu0 %v1629
        %v2279 = vpop.f32.mrf.mxu0
        %v2280 = vadd.f32 %v2195, %v2279
        %v2281 = vpop.f32.mrf.mxu0
        %2282 = vmatprep.mubr.f32.mxu0 %v1643
        %2283 = vmatmul.mubr.f32.gmra.mxu0 %v1642
        %v2284 = vpop.f32.mrf.mxu0
        %v2285 = vadd.f32 %v2200, %v2284
        %v2286 = vpop.f32.mrf.mxu0
        %2287 = vmatprep.mubr.f32.mxu0 %v1656
        %2288 = vmatmul.mubr.f32.gmra.mxu0 %v1655
        %v2289 = vpop.f32.mrf.mxu0
        %v2290 = vadd.f32 %v2205, %v2289
        %v2291 = vpop.f32.mrf.mxu0
        %2292 = vdwg.mxu0
        %2293 = vmatprep.subr.mxu0 0.0
        %2294 = vmatpush1.msra.mxu0 %v1835
        %2295 = vmatprep.subr.mxu0 0.0
        %2296 = vmatpush1.msra.mxu0 %v1834
        %2297 = vmatprep.subr.mxu0 0.0
        %2298 = vmatpush1.msra.mxu0 %v1833
        %2299 = vmatprep.subr.mxu0 0.0
        %2300 = vmatpush1.msra.mxu0 %v1832
        %2301 = vmatprep.subr.mxu0 0.0
        %2302 = vmatpush1.msra.mxu0 %v1831
        %2303 = vmatprep.subr.mxu0 0.0
        %2304 = vmatpush1.msra.mxu0 %v1830
        %2305 = vmatprep.subr.mxu0 0.0
        %2306 = vmatpush1.msra.mxu0 %v1829
        %2307 = vmatprep.subr.mxu0 0.0
        %2308 = vmatpush1.msra.mxu0 %v1828
        %2309 = vmatprep.subr.mxu0 0.0
        %2310 = vmatpush1.msra.mxu0 %v1827
        %2311 = vmatprep.subr.mxu0 0.0
        %2312 = vmatpush1.msra.mxu0 %v1826
        %2313 = vmatprep.subr.mxu0 0.0
        %2314 = vmatpush1.msra.mxu0 %v1825
        %2315 = vmatprep.subr.mxu0 0.0
        %2316 = vmatpush1.msra.mxu0 %v1824
        %2317 = vmatprep.subr.mxu0 0.0
        %2318 = vmatpush1.msra.mxu0 %v1823
        %2319 = vmatprep.subr.mxu0 0.0
        %2320 = vmatpush1.msra.mxu0 %v1822
        %2321 = vmatprep.subr.mxu0 0.0
        %2322 = vmatpush1.msra.mxu0 %v1821
        %2323 = vmatprep.subr.mxu0 0.0
        %2324 = vmatpush1.msra.mxu0 %v1820
        %2325 = vmatprep.subr.mxu0 0.0
        %2326 = vmatpush2.msra.mxu0 %v1851
        %2327 = vmatprep.subr.mxu0 0.0
        %2328 = vmatpush2.msra.mxu0 %v1850
        %2329 = vmatprep.subr.mxu0 0.0
        %2330 = vmatpush2.msra.mxu0 %v1849
        %2331 = vmatprep.subr.mxu0 0.0
        %2332 = vmatpush2.msra.mxu0 %v1848
        %2333 = vmatprep.subr.mxu0 0.0
        %2334 = vmatpush2.msra.mxu0 %v1847
        %2335 = vmatprep.subr.mxu0 0.0
        %2336 = vmatpush2.msra.mxu0 %v1846
        %2337 = vmatprep.subr.mxu0 0.0
        %2338 = vmatpush2.msra.mxu0 %v1845
        %2339 = vmatprep.subr.mxu0 0.0
        %2340 = vmatpush2.msra.mxu0 %v1844
        %2341 = vmatprep.subr.mxu0 0.0
        %2342 = vmatpush2.msra.mxu0 %v1843
        %2343 = vmatprep.subr.mxu0 0.0
        %2344 = vmatpush2.msra.mxu0 %v1842
        %2345 = vmatprep.subr.mxu0 0.0
        %2346 = vmatpush2.msra.mxu0 %v1841
        %2347 = vmatprep.subr.mxu0 0.0
        %2348 = vmatpush2.msra.mxu0 %v1840
        %2349 = vmatprep.subr.mxu0 0.0
        %2350 = vmatpush2.msra.mxu0 %v1839
        %2351 = vmatprep.subr.mxu0 0.0
        %2352 = vmatpush2.msra.mxu0 %v1838
        %2353 = vmatprep.subr.mxu0 0.0
        %2354 = vmatpush2.msra.mxu0 %v1837
        %2355 = vmatprep.subr.mxu0 0.0
        %2356 = vmatpush2.msra.mxu0 %v1836
        %2357 = vmatprep.mubr.f32.mxu0 %v1619
        %2358 = vmatmul.mubr.f32.gmra.mxu0 %v1618
        %v2359 = vpop.f32.mrf.mxu0
        %v2360 = vadd.f32 %v2275, %v2359
        %v2361 = vpop.f32.mrf.mxu0
        %2362 = vmatprep.mubr.f32.mxu0 %v1632
        %2363 = vmatmul.mubr.f32.gmra.mxu0 %v1631
        %v2364 = vpop.f32.mrf.mxu0
        %v2365 = vadd.f32 %v2280, %v2364
        %v2366 = vpop.f32.mrf.mxu0
        %2367 = vmatprep.mubr.f32.mxu0 %v1645
        %2368 = vmatmul.mubr.f32.gmra.mxu0 %v1644
        %v2369 = vpop.f32.mrf.mxu0
        %v2370 = vadd.f32 %v2285, %v2369
        %v2371 = vpop.f32.mrf.mxu0
        %2372 = vmatprep.mubr.f32.mxu0 %v1658
        %2373 = vmatmul.mubr.f32.gmra.mxu0 %v1657
        %v2374 = vpop.f32.mrf.mxu0
        %v2375 = vadd.f32 %v2290, %v2374
        %v2376 = vpop.f32.mrf.mxu0
        %2377 = vdwg.mxu0
        %2378 = vmatprep.subr.mxu0 0.0
        %2379 = vmatpush1.msra.mxu0 %v1867
        %2380 = vmatprep.subr.mxu0 0.0
        %2381 = vmatpush1.msra.mxu0 %v1866
        %2382 = vmatprep.subr.mxu0 0.0
        %2383 = vmatpush1.msra.mxu0 %v1865
        %2384 = vmatprep.subr.mxu0 0.0
        %2385 = vmatpush1.msra.mxu0 %v1864
        %2386 = vmatprep.subr.mxu0 0.0
        %2387 = vmatpush1.msra.mxu0 %v1863
        %2388 = vmatprep.subr.mxu0 0.0
        %2389 = vmatpush1.msra.mxu0 %v1862
        %2390 = vmatprep.subr.mxu0 0.0
        %2391 = vmatpush1.msra.mxu0 %v1861
        %2392 = vmatprep.subr.mxu0 0.0
        %2393 = vmatpush1.msra.mxu0 %v1860
        %2394 = vmatprep.subr.mxu0 0.0
        %2395 = vmatpush1.msra.mxu0 %v1859
        %2396 = vmatprep.subr.mxu0 0.0
        %2397 = vmatpush1.msra.mxu0 %v1858
        %2398 = vmatprep.subr.mxu0 0.0
        %2399 = vmatpush1.msra.mxu0 %v1857
        %2400 = vmatprep.subr.mxu0 0.0
        %2401 = vmatpush1.msra.mxu0 %v1856
        %2402 = vmatprep.subr.mxu0 0.0
        %2403 = vmatpush1.msra.mxu0 %v1855
        %2404 = vmatprep.subr.mxu0 0.0
        %2405 = vmatpush1.msra.mxu0 %v1854
        %2406 = vmatprep.subr.mxu0 0.0
        %2407 = vmatpush1.msra.mxu0 %v1853
        %2408 = vmatprep.subr.mxu0 0.0
        %2409 = vmatpush1.msra.mxu0 %v1852
        %2410 = vmatprep.subr.mxu0 0.0
        %2411 = vmatpush2.msra.mxu0 0.0
        %2412 = vmatprep.subr.mxu0 0.0
        %2413 = vmatpush2.msra.mxu0 0.0
        %2414 = vmatprep.subr.mxu0 0.0
        %2415 = vmatpush2.msra.mxu0 0.0
        %2416 = vmatprep.subr.mxu0 0.0
        %2417 = vmatpush2.msra.mxu0 0.0
        %2418 = vmatprep.subr.mxu0 0.0
        %2419 = vmatpush2.msra.mxu0 0.0
        %2420 = vmatprep.subr.mxu0 0.0
        %2421 = vmatpush2.msra.mxu0 0.0
        %2422 = vmatprep.subr.mxu0 0.0
        %2423 = vmatpush2.msra.mxu0 0.0
        %2424 = vmatprep.subr.mxu0 0.0
        %2425 = vmatpush2.msra.mxu0 0.0
        %2426 = vmatprep.subr.mxu0 0.0
        %2427 = vmatpush2.msra.mxu0 0.0
        %2428 = vmatprep.subr.mxu0 0.0
        %2429 = vmatpush2.msra.mxu0 0.0
        %2430 = vmatprep.subr.mxu0 0.0
        %2431 = vmatpush2.msra.mxu0 0.0
        %2432 = vmatprep.subr.mxu0 0.0
        %2433 = vmatpush2.msra.mxu0 0.0
        %2434 = vmatprep.subr.mxu0 0.0
        %2435 = vmatpush2.msra.mxu0 0.0
        %2436 = vmatprep.subr.mxu0 0.0
        %2437 = vmatpush2.msra.mxu0 0.0
        %2438 = vmatprep.subr.mxu0 0.0
        %2439 = vmatpush2.msra.mxu0 0.0
        %2440 = vmatprep.subr.mxu0 0.0
        %2441 = vmatpush2.msra.mxu0 0.0
        %2442 = vmatprep.mubr.f32.mxu0 0.0
        %2443 = vmatmul.mubr.f32.gmra.mxu0 %v1620
        %v2444 = vpop.f32.mrf.mxu0
        %v2445 = vadd.f32 %v2360, %v2444
        %v2446 = vpop.f32.mrf.mxu0
        %2447 = vmatprep.mubr.f32.mxu0 0.0
        %2448 = vmatmul.mubr.f32.gmra.mxu0 %v1633
        %v2449 = vpop.f32.mrf.mxu0
        %v2450 = vadd.f32 %v2365, %v2449
        %v2451 = vpop.f32.mrf.mxu0
        %2452 = vmatprep.mubr.f32.mxu0 0.0
        %2453 = vmatmul.mubr.f32.gmra.mxu0 %v1646
        %v2454 = vpop.f32.mrf.mxu0
        %v2455 = vadd.f32 %v2370, %v2454
        %v2456 = vpop.f32.mrf.mxu0
        %2457 = vmatprep.mubr.f32.mxu0 0.0
        %2458 = vmatmul.mubr.f32.gmra.mxu0 %v1659
        %v2459 = vpop.f32.mrf.mxu0
        %v2460 = vadd.f32 %v2375, %v2459
        %v2461 = vpop.f32.mrf.mxu0
        %2462 = vdwg.mxu0
        %v2463 = vld [vmem:[%s312] sm:$0xff]
        %v2464 = vld [vmem:[%s312 + $0x8] sm:$0xff]
        %v2465 = vld [vmem:[%s312 + $0x10] sm:$0xff]
        %v2466 = vld [vmem:[%s312 + $0x18] sm:$0xff]
        %v2467 = vmax.f32 %v2463, 0.0
        %v2468 = vmax.f32 %v2464, 0.0
        %v2469 = vmax.f32 %v2465, 0.0
        %v2470 = vmax.f32 %v2466, 0.0
        %v2471 = vld [vmem:[#allocation8] sm:$0xff]
        %v2472 = vld [vmem:[#allocation8 + $0x8] sm:$0xff]
        %v2473 = vld [vmem:[#allocation8 + $0x10] sm:$0xff]
        %v2474 = vld [vmem:[#allocation8 + $0x18] sm:$0xff]
        %v2475 = vld [vmem:[#allocation8 + $0x20] sm:$0xff]
        %v2476 = vld [vmem:[#allocation8 + $0x28] sm:$0xff]
        %v2477 = vld [vmem:[#allocation8 + $0x30] sm:$0xff]
        %v2478 = vld [vmem:[#allocation8 + $0x38] sm:$0xff]
        %v2479 = vld [vmem:[#allocation8 + $0x40] sm:$0xff]
        %v2480 = vld [vmem:[#allocation8 + $0x48] sm:$0xff]
        %v2481 = vld [vmem:[#allocation8 + $0x50] sm:$0xff]
        %v2482 = vld [vmem:[#allocation8 + $0x58] sm:$0xff]
        %v2483 = vld [vmem:[#allocation8 + $0x60] sm:$0xff]
        %v2484 = vld [vmem:[#allocation8 + $0x68] sm:$0xff]
        %v2485 = vld [vmem:[#allocation8 + $0x70] sm:$0xff]
        %v2486 = vld [vmem:[#allocation8 + $0x78] sm:$0xff]
        %2487 = vmatprep.subr.mxu0 0.0
        %2488 = vmatpush1.msra.mxu0 %v2486
        %2489 = vmatprep.subr.mxu0 0.0
        %2490 = vmatpush1.msra.mxu0 %v2485
        %2491 = vmatprep.subr.mxu0 0.0
        %2492 = vmatpush1.msra.mxu0 %v2484
        %2493 = vmatprep.subr.mxu0 0.0
        %2494 = vmatpush1.msra.mxu0 %v2483
        %2495 = vmatprep.subr.mxu0 0.0
        %2496 = vmatpush1.msra.mxu0 %v2482
        %2497 = vmatprep.subr.mxu0 0.0
        %2498 = vmatpush1.msra.mxu0 %v2481
        %2499 = vmatprep.subr.mxu0 0.0
        %2500 = vmatpush1.msra.mxu0 %v2480
        %2501 = vmatprep.subr.mxu0 0.0
        %2502 = vmatpush1.msra.mxu0 %v2479
        %2503 = vmatprep.subr.mxu0 0.0
        %2504 = vmatpush1.msra.mxu0 %v2478
        %2505 = vmatprep.subr.mxu0 0.0
        %2506 = vmatpush1.msra.mxu0 %v2477
        %2507 = vmatprep.subr.mxu0 0.0
        %2508 = vmatpush1.msra.mxu0 %v2476
        %2509 = vmatprep.subr.mxu0 0.0
        %2510 = vmatpush1.msra.mxu0 %v2475
        %2511 = vmatprep.subr.mxu0 0.0
        %2512 = vmatpush1.msra.mxu0 %v2474
        %2513 = vmatprep.subr.mxu0 0.0
        %2514 = vmatpush1.msra.mxu0 %v2473
        %2515 = vmatprep.subr.mxu0 0.0
        %2516 = vmatpush1.msra.mxu0 %v2472
        %2517 = vmatprep.subr.mxu0 0.0
        %2518 = vmatpush1.msra.mxu0 %v2471
        %2519 = vmatprep.subr.mxu0 0.0
        %2520 = vmatpush2.msra.mxu0 0.0
        %2521 = vmatprep.subr.mxu0 0.0
        %2522 = vmatpush2.msra.mxu0 0.0
        %2523 = vmatprep.subr.mxu0 0.0
        %2524 = vmatpush2.msra.mxu0 0.0
        %2525 = vmatprep.subr.mxu0 0.0
        %2526 = vmatpush2.msra.mxu0 0.0
        %2527 = vmatprep.subr.mxu0 0.0
        %2528 = vmatpush2.msra.mxu0 0.0
        %2529 = vmatprep.subr.mxu0 0.0
        %2530 = vmatpush2.msra.mxu0 0.0
        %2531 = vmatprep.subr.mxu0 0.0
        %2532 = vmatpush2.msra.mxu0 0.0
        %2533 = vmatprep.subr.mxu0 0.0
        %2534 = vmatpush2.msra.mxu0 0.0
        %2535 = vmatprep.subr.mxu0 0.0
        %2536 = vmatpush2.msra.mxu0 0.0
        %2537 = vmatprep.subr.mxu0 0.0
        %2538 = vmatpush2.msra.mxu0 0.0
        %2539 = vmatprep.subr.mxu0 0.0
        %2540 = vmatpush2.msra.mxu0 0.0
        %2541 = vmatprep.subr.mxu0 0.0
        %2542 = vmatpush2.msra.mxu0 0.0
        %2543 = vmatprep.subr.mxu0 0.0
        %2544 = vmatpush2.msra.mxu0 0.0
        %2545 = vmatprep.subr.mxu0 0.0
        %2546 = vmatpush2.msra.mxu0 0.0
        %2547 = vmatprep.subr.mxu0 0.0
        %2548 = vmatpush2.msra.mxu0 0.0
        %2549 = vmatprep.subr.mxu0 0.0
        %2550 = vmatpush2.msra.mxu0 0.0
        %2551 = vmatprep.mubr.f32.mxu0 0.0
        %2552 = vmatmul.mubr.f32.gmra.mxu0 %v2467
        %v2553 = vpop.f32.mrf.mxu0
        %v2554 = vadd.f32 %v2445, %v2553
        %v2555 = vpop.f32.mrf.mxu0
        %2556 = vmatprep.mubr.f32.mxu0 0.0
        %2557 = vmatmul.mubr.f32.gmra.mxu0 %v2468
        %v2558 = vpop.f32.mrf.mxu0
        %v2559 = vadd.f32 %v2450, %v2558
        %v2560 = vpop.f32.mrf.mxu0
        %2561 = vmatprep.mubr.f32.mxu0 0.0
        %2562 = vmatmul.mubr.f32.gmra.mxu0 %v2469
        %v2563 = vpop.f32.mrf.mxu0
        %v2564 = vadd.f32 %v2455, %v2563
        %v2565 = vpop.f32.mrf.mxu0
        %2566 = vmatprep.mubr.f32.mxu0 0.0
        %2567 = vmatmul.mubr.f32.gmra.mxu0 %v2470
        %v2568 = vpop.f32.mrf.mxu0
        %v2569 = vadd.f32 %v2460, %v2568
        %v2570 = vpop.f32.mrf.mxu0
        %2571 = vdwg.mxu0
        %2572 = vst [vmem:[%s312] sm:$0xff] %v2554
        %2573 = vst [vmem:[%s312 + $0x8] sm:$0xff] %v2559
        %2574 = vst [vmem:[%s312 + $0x10] sm:$0xff] %v2564
        %2575 = vst [vmem:[%s312 + $0x18] sm:$0xff] %v2569
        %s2576 = sand.u32 %s142, 1
        %s2577 = scalar_lea.sflag [#allocation5], %s2576
        %s2578 = sand.u32 %s142, 1
        %s2579 = smul.addr %s2578, 32
        %s2580 = scalar_lea.vmem [#allocation11], %s2579
        // Predicated region
        $region57: #{tpu_custom_call.1} parent=39 // pred_check
          %p2581 = pneg %p152
        $region58: #{tpu_custom_call.1} parent=39 // pred_check_branch
          %2583 = sbr.rel (%p2581) target = $region60
        $region59: #{tpu_custom_call.1} parent=39 // pred_region
          %s2584 = smul.u32 4, %s24
          %s2586 = ssub.s32 512, 512
          %2587 = vsyncadd %s2577, %s2586
          %s2588 = smul.addr %s2584, 128
          %s2589 = scalar_lea.hbm %s5, %s2588
          %s2590 = sshll.u32 %s2580, 4
          %s2591 = int_to_ptr.vmem [resolvable:$true] %s2590
          %2596 = dma.vmem_to_hbm [thread:$0]  %s2591, 512, %s2589, %s2577, 128, 128, 8
        $region60: #{tpu_custom_call.1} parent=39 // pred_fallthru
          _
      $region40: #{tpu_custom_call.1} parent=5 // pred_fallthru
        _
      %p2597 = scmp.le.s32.totalorder 2, %s19
      // Predicated region
      $region61: #{tpu_custom_call.1} parent=5 // pred_check
        %p2598 = pneg %p2597
      $region62: #{tpu_custom_call.1} parent=5 // pred_check_branch
        %2600 = sbr.rel (%p2598) target = $region64
      $region63: #{tpu_custom_call.1} parent=5 // pred_region
        %s2601 = ssub.s32 %s19, 2
        // Predicated region
        $region65: #{tpu_custom_call.1} parent=63 // pred_check
          %p2602 = pneg %p158
        $region66: #{tpu_custom_call.1} parent=63 // pred_check_branch
          %2604 = sbr.rel (%p2602) target = $region68
        $region67: #{tpu_custom_call.1} parent=63 // pred_region
          %s2605 = sand.u32 %s143, 1
          %s2606 = scalar_lea.sflag [#allocation5], %s2605
          %s2607 = sand.u32 %s143, 1
          %s2608 = smul.addr %s2607, 32
          %s2609 = scalar_lea.vmem [#allocation11], %s2608
          %2610 = dma.done %s2606, 512
        $region68: #{tpu_custom_call.1} parent=63 // pred_fallthru
          _
      $region64: #{tpu_custom_call.1} parent=5 // pred_fallthru
        _
    $region6: #{tpu_custom_call.1} parent=1 // loop_footer
      %s23 = sadd.s32 1, %s19
    $region7: #{tpu_custom_call.1} parent=1 // loop_footer_branch
      %18 = sbr.rel target = $region3
    $region8: #{tpu_custom_call.1} parent=1 // loop_exit
      _
    %2611 = vsyncpa [#allocation4], 1
    %s2612 = scalar_lea.sflag [#allocation4], 1
    %2613 = vsyncpa %s2612, 1
    %2614 = vsyncpa [#allocation7], 1
    %2615 = vsyncpa [#allocation10], 1
    %2616 = vsyncpa [#allocation5], 1
    %s2617 = scalar_lea.sflag [#allocation5], 1
    %2618 = vsyncpa %s2617, 1

</llo_original>
